<compile_context>
chip_gen: v5e
topology: v5e:2x2
jax: 0.10.0
libtpu: 0.0.40
codegen_flags: <defaults>
</compile_context>

<pallas_src>
import functools

import jax
import jax.numpy as jnp
from jax.experimental import pallas as pl
from jax.experimental.pallas import tpu as pltpu

_EPS = 1e-5


# ----------------------------------------------------------------------------
# Fused Pallas kernel: B images per grid step, channels-first (C, H*W) layout.
# ----------------------------------------------------------------------------
def _fused_kernel(x_ref, w0_ref, b0_ref, wi_ref, bmap_ref, s2_ref, t2_ref,
                  o_ref, *, B, H, W, cdt):
    f32 = jnp.float32
    HW = H * W

    # Column (w) coordinate of every flattened spatial position; used to mask
    # taps that would read across a row boundary ('same' zero padding).
    ww = jax.lax.broadcasted_iota(jnp.int32, (1, HW), 1) % W

    def shift2d(img, dh, dw):
        """out[:, h*W + w] = img[:, (h+dh)*W + (w+dw)] inside the image, else 0."""
        off = dh * W + dw
        c = img.shape[0]
        if off > 0:
            img = jnp.concatenate(
                [img[:, off:], jnp.zeros((c, off), img.dtype)], axis=1)
        elif off < 0:
            img = jnp.concatenate(
                [jnp.zeros((c, -off), img.dtype), img[:, :off]], axis=1)
        # Out-of-range rows are already zero (non-cyclic shift); only mask the
        # columns that wrapped across a row boundary.
        if dw > 0:
            img = jnp.where(ww < (W - dw), img, jnp.zeros_like(img))
        elif dw < 0:
            img = jnp.where(ww >= (-dw), img, jnp.zeros_like(img))
        return img

    def conv(img, w_ref, ksize):
        """'same' KxK conv in (C, H*W) layout as K*K accumulated MXU dots."""
        r = ksize // 2
        acc = None
        t = 0
        for dh in range(-r, r + 1):
            for dw in range(-r, r + 1):
                d = jnp.dot(w_ref[t], shift2d(img, dh, dw),
                            preferred_element_type=f32)
                acc = d if acc is None else acc + d
                t += 1
        return acc

    b0 = b0_ref[...]       # (Cmid, 1)  BN0 shift
    bmap = bmap_ref[...]   # (Cout, HW) composed bias map (BN1 folded)
    s2 = s2_ref[...]       # (Cout, 1)
    t2 = t2_ref[...]       # (Cout, 1)

    for b in range(B):
        xb = x_ref[b].astype(cdt)                               # (Cin, HW)
        # conv0 3x3 (BN0 folded into weights) + ReLU
        y = jnp.maximum(conv(xb, w0_ref, 3) + b0, 0.0)          # (Cmid, HW) f32
        # whole inception module == one composed 5x5 conv + spatial bias map
        z = conv(y.astype(cdt), wi_ref, 5) + bmap               # (Cout, HW) f32
        z = jnp.maximum(z, 0.0)                                 # module ReLU
        z = jnp.maximum(z * s2 + t2, 0.0)                       # BN2 + ReLU
        o_ref[b] = z.astype(o_ref.dtype)


# ----------------------------------------------------------------------------
# Helpers: BN folding, small NHWC conv (used for bias maps and the reference)
# ----------------------------------------------------------------------------
def _bn_affine(bn):
    scale = bn["gamma"] / jnp.sqrt(bn["var"] + _EPS)
    shift = bn["beta"] - bn["mean"] * scale
    return scale, shift


def _conv_ref(x, w, b, kh, kw):
    """NHWC 'same' conv; w is (kh*kw, ci, co)."""
    wh = w.reshape(kh, kw, w.shape[1], w.shape[2])
    out = jax.lax.conv_general_dilated(
        x, wh, (1, 1),
        [((kh - 1) // 2, (kh - 1) // 2), ((kw - 1) // 2, (kw - 1) // 2)],
        dimension_numbers=("NHWC", "HWIO", "NHWC"))
    return out if b is None else out + b


def _grid_steps(batch):
    """1 grid step on single-TensorCore chips, 2 on two-core chips."""
    try:
        kind = jax.devices()[0].device_kind.lower()
    except Exception:
        kind = ""
    two_core = any(k in kind for k in ("v4", "v5p", "v7"))
    return 2 if (two_core and batch >= 2 and batch % 2 == 0) else 1


# ----------------------------------------------------------------------------
# Wrapper: weight composition, BN folding, BlockSpecs, grid
# ----------------------------------------------------------------------------
def double_conv_inception_pallas(x_nchw, p, *, compute_dtype=jnp.bfloat16):
    N, Cin, H, W = x_nchw.shape
    HW = H * W
    Cmid = p["w0"].shape[-1]
    Cout = p["w_c"].shape[-1]
    cdt = compute_dtype
    f32 = jnp.float32

    s0, t0 = _bn_affine(p["bn0"])
    s1, t1 = _bn_affine(p["bn1"])
    s2, t2 = _bn_affine(p["bn2"])

    # conv0 (3x3, Cin->Cmid) with BN0 scale folded; kernel layout (tap, Cmid, Cin).
    W0k = jnp.transpose(p["w0"] * s0[None, None, :], (0, 2, 1)).astype(cdt)
    B0k = t0.reshape(Cmid, 1).astype(f32)

    # ---- compose the InceptionResNetV2Module into ONE 5x5 conv --------------
    Wc = p["w_c"].reshape(4 * Cout, Cout)
    Wc1, Wc2, Wc3, Wc4 = (Wc[i * Cout:(i + 1) * Cout] for i in range(4))
    w_b1 = p["w_b1"].reshape(Cmid, Cout)
    w_b31 = p["w_b3_1"].reshape(Cmid, Cout)
    w_b51 = p["w_b5_1"].reshape(Cmid, Cout)
    w_bp = p["w_bp"].reshape(Cmid, Cout)

    comp5 = jnp.einsum("mc,tcd,de->tme", w_b51, p["w_b5_2"], Wc3)   # (25,Cmid,Cout)
    comp3 = jnp.einsum("mc,tcd,de->tme", w_b31, p["w_b3_2"], Wc2)   # (9,Cmid,Cout)
    comp3 = comp3 + (w_bp / 9.0) @ Wc4          # avg-pool branch: same weight x9 taps
    comp3 = jnp.pad(comp3.reshape(3, 3, Cmid, Cout),
                    ((1, 1), (1, 1), (0, 0), (0, 0))).reshape(25, Cmid, Cout)
    Wtot = comp5 + comp3
    Wtot = Wtot.at[12].add(w_b1 @ Wc1)          # 1x1 branch -> centre tap
    Wtot = Wtot * s1[None, None, :]             # fold BN1 scale
    Wik = jnp.transpose(Wtot, (0, 2, 1)).astype(cdt)                # (25,Cout,Cmid)

    # Spatially varying bias map: the intermediate 1x1 biases propagate through
    # the zero-padded 3x3/5x5 convs, so the effective bias differs at borders.
    bias3 = _conv_ref(jnp.broadcast_to(p["b_b3_1"], (1, H, W, Cout)),
                      p["w_b3_2"], p["b_b3_2"], 3, 3)
    bias5 = _conv_ref(jnp.broadcast_to(p["b_b5_1"], (1, H, W, Cout)),
                      p["w_b5_2"], p["b_b5_2"], 5, 5)
    bconst = p["b_b1"] @ Wc1 + p["b_bp"] @ Wc4 + p["b_c"]
    bmap = (jnp.einsum("bhwc,cd->bhwd", bias3, Wc2)
            + jnp.einsum("bhwc,cd->bhwd", bias5, Wc3) + bconst)
    bmap = bmap * s1 + t1                                           # fold BN1
    Bmapk = jnp.transpose(bmap[0], (2, 0, 1)).reshape(Cout, HW).astype(f32)

    S2k = s2.reshape(Cout, 1).astype(f32)
    T2k = t2.reshape(Cout, 1).astype(f32)

    G = _grid_steps(N)
    B = N // G

    x = x_nchw.reshape(N, Cin, HW)              # NCHW -> (N, C, H*W), pure reshape

    kern = functools.partial(_fused_kernel, B=B, H=H, W=W, cdt=cdt)

    def full(shape):
        nd = len(shape)
        return pl.BlockSpec(tuple(shape), lambda g: (0,) * nd)

    out = pl.pallas_call(
        kern,
        out_shape=jax.ShapeDtypeStruct((N, Cout, HW), x_nchw.dtype),
        grid=(G,),
        in_specs=[
            pl.BlockSpec((B, Cin, HW), lambda g: (g, 0, 0)),
            full(W0k.shape), full(B0k.shape),
            full(Wik.shape), full(Bmapk.shape),
            full(S2k.shape), full(T2k.shape),
        ],
        out_specs=pl.BlockSpec((B, Cout, HW), lambda g: (g, 0, 0)),
        compiler_params=pltpu.CompilerParams(
            dimension_semantics=("parallel",)),
    )(x, W0k, B0k, Wik, Bmapk, S2k, T2k)

    return out.reshape(N, Cout, H, W)           # (N, C, H*W) -> NCHW, pure reshape


# ----------------------------------------------------------------------------
# Parameters (deterministic synthetic init, fan-in scaled like PyTorch default)
# ----------------------------------------------------------------------------
def init_params(key, cin, cmid, cout):
    keys = iter(jax.random.split(key, 40))

    def w(kh, kw, ci, co):
        fan_in = float(kh * kw * ci)
        return (jax.random.normal(next(keys), (kh * kw, ci, co), jnp.float32)
                / jnp.sqrt(fan_in))

    def b(co):
        return 0.1 * jax.random.normal(next(keys), (co,), jnp.float32)

    def bn(c):
        return dict(
            gamma=1.0 + 0.1 * jax.random.normal(next(keys), (c,), jnp.float32),
            beta=0.1 * jax.random.normal(next(keys), (c,), jnp.float32),
            mean=0.1 * jax.random.normal(next(keys), (c,), jnp.float32),
            var=jax.random.uniform(next(keys), (c,), jnp.float32, 0.5, 1.5),
        )

    return dict(
        # nn.Conv2d(cin, cmid, 3, padding=1, bias=False) + BN + ReLU
        w0=w(3, 3, cin, cmid), bn0=bn(cmid),
        # InceptionResNetV2Module(cmid, cout)
        w_b1=w(1, 1, cmid, cout), b_b1=b(cout),
        w_b3_1=w(1, 1, cmid, cout), b_b3_1=b(cout),
        w_b3_2=w(3, 3, cout, cout), b_b3_2=b(cout),
        w_b5_1=w(1, 1, cmid, cout), b_b5_1=b(cout),
        w_b5_2=w(5, 5, cout, cout), b_b5_2=b(cout),
        w_bp=w(1, 1, cmid, cout), b_bp=b(cout),
        w_c=w(1, 1, 4 * cout, cout), b_c=b(cout),
        bn1=bn(cout),
        # outer BatchNorm2d(cout) + ReLU
        bn2=bn(cout),
    )


# ----------------------------------------------------------------------------
# Pure-JAX reference (f32, unfused) for the correctness smoke check
# ----------------------------------------------------------------------------
def double_conv_inception_ref(x_nchw, p):
    x = jnp.transpose(x_nchw, (0, 2, 3, 1))
    s0, t0 = _bn_affine(p["bn0"])
    y = jnp.maximum(_conv_ref(x, p["w0"], None, 3, 3) * s0 + t0, 0.0)

    b1 = _conv_ref(y, p["w_b1"], p["b_b1"], 1, 1)
    b3 = _conv_ref(_conv_ref(y, p["w_b3_1"], p["b_b3_1"], 1, 1),
                   p["w_b3_2"], p["b_b3_2"], 3, 3)
    b5 = _conv_ref(_conv_ref(y, p["w_b5_1"], p["b_b5_1"], 1, 1),
                   p["w_b5_2"], p["b_b5_2"], 5, 5)
    pool = jax.lax.reduce_window(
        y, 0.0, jax.lax.add, (1, 3, 3, 1), (1, 1, 1, 1),
        [(0, 0), (1, 1), (1, 1), (0, 0)]) / 9.0
    bp = _conv_ref(pool, p["w_bp"], p["b_bp"], 1, 1)

    cat = jnp.concatenate([b1, b3, b5, bp], axis=-1)
    s1, t1 = _bn_affine(p["bn1"])
    z = jnp.maximum(_conv_ref(cat, p["w_c"], p["b_c"], 1, 1) * s1 + t1, 0.0)
    s2, t2 = _bn_affine(p["bn2"])
    z = jnp.maximum(z * s2 + t2, 0.0)
    return jnp.transpose(z, (0, 3, 1, 2))


# ----------------------------------------------------------------------------
if __name__ == "__main__":
    N, CIN, H, W = 2, 4, 16, 16
    COUT = 8  # mid_channels == out_channels (mid_channels=None branch)

    key = jax.random.PRNGKey(0)
    kx, kp = jax.random.split(key)
    x = jax.random.normal(kx, (N, CIN, H, W), jnp.float32)  # NCHW like PyTorch
    params = init_params(kp, CIN, COUT, COUT)

    fwd = jax.jit(double_conv_inception_pallas)
    out = jax.block_until_ready(fwd(x, params))

    ref = double_conv_inception_ref(x, params)
    assert out.shape == (N, COUT, H, W)
    err = float(jnp.max(jnp.abs(out - ref)))
    assert bool(jnp.allclose(out, ref, rtol=5e-2, atol=5e-2)), f"max abs err {err}"

    print("KERNEL_OK")
</pallas_src>

<mosaic_0001>
module attributes {stable_mosaic.version = 11 : i64} {
  func.func @_fused_kernel(%arg0: i32, %arg1: memref<2x4x256xf32, #tpu.memory_space<vmem>>, %arg2: memref<9x8x4xbf16, #tpu.memory_space<vmem>>, %arg3: memref<8x1xf32, #tpu.memory_space<vmem>>, %arg4: memref<25x8x8xbf16, #tpu.memory_space<vmem>>, %arg5: memref<8x256xf32, #tpu.memory_space<vmem>>, %arg6: memref<8x1xf32, #tpu.memory_space<vmem>>, %arg7: memref<8x1xf32, #tpu.memory_space<vmem>>, %arg8: memref<2x8x256xf32, #tpu.memory_space<vmem>>) attributes {dimension_semantics = [#tpu.dimension_semantics<parallel>], iteration_bounds = array<i64: 1>, scalar_prefetch = 0 : i64, scratch_operands = 0 : i64, tpu.core_type = #tpu.core_type<tc>, window_params = [{transform_indices = @transform_0, window_bounds = array<i64: 2, 4, 256>}, {pipeline_mode = #tpu.pipeline_mode<synchronous>, transform_indices = @transform_1, window_bounds = array<i64: 9, 8, 4>}, {pipeline_mode = #tpu.pipeline_mode<synchronous>, transform_indices = @transform_2, window_bounds = array<i64: 8, 1>}, {pipeline_mode = #tpu.pipeline_mode<synchronous>, transform_indices = @transform_3, window_bounds = array<i64: 25, 8, 8>}, {pipeline_mode = #tpu.pipeline_mode<synchronous>, transform_indices = @transform_4, window_bounds = array<i64: 8, 256>}, {pipeline_mode = #tpu.pipeline_mode<synchronous>, transform_indices = @transform_5, window_bounds = array<i64: 8, 1>}, {pipeline_mode = #tpu.pipeline_mode<synchronous>, transform_indices = @transform_6, window_bounds = array<i64: 8, 1>}, {transform_indices = @transform_7, window_bounds = array<i64: 2, 8, 256>}]} {
    %0 = tpu.iota {dimensions = array<i32: 1>} : vector<1x256xi32>
    %c16_i32 = arith.constant 16 : i32
    %c0_i32 = arith.constant 0 : i32
    %1 = arith.cmpi eq, %c16_i32, %c0_i32 : i32
    %c1_i32 = arith.constant 1 : i32
    %2 = arith.select %1, %c1_i32, %c16_i32 : i32
    %3 = vector.broadcast %2 : i32 to vector<1x256xi32>
    %4 = arith.remsi %0, %3 : vector<1x256xi32>
    %c0_i32_0 = arith.constant 0 : i32
    %5 = vector.broadcast %c0_i32_0 : i32 to vector<1x256xi32>
    %6 = arith.cmpi ne, %4, %5 : vector<1x256xi32>
    %c0_i32_1 = arith.constant 0 : i32
    %7 = vector.broadcast %c0_i32_1 : i32 to vector<1x256xi32>
    %8 = arith.cmpi slt, %4, %7 : vector<1x256xi32>
    %c0_i32_2 = arith.constant 0 : i32
    %9 = arith.cmpi slt, %2, %c0_i32_2 : i32
    %10 = vector.broadcast %9 : i1 to vector<1x256xi1>
    %11 = vector.broadcast %10 : vector<1x256xi1> to vector<1x256xi1>
    %12 = arith.xori %8, %11 : vector<1x256xi1>
    %13 = arith.andi %12, %6 : vector<1x256xi1>
    %14 = vector.broadcast %2 : i32 to vector<1x256xi32>
    %15 = arith.addi %4, %14 : vector<1x256xi32>
    %16 = arith.select %13, %15, %4 : vector<1x256xi1>, vector<1x256xi32>
    %c0 = arith.constant 0 : index
    %c0_3 = arith.constant 0 : index
    %17 = vector.load %arg3[%c0, %c0_3] : memref<8x1xf32, #tpu.memory_space<vmem>>, vector<8x1xf32>
    %c0_4 = arith.constant 0 : index
    %c0_5 = arith.constant 0 : index
    %18 = vector.load %arg5[%c0_4, %c0_5] : memref<8x256xf32, #tpu.memory_space<vmem>>, vector<8x256xf32>
    %c0_6 = arith.constant 0 : index
    %c0_7 = arith.constant 0 : index
    %19 = vector.load %arg6[%c0_6, %c0_7] : memref<8x1xf32, #tpu.memory_space<vmem>>, vector<8x1xf32>
    %c0_8 = arith.constant 0 : index
    %c0_9 = arith.constant 0 : index
    %20 = vector.load %arg7[%c0_8, %c0_9] : memref<8x1xf32, #tpu.memory_space<vmem>>, vector<8x1xf32>
    %c0_10 = arith.constant 0 : index
    %c0_11 = arith.constant 0 : index
    %c0_12 = arith.constant 0 : index
    %21 = vector.load %arg1[%c0_10, %c0_11, %c0_12] : memref<2x4x256xf32, #tpu.memory_space<vmem>>, vector<1x4x256xf32>
    %22 = vector.shape_cast %21 : vector<1x4x256xf32> to vector<4x256xf32>
    %23 = arith.truncf %22 : vector<4x256xf32> to vector<4x256xbf16>
    %c0_13 = arith.constant 0 : index
    %c0_14 = arith.constant 0 : index
    %c0_15 = arith.constant 0 : index
    %24 = vector.load %arg2[%c0_13, %c0_14, %c0_15] : memref<9x8x4xbf16, #tpu.memory_space<vmem>>, vector<1x8x4xbf16>
    %25 = vector.shape_cast %24 : vector<1x8x4xbf16> to vector<8x4xbf16>
    %cst = arith.constant 0.000000e+00 : bf16
    %26 = vector.broadcast %cst : bf16 to vector<4x17xbf16>
    %27 = vector.extract_strided_slice %23 {offsets = [0, 0], sizes = [4, 239], strides = [1, 1]} : vector<4x256xbf16> to vector<4x239xbf16>
    %28 = tpu.concatenate %26, %27 in 1 : vector<4x17xbf16>, vector<4x239xbf16> -> vector<4x256xbf16>
    %c1_i32_16 = arith.constant 1 : i32
    %29 = vector.broadcast %c1_i32_16 : i32 to vector<1x256xi32>
    %30 = arith.cmpi sge, %16, %29 : vector<1x256xi32>
    %cst_17 = arith.constant 0.000000e+00 : bf16
    %31 = vector.broadcast %cst_17 : bf16 to vector<4x256xbf16>
    %32 = vector.shape_cast %30 : vector<1x256xi1> to vector<1x256xi1>
    %33 = vector.broadcast %32 : vector<1x256xi1> to vector<4x256xi1>
    %34 = arith.select %33, %28, %31 : vector<4x256xi1>, vector<4x256xbf16>
    %cst_18 = arith.constant dense<0.000000e+00> : vector<8x256xf32>
    %35 = tpu.matmul %25, %34, %cst_18 {dimension_numbers = #tpu.dot_dimension_numbers<[1], [0], [0], [1], [0, 0, 1, 1], [], []>} : vector<8x4xbf16>, vector<4x256xbf16>, vector<8x256xf32> -> vector<8x256xf32>
    %c1 = arith.constant 1 : index
    %c0_19 = arith.constant 0 : index
    %c0_20 = arith.constant 0 : index
    %36 = vector.load %arg2[%c1, %c0_19, %c0_20] : memref<9x8x4xbf16, #tpu.memory_space<vmem>>, vector<1x8x4xbf16>
    %37 = vector.shape_cast %36 : vector<1x8x4xbf16> to vector<8x4xbf16>
    %cst_21 = arith.constant 0.000000e+00 : bf16
    %38 = vector.broadcast %cst_21 : bf16 to vector<4x16xbf16>
    %39 = vector.extract_strided_slice %23 {offsets = [0, 0], sizes = [4, 240], strides = [1, 1]} : vector<4x256xbf16> to vector<4x240xbf16>
    %40 = tpu.concatenate %38, %39 in 1 : vector<4x16xbf16>, vector<4x240xbf16> -> vector<4x256xbf16>
    %cst_22 = arith.constant dense<0.000000e+00> : vector<8x256xf32>
    %41 = tpu.matmul %37, %40, %cst_22 {dimension_numbers = #tpu.dot_dimension_numbers<[1], [0], [0], [1], [0, 0, 1, 1], [], []>} : vector<8x4xbf16>, vector<4x256xbf16>, vector<8x256xf32> -> vector<8x256xf32>
    %42 = arith.addf %35, %41 : vector<8x256xf32>
    %c2 = arith.constant 2 : index
    %c0_23 = arith.constant 0 : index
    %c0_24 = arith.constant 0 : index
    %43 = vector.load %arg2[%c2, %c0_23, %c0_24] : memref<9x8x4xbf16, #tpu.memory_space<vmem>>, vector<1x8x4xbf16>
    %44 = vector.shape_cast %43 : vector<1x8x4xbf16> to vector<8x4xbf16>
    %cst_25 = arith.constant 0.000000e+00 : bf16
    %45 = vector.broadcast %cst_25 : bf16 to vector<4x15xbf16>
    %46 = vector.extract_strided_slice %23 {offsets = [0, 0], sizes = [4, 241], strides = [1, 1]} : vector<4x256xbf16> to vector<4x241xbf16>
    %47 = tpu.concatenate %45, %46 in 1 : vector<4x15xbf16>, vector<4x241xbf16> -> vector<4x256xbf16>
    %c15_i32 = arith.constant 15 : i32
    %48 = vector.broadcast %c15_i32 : i32 to vector<1x256xi32>
    %49 = arith.cmpi slt, %16, %48 : vector<1x256xi32>
    %cst_26 = arith.constant 0.000000e+00 : bf16
    %50 = vector.broadcast %cst_26 : bf16 to vector<4x256xbf16>
    %51 = vector.shape_cast %49 : vector<1x256xi1> to vector<1x256xi1>
    %52 = vector.broadcast %51 : vector<1x256xi1> to vector<4x256xi1>
    %53 = arith.select %52, %47, %50 : vector<4x256xi1>, vector<4x256xbf16>
    %cst_27 = arith.constant dense<0.000000e+00> : vector<8x256xf32>
    %54 = tpu.matmul %44, %53, %cst_27 {dimension_numbers = #tpu.dot_dimension_numbers<[1], [0], [0], [1], [0, 0, 1, 1], [], []>} : vector<8x4xbf16>, vector<4x256xbf16>, vector<8x256xf32> -> vector<8x256xf32>
    %55 = arith.addf %42, %54 : vector<8x256xf32>
    %c3 = arith.constant 3 : index
    %c0_28 = arith.constant 0 : index
    %c0_29 = arith.constant 0 : index
    %56 = vector.load %arg2[%c3, %c0_28, %c0_29] : memref<9x8x4xbf16, #tpu.memory_space<vmem>>, vector<1x8x4xbf16>
    %57 = vector.shape_cast %56 : vector<1x8x4xbf16> to vector<8x4xbf16>
    %cst_30 = arith.constant 0.000000e+00 : bf16
    %58 = vector.broadcast %cst_30 : bf16 to vector<4x1xbf16>
    %59 = vector.extract_strided_slice %23 {offsets = [0, 0], sizes = [4, 255], strides = [1, 1]} : vector<4x256xbf16> to vector<4x255xbf16>
    %60 = tpu.concatenate %58, %59 in 1 : vector<4x1xbf16>, vector<4x255xbf16> -> vector<4x256xbf16>
    %c1_i32_31 = arith.constant 1 : i32
    %61 = vector.broadcast %c1_i32_31 : i32 to vector<1x256xi32>
    %62 = arith.cmpi sge, %16, %61 : vector<1x256xi32>
    %cst_32 = arith.constant 0.000000e+00 : bf16
    %63 = vector.broadcast %cst_32 : bf16 to vector<4x256xbf16>
    %64 = vector.shape_cast %62 : vector<1x256xi1> to vector<1x256xi1>
    %65 = vector.broadcast %64 : vector<1x256xi1> to vector<4x256xi1>
    %66 = arith.select %65, %60, %63 : vector<4x256xi1>, vector<4x256xbf16>
    %cst_33 = arith.constant dense<0.000000e+00> : vector<8x256xf32>
    %67 = tpu.matmul %57, %66, %cst_33 {dimension_numbers = #tpu.dot_dimension_numbers<[1], [0], [0], [1], [0, 0, 1, 1], [], []>} : vector<8x4xbf16>, vector<4x256xbf16>, vector<8x256xf32> -> vector<8x256xf32>
    %68 = arith.addf %55, %67 : vector<8x256xf32>
    %c4 = arith.constant 4 : index
    %c0_34 = arith.constant 0 : index
    %c0_35 = arith.constant 0 : index
    %69 = vector.load %arg2[%c4, %c0_34, %c0_35] : memref<9x8x4xbf16, #tpu.memory_space<vmem>>, vector<1x8x4xbf16>
    %70 = vector.shape_cast %69 : vector<1x8x4xbf16> to vector<8x4xbf16>
    %cst_36 = arith.constant dense<0.000000e+00> : vector<8x256xf32>
    %71 = tpu.matmul %70, %23, %cst_36 {dimension_numbers = #tpu.dot_dimension_numbers<[1], [0], [0], [1], [0, 0, 1, 1], [], []>} : vector<8x4xbf16>, vector<4x256xbf16>, vector<8x256xf32> -> vector<8x256xf32>
    %72 = arith.addf %68, %71 : vector<8x256xf32>
    %c5 = arith.constant 5 : index
    %c0_37 = arith.constant 0 : index
    %c0_38 = arith.constant 0 : index
    %73 = vector.load %arg2[%c5, %c0_37, %c0_38] : memref<9x8x4xbf16, #tpu.memory_space<vmem>>, vector<1x8x4xbf16>
    %74 = vector.shape_cast %73 : vector<1x8x4xbf16> to vector<8x4xbf16>
    %75 = vector.extract_strided_slice %23 {offsets = [0, 1], sizes = [4, 255], strides = [1, 1]} : vector<4x256xbf16> to vector<4x255xbf16>
    %cst_39 = arith.constant 0.000000e+00 : bf16
    %76 = vector.broadcast %cst_39 : bf16 to vector<4x1xbf16>
    %77 = tpu.concatenate %75, %76 in 1 : vector<4x255xbf16>, vector<4x1xbf16> -> vector<4x256xbf16>
    %c15_i32_40 = arith.constant 15 : i32
    %78 = vector.broadcast %c15_i32_40 : i32 to vector<1x256xi32>
    %79 = arith.cmpi slt, %16, %78 : vector<1x256xi32>
    %cst_41 = arith.constant 0.000000e+00 : bf16
    %80 = vector.broadcast %cst_41 : bf16 to vector<4x256xbf16>
    %81 = vector.shape_cast %79 : vector<1x256xi1> to vector<1x256xi1>
    %82 = vector.broadcast %81 : vector<1x256xi1> to vector<4x256xi1>
    %83 = arith.select %82, %77, %80 : vector<4x256xi1>, vector<4x256xbf16>
    %cst_42 = arith.constant dense<0.000000e+00> : vector<8x256xf32>
    %84 = tpu.matmul %74, %83, %cst_42 {dimension_numbers = #tpu.dot_dimension_numbers<[1], [0], [0], [1], [0, 0, 1, 1], [], []>} : vector<8x4xbf16>, vector<4x256xbf16>, vector<8x256xf32> -> vector<8x256xf32>
    %85 = arith.addf %72, %84 : vector<8x256xf32>
    %c6 = arith.constant 6 : index
    %c0_43 = arith.constant 0 : index
    %c0_44 = arith.constant 0 : index
    %86 = vector.load %arg2[%c6, %c0_43, %c0_44] : memref<9x8x4xbf16, #tpu.memory_space<vmem>>, vector<1x8x4xbf16>
    %87 = vector.shape_cast %86 : vector<1x8x4xbf16> to vector<8x4xbf16>
    %88 = vector.extract_strided_slice %23 {offsets = [0, 15], sizes = [4, 241], strides = [1, 1]} : vector<4x256xbf16> to vector<4x241xbf16>
    %cst_45 = arith.constant 0.000000e+00 : bf16
    %89 = vector.broadcast %cst_45 : bf16 to vector<4x15xbf16>
    %90 = tpu.concatenate %88, %89 in 1 : vector<4x241xbf16>, vector<4x15xbf16> -> vector<4x256xbf16>
    %c1_i32_46 = arith.constant 1 : i32
    %91 = vector.broadcast %c1_i32_46 : i32 to vector<1x256xi32>
    %92 = arith.cmpi sge, %16, %91 : vector<1x256xi32>
    %cst_47 = arith.constant 0.000000e+00 : bf16
    %93 = vector.broadcast %cst_47 : bf16 to vector<4x256xbf16>
    %94 = vector.shape_cast %92 : vector<1x256xi1> to vector<1x256xi1>
    %95 = vector.broadcast %94 : vector<1x256xi1> to vector<4x256xi1>
    %96 = arith.select %95, %90, %93 : vector<4x256xi1>, vector<4x256xbf16>
    %cst_48 = arith.constant dense<0.000000e+00> : vector<8x256xf32>
    %97 = tpu.matmul %87, %96, %cst_48 {dimension_numbers = #tpu.dot_dimension_numbers<[1], [0], [0], [1], [0, 0, 1, 1], [], []>} : vector<8x4xbf16>, vector<4x256xbf16>, vector<8x256xf32> -> vector<8x256xf32>
    %98 = arith.addf %85, %97 : vector<8x256xf32>
    %c7 = arith.constant 7 : index
    %c0_49 = arith.constant 0 : index
    %c0_50 = arith.constant 0 : index
    %99 = vector.load %arg2[%c7, %c0_49, %c0_50] : memref<9x8x4xbf16, #tpu.memory_space<vmem>>, vector<1x8x4xbf16>
    %100 = vector.shape_cast %99 : vector<1x8x4xbf16> to vector<8x4xbf16>
    %101 = vector.extract_strided_slice %23 {offsets = [0, 16], sizes = [4, 240], strides = [1, 1]} : vector<4x256xbf16> to vector<4x240xbf16>
    %cst_51 = arith.constant 0.000000e+00 : bf16
    %102 = vector.broadcast %cst_51 : bf16 to vector<4x16xbf16>
    %103 = tpu.concatenate %101, %102 in 1 : vector<4x240xbf16>, vector<4x16xbf16> -> vector<4x256xbf16>
    %cst_52 = arith.constant dense<0.000000e+00> : vector<8x256xf32>
    %104 = tpu.matmul %100, %103, %cst_52 {dimension_numbers = #tpu.dot_dimension_numbers<[1], [0], [0], [1], [0, 0, 1, 1], [], []>} : vector<8x4xbf16>, vector<4x256xbf16>, vector<8x256xf32> -> vector<8x256xf32>
    %105 = arith.addf %98, %104 : vector<8x256xf32>
    %c8 = arith.constant 8 : index
    %c0_53 = arith.constant 0 : index
    %c0_54 = arith.constant 0 : index
    %106 = vector.load %arg2[%c8, %c0_53, %c0_54] : memref<9x8x4xbf16, #tpu.memory_space<vmem>>, vector<1x8x4xbf16>
    %107 = vector.shape_cast %106 : vector<1x8x4xbf16> to vector<8x4xbf16>
    %108 = vector.extract_strided_slice %23 {offsets = [0, 17], sizes = [4, 239], strides = [1, 1]} : vector<4x256xbf16> to vector<4x239xbf16>
    %cst_55 = arith.constant 0.000000e+00 : bf16
    %109 = vector.broadcast %cst_55 : bf16 to vector<4x17xbf16>
    %110 = tpu.concatenate %108, %109 in 1 : vector<4x239xbf16>, vector<4x17xbf16> -> vector<4x256xbf16>
    %c15_i32_56 = arith.constant 15 : i32
    %111 = vector.broadcast %c15_i32_56 : i32 to vector<1x256xi32>
    %112 = arith.cmpi slt, %16, %111 : vector<1x256xi32>
    %cst_57 = arith.constant 0.000000e+00 : bf16
    %113 = vector.broadcast %cst_57 : bf16 to vector<4x256xbf16>
    %114 = vector.shape_cast %112 : vector<1x256xi1> to vector<1x256xi1>
    %115 = vector.broadcast %114 : vector<1x256xi1> to vector<4x256xi1>
    %116 = arith.select %115, %110, %113 : vector<4x256xi1>, vector<4x256xbf16>
    %cst_58 = arith.constant dense<0.000000e+00> : vector<8x256xf32>
    %117 = tpu.matmul %107, %116, %cst_58 {dimension_numbers = #tpu.dot_dimension_numbers<[1], [0], [0], [1], [0, 0, 1, 1], [], []>} : vector<8x4xbf16>, vector<4x256xbf16>, vector<8x256xf32> -> vector<8x256xf32>
    %118 = arith.addf %105, %117 : vector<8x256xf32>
    %119 = vector.broadcast %17 : vector<8x1xf32> to vector<8x256xf32>
    %120 = arith.addf %118, %119 : vector<8x256xf32>
    %cst_59 = arith.constant 0.000000e+00 : f32
    %121 = vector.broadcast %cst_59 : f32 to vector<8x256xf32>
    %122 = arith.maximumf %120, %121 : vector<8x256xf32>
    %123 = arith.truncf %122 : vector<8x256xf32> to vector<8x256xbf16>
    %c0_60 = arith.constant 0 : index
    %c0_61 = arith.constant 0 : index
    %c0_62 = arith.constant 0 : index
    %124 = vector.load %arg4[%c0_60, %c0_61, %c0_62] : memref<25x8x8xbf16, #tpu.memory_space<vmem>>, vector<1x8x8xbf16>
    %125 = vector.shape_cast %124 : vector<1x8x8xbf16> to vector<8x8xbf16>
    %cst_63 = arith.constant 0.000000e+00 : bf16
    %126 = vector.broadcast %cst_63 : bf16 to vector<8x34xbf16>
    %127 = vector.extract_strided_slice %123 {offsets = [0, 0], sizes = [8, 222], strides = [1, 1]} : vector<8x256xbf16> to vector<8x222xbf16>
    %128 = tpu.concatenate %126, %127 in 1 : vector<8x34xbf16>, vector<8x222xbf16> -> vector<8x256xbf16>
    %c2_i32 = arith.constant 2 : i32
    %129 = vector.broadcast %c2_i32 : i32 to vector<1x256xi32>
    %130 = arith.cmpi sge, %16, %129 : vector<1x256xi32>
    %cst_64 = arith.constant 0.000000e+00 : bf16
    %131 = vector.broadcast %cst_64 : bf16 to vector<8x256xbf16>
    %132 = vector.shape_cast %130 : vector<1x256xi1> to vector<1x256xi1>
    %133 = vector.broadcast %132 : vector<1x256xi1> to vector<8x256xi1>
    %134 = arith.select %133, %128, %131 : vector<8x256xi1>, vector<8x256xbf16>
    %cst_65 = arith.constant dense<0.000000e+00> : vector<8x256xf32>
    %135 = tpu.matmul %125, %134, %cst_65 {dimension_numbers = #tpu.dot_dimension_numbers<[1], [0], [0], [1], [0, 0, 1, 1], [], []>} : vector<8x8xbf16>, vector<8x256xbf16>, vector<8x256xf32> -> vector<8x256xf32>
    %c1_66 = arith.constant 1 : index
    %c0_67 = arith.constant 0 : index
    %c0_68 = arith.constant 0 : index
    %136 = vector.load %arg4[%c1_66, %c0_67, %c0_68] : memref<25x8x8xbf16, #tpu.memory_space<vmem>>, vector<1x8x8xbf16>
    %137 = vector.shape_cast %136 : vector<1x8x8xbf16> to vector<8x8xbf16>
    %cst_69 = arith.constant 0.000000e+00 : bf16
    %138 = vector.broadcast %cst_69 : bf16 to vector<8x33xbf16>
    %139 = vector.extract_strided_slice %123 {offsets = [0, 0], sizes = [8, 223], strides = [1, 1]} : vector<8x256xbf16> to vector<8x223xbf16>
    %140 = tpu.concatenate %138, %139 in 1 : vector<8x33xbf16>, vector<8x223xbf16> -> vector<8x256xbf16>
    %c1_i32_70 = arith.constant 1 : i32
    %141 = vector.broadcast %c1_i32_70 : i32 to vector<1x256xi32>
    %142 = arith.cmpi sge, %16, %141 : vector<1x256xi32>
    %cst_71 = arith.constant 0.000000e+00 : bf16
    %143 = vector.broadcast %cst_71 : bf16 to vector<8x256xbf16>
    %144 = vector.shape_cast %142 : vector<1x256xi1> to vector<1x256xi1>
    %145 = vector.broadcast %144 : vector<1x256xi1> to vector<8x256xi1>
    %146 = arith.select %145, %140, %143 : vector<8x256xi1>, vector<8x256xbf16>
    %cst_72 = arith.constant dense<0.000000e+00> : vector<8x256xf32>
    %147 = tpu.matmul %137, %146, %cst_72 {dimension_numbers = #tpu.dot_dimension_numbers<[1], [0], [0], [1], [0, 0, 1, 1], [], []>} : vector<8x8xbf16>, vector<8x256xbf16>, vector<8x256xf32> -> vector<8x256xf32>
    %148 = arith.addf %135, %147 : vector<8x256xf32>
    %c2_73 = arith.constant 2 : index
    %c0_74 = arith.constant 0 : index
    %c0_75 = arith.constant 0 : index
    %149 = vector.load %arg4[%c2_73, %c0_74, %c0_75] : memref<25x8x8xbf16, #tpu.memory_space<vmem>>, vector<1x8x8xbf16>
    %150 = vector.shape_cast %149 : vector<1x8x8xbf16> to vector<8x8xbf16>
    %cst_76 = arith.constant 0.000000e+00 : bf16
    %151 = vector.broadcast %cst_76 : bf16 to vector<8x32xbf16>
    %152 = vector.extract_strided_slice %123 {offsets = [0, 0], sizes = [8, 224], strides = [1, 1]} : vector<8x256xbf16> to vector<8x224xbf16>
    %153 = tpu.concatenate %151, %152 in 1 : vector<8x32xbf16>, vector<8x224xbf16> -> vector<8x256xbf16>
    %cst_77 = arith.constant dense<0.000000e+00> : vector<8x256xf32>
    %154 = tpu.matmul %150, %153, %cst_77 {dimension_numbers = #tpu.dot_dimension_numbers<[1], [0], [0], [1], [0, 0, 1, 1], [], []>} : vector<8x8xbf16>, vector<8x256xbf16>, vector<8x256xf32> -> vector<8x256xf32>
    %155 = arith.addf %148, %154 : vector<8x256xf32>
    %c3_78 = arith.constant 3 : index
    %c0_79 = arith.constant 0 : index
    %c0_80 = arith.constant 0 : index
    %156 = vector.load %arg4[%c3_78, %c0_79, %c0_80] : memref<25x8x8xbf16, #tpu.memory_space<vmem>>, vector<1x8x8xbf16>
    %157 = vector.shape_cast %156 : vector<1x8x8xbf16> to vector<8x8xbf16>
    %cst_81 = arith.constant 0.000000e+00 : bf16
    %158 = vector.broadcast %cst_81 : bf16 to vector<8x31xbf16>
    %159 = vector.extract_strided_slice %123 {offsets = [0, 0], sizes = [8, 225], strides = [1, 1]} : vector<8x256xbf16> to vector<8x225xbf16>
    %160 = tpu.concatenate %158, %159 in 1 : vector<8x31xbf16>, vector<8x225xbf16> -> vector<8x256xbf16>
    %c15_i32_82 = arith.constant 15 : i32
    %161 = vector.broadcast %c15_i32_82 : i32 to vector<1x256xi32>
    %162 = arith.cmpi slt, %16, %161 : vector<1x256xi32>
    %cst_83 = arith.constant 0.000000e+00 : bf16
    %163 = vector.broadcast %cst_83 : bf16 to vector<8x256xbf16>
    %164 = vector.shape_cast %162 : vector<1x256xi1> to vector<1x256xi1>
    %165 = vector.broadcast %164 : vector<1x256xi1> to vector<8x256xi1>
    %166 = arith.select %165, %160, %163 : vector<8x256xi1>, vector<8x256xbf16>
    %cst_84 = arith.constant dense<0.000000e+00> : vector<8x256xf32>
    %167 = tpu.matmul %157, %166, %cst_84 {dimension_numbers = #tpu.dot_dimension_numbers<[1], [0], [0], [1], [0, 0, 1, 1], [], []>} : vector<8x8xbf16>, vector<8x256xbf16>, vector<8x256xf32> -> vector<8x256xf32>
    %168 = arith.addf %155, %167 : vector<8x256xf32>
    %c4_85 = arith.constant 4 : index
    %c0_86 = arith.constant 0 : index
    %c0_87 = arith.constant 0 : index
    %169 = vector.load %arg4[%c4_85, %c0_86, %c0_87] : memref<25x8x8xbf16, #tpu.memory_space<vmem>>, vector<1x8x8xbf16>
    %170 = vector.shape_cast %169 : vector<1x8x8xbf16> to vector<8x8xbf16>
    %cst_88 = arith.constant 0.000000e+00 : bf16
    %171 = vector.broadcast %cst_88 : bf16 to vector<8x30xbf16>
    %172 = vector.extract_strided_slice %123 {offsets = [0, 0], sizes = [8, 226], strides = [1, 1]} : vector<8x256xbf16> to vector<8x226xbf16>
    %173 = tpu.concatenate %171, %172 in 1 : vector<8x30xbf16>, vector<8x226xbf16> -> vector<8x256xbf16>
    %c14_i32 = arith.constant 14 : i32
    %174 = vector.broadcast %c14_i32 : i32 to vector<1x256xi32>
    %175 = arith.cmpi slt, %16, %174 : vector<1x256xi32>
    %cst_89 = arith.constant 0.000000e+00 : bf16
    %176 = vector.broadcast %cst_89 : bf16 to vector<8x256xbf16>
    %177 = vector.shape_cast %175 : vector<1x256xi1> to vector<1x256xi1>
    %178 = vector.broadcast %177 : vector<1x256xi1> to vector<8x256xi1>
    %179 = arith.select %178, %173, %176 : vector<8x256xi1>, vector<8x256xbf16>
    %cst_90 = arith.constant dense<0.000000e+00> : vector<8x256xf32>
    %180 = tpu.matmul %170, %179, %cst_90 {dimension_numbers = #tpu.dot_dimension_numbers<[1], [0], [0], [1], [0, 0, 1, 1], [], []>} : vector<8x8xbf16>, vector<8x256xbf16>, vector<8x256xf32> -> vector<8x256xf32>
    %181 = arith.addf %168, %180 : vector<8x256xf32>
    %c5_91 = arith.constant 5 : index
    %c0_92 = arith.constant 0 : index
    %c0_93 = arith.constant 0 : index
    %182 = vector.load %arg4[%c5_91, %c0_92, %c0_93] : memref<25x8x8xbf16, #tpu.memory_space<vmem>>, vector<1x8x8xbf16>
    %183 = vector.shape_cast %182 : vector<1x8x8xbf16> to vector<8x8xbf16>
    %cst_94 = arith.constant 0.000000e+00 : bf16
    %184 = vector.broadcast %cst_94 : bf16 to vector<8x18xbf16>
    %185 = vector.extract_strided_slice %123 {offsets = [0, 0], sizes = [8, 238], strides = [1, 1]} : vector<8x256xbf16> to vector<8x238xbf16>
    %186 = tpu.concatenate %184, %185 in 1 : vector<8x18xbf16>, vector<8x238xbf16> -> vector<8x256xbf16>
    %c2_i32_95 = arith.constant 2 : i32
    %187 = vector.broadcast %c2_i32_95 : i32 to vector<1x256xi32>
    %188 = arith.cmpi sge, %16, %187 : vector<1x256xi32>
    %cst_96 = arith.constant 0.000000e+00 : bf16
    %189 = vector.broadcast %cst_96 : bf16 to vector<8x256xbf16>
    %190 = vector.shape_cast %188 : vector<1x256xi1> to vector<1x256xi1>
    %191 = vector.broadcast %190 : vector<1x256xi1> to vector<8x256xi1>
    %192 = arith.select %191, %186, %189 : vector<8x256xi1>, vector<8x256xbf16>
    %cst_97 = arith.constant dense<0.000000e+00> : vector<8x256xf32>
    %193 = tpu.matmul %183, %192, %cst_97 {dimension_numbers = #tpu.dot_dimension_numbers<[1], [0], [0], [1], [0, 0, 1, 1], [], []>} : vector<8x8xbf16>, vector<8x256xbf16>, vector<8x256xf32> -> vector<8x256xf32>
    %194 = arith.addf %181, %193 : vector<8x256xf32>
    %c6_98 = arith.constant 6 : index
    %c0_99 = arith.constant 0 : index
    %c0_100 = arith.constant 0 : index
    %195 = vector.load %arg4[%c6_98, %c0_99, %c0_100] : memref<25x8x8xbf16, #tpu.memory_space<vmem>>, vector<1x8x8xbf16>
    %196 = vector.shape_cast %195 : vector<1x8x8xbf16> to vector<8x8xbf16>
    %cst_101 = arith.constant 0.000000e+00 : bf16
    %197 = vector.broadcast %cst_101 : bf16 to vector<8x17xbf16>
    %198 = vector.extract_strided_slice %123 {offsets = [0, 0], sizes = [8, 239], strides = [1, 1]} : vector<8x256xbf16> to vector<8x239xbf16>
    %199 = tpu.concatenate %197, %198 in 1 : vector<8x17xbf16>, vector<8x239xbf16> -> vector<8x256xbf16>
    %c1_i32_102 = arith.constant 1 : i32
    %200 = vector.broadcast %c1_i32_102 : i32 to vector<1x256xi32>
    %201 = arith.cmpi sge, %16, %200 : vector<1x256xi32>
    %cst_103 = arith.constant 0.000000e+00 : bf16
    %202 = vector.broadcast %cst_103 : bf16 to vector<8x256xbf16>
    %203 = vector.shape_cast %201 : vector<1x256xi1> to vector<1x256xi1>
    %204 = vector.broadcast %203 : vector<1x256xi1> to vector<8x256xi1>
    %205 = arith.select %204, %199, %202 : vector<8x256xi1>, vector<8x256xbf16>
    %cst_104 = arith.constant dense<0.000000e+00> : vector<8x256xf32>
    %206 = tpu.matmul %196, %205, %cst_104 {dimension_numbers = #tpu.dot_dimension_numbers<[1], [0], [0], [1], [0, 0, 1, 1], [], []>} : vector<8x8xbf16>, vector<8x256xbf16>, vector<8x256xf32> -> vector<8x256xf32>
    %207 = arith.addf %194, %206 : vector<8x256xf32>
    %c7_105 = arith.constant 7 : index
    %c0_106 = arith.constant 0 : index
    %c0_107 = arith.constant 0 : index
    %208 = vector.load %arg4[%c7_105, %c0_106, %c0_107] : memref<25x8x8xbf16, #tpu.memory_space<vmem>>, vector<1x8x8xbf16>
    %209 = vector.shape_cast %208 : vector<1x8x8xbf16> to vector<8x8xbf16>
    %cst_108 = arith.constant 0.000000e+00 : bf16
    %210 = vector.broadcast %cst_108 : bf16 to vector<8x16xbf16>
    %211 = vector.extract_strided_slice %123 {offsets = [0, 0], sizes = [8, 240], strides = [1, 1]} : vector<8x256xbf16> to vector<8x240xbf16>
    %212 = tpu.concatenate %210, %211 in 1 : vector<8x16xbf16>, vector<8x240xbf16> -> vector<8x256xbf16>
    %cst_109 = arith.constant dense<0.000000e+00> : vector<8x256xf32>
    %213 = tpu.matmul %209, %212, %cst_109 {dimension_numbers = #tpu.dot_dimension_numbers<[1], [0], [0], [1], [0, 0, 1, 1], [], []>} : vector<8x8xbf16>, vector<8x256xbf16>, vector<8x256xf32> -> vector<8x256xf32>
    %214 = arith.addf %207, %213 : vector<8x256xf32>
    %c8_110 = arith.constant 8 : index
    %c0_111 = arith.constant 0 : index
    %c0_112 = arith.constant 0 : index
    %215 = vector.load %arg4[%c8_110, %c0_111, %c0_112] : memref<25x8x8xbf16, #tpu.memory_space<vmem>>, vector<1x8x8xbf16>
    %216 = vector.shape_cast %215 : vector<1x8x8xbf16> to vector<8x8xbf16>
    %cst_113 = arith.constant 0.000000e+00 : bf16
    %217 = vector.broadcast %cst_113 : bf16 to vector<8x15xbf16>
    %218 = vector.extract_strided_slice %123 {offsets = [0, 0], sizes = [8, 241], strides = [1, 1]} : vector<8x256xbf16> to vector<8x241xbf16>
    %219 = tpu.concatenate %217, %218 in 1 : vector<8x15xbf16>, vector<8x241xbf16> -> vector<8x256xbf16>
    %c15_i32_114 = arith.constant 15 : i32
    %220 = vector.broadcast %c15_i32_114 : i32 to vector<1x256xi32>
    %221 = arith.cmpi slt, %16, %220 : vector<1x256xi32>
    %cst_115 = arith.constant 0.000000e+00 : bf16
    %222 = vector.broadcast %cst_115 : bf16 to vector<8x256xbf16>
    %223 = vector.shape_cast %221 : vector<1x256xi1> to vector<1x256xi1>
    %224 = vector.broadcast %223 : vector<1x256xi1> to vector<8x256xi1>
    %225 = arith.select %224, %219, %222 : vector<8x256xi1>, vector<8x256xbf16>
    %cst_116 = arith.constant dense<0.000000e+00> : vector<8x256xf32>
    %226 = tpu.matmul %216, %225, %cst_116 {dimension_numbers = #tpu.dot_dimension_numbers<[1], [0], [0], [1], [0, 0, 1, 1], [], []>} : vector<8x8xbf16>, vector<8x256xbf16>, vector<8x256xf32> -> vector<8x256xf32>
    %227 = arith.addf %214, %226 : vector<8x256xf32>
    %c9 = arith.constant 9 : index
    %c0_117 = arith.constant 0 : index
    %c0_118 = arith.constant 0 : index
    %228 = vector.load %arg4[%c9, %c0_117, %c0_118] : memref<25x8x8xbf16, #tpu.memory_space<vmem>>, vector<1x8x8xbf16>
    %229 = vector.shape_cast %228 : vector<1x8x8xbf16> to vector<8x8xbf16>
    %cst_119 = arith.constant 0.000000e+00 : bf16
    %230 = vector.broadcast %cst_119 : bf16 to vector<8x14xbf16>
    %231 = vector.extract_strided_slice %123 {offsets = [0, 0], sizes = [8, 242], strides = [1, 1]} : vector<8x256xbf16> to vector<8x242xbf16>
    %232 = tpu.concatenate %230, %231 in 1 : vector<8x14xbf16>, vector<8x242xbf16> -> vector<8x256xbf16>
    %c14_i32_120 = arith.constant 14 : i32
    %233 = vector.broadcast %c14_i32_120 : i32 to vector<1x256xi32>
    %234 = arith.cmpi slt, %16, %233 : vector<1x256xi32>
    %cst_121 = arith.constant 0.000000e+00 : bf16
    %235 = vector.broadcast %cst_121 : bf16 to vector<8x256xbf16>
    %236 = vector.shape_cast %234 : vector<1x256xi1> to vector<1x256xi1>
    %237 = vector.broadcast %236 : vector<1x256xi1> to vector<8x256xi1>
    %238 = arith.select %237, %232, %235 : vector<8x256xi1>, vector<8x256xbf16>
    %cst_122 = arith.constant dense<0.000000e+00> : vector<8x256xf32>
    %239 = tpu.matmul %229, %238, %cst_122 {dimension_numbers = #tpu.dot_dimension_numbers<[1], [0], [0], [1], [0, 0, 1, 1], [], []>} : vector<8x8xbf16>, vector<8x256xbf16>, vector<8x256xf32> -> vector<8x256xf32>
    %240 = arith.addf %227, %239 : vector<8x256xf32>
    %c10 = arith.constant 10 : index
    %c0_123 = arith.constant 0 : index
    %c0_124 = arith.constant 0 : index
    %241 = vector.load %arg4[%c10, %c0_123, %c0_124] : memref<25x8x8xbf16, #tpu.memory_space<vmem>>, vector<1x8x8xbf16>
    %242 = vector.shape_cast %241 : vector<1x8x8xbf16> to vector<8x8xbf16>
    %cst_125 = arith.constant 0.000000e+00 : bf16
    %243 = vector.broadcast %cst_125 : bf16 to vector<8x2xbf16>
    %244 = vector.extract_strided_slice %123 {offsets = [0, 0], sizes = [8, 254], strides = [1, 1]} : vector<8x256xbf16> to vector<8x254xbf16>
    %245 = tpu.concatenate %243, %244 in 1 : vector<8x2xbf16>, vector<8x254xbf16> -> vector<8x256xbf16>
    %c2_i32_126 = arith.constant 2 : i32
    %246 = vector.broadcast %c2_i32_126 : i32 to vector<1x256xi32>
    %247 = arith.cmpi sge, %16, %246 : vector<1x256xi32>
    %cst_127 = arith.constant 0.000000e+00 : bf16
    %248 = vector.broadcast %cst_127 : bf16 to vector<8x256xbf16>
    %249 = vector.shape_cast %247 : vector<1x256xi1> to vector<1x256xi1>
    %250 = vector.broadcast %249 : vector<1x256xi1> to vector<8x256xi1>
    %251 = arith.select %250, %245, %248 : vector<8x256xi1>, vector<8x256xbf16>
    %cst_128 = arith.constant dense<0.000000e+00> : vector<8x256xf32>
    %252 = tpu.matmul %242, %251, %cst_128 {dimension_numbers = #tpu.dot_dimension_numbers<[1], [0], [0], [1], [0, 0, 1, 1], [], []>} : vector<8x8xbf16>, vector<8x256xbf16>, vector<8x256xf32> -> vector<8x256xf32>
    %253 = arith.addf %240, %252 : vector<8x256xf32>
    %c11 = arith.constant 11 : index
    %c0_129 = arith.constant 0 : index
    %c0_130 = arith.constant 0 : index
    %254 = vector.load %arg4[%c11, %c0_129, %c0_130] : memref<25x8x8xbf16, #tpu.memory_space<vmem>>, vector<1x8x8xbf16>
    %255 = vector.shape_cast %254 : vector<1x8x8xbf16> to vector<8x8xbf16>
    %cst_131 = arith.constant 0.000000e+00 : bf16
    %256 = vector.broadcast %cst_131 : bf16 to vector<8x1xbf16>
    %257 = vector.extract_strided_slice %123 {offsets = [0, 0], sizes = [8, 255], strides = [1, 1]} : vector<8x256xbf16> to vector<8x255xbf16>
    %258 = tpu.concatenate %256, %257 in 1 : vector<8x1xbf16>, vector<8x255xbf16> -> vector<8x256xbf16>
    %c1_i32_132 = arith.constant 1 : i32
    %259 = vector.broadcast %c1_i32_132 : i32 to vector<1x256xi32>
    %260 = arith.cmpi sge, %16, %259 : vector<1x256xi32>
    %cst_133 = arith.constant 0.000000e+00 : bf16
    %261 = vector.broadcast %cst_133 : bf16 to vector<8x256xbf16>
    %262 = vector.shape_cast %260 : vector<1x256xi1> to vector<1x256xi1>
    %263 = vector.broadcast %262 : vector<1x256xi1> to vector<8x256xi1>
    %264 = arith.select %263, %258, %261 : vector<8x256xi1>, vector<8x256xbf16>
    %cst_134 = arith.constant dense<0.000000e+00> : vector<8x256xf32>
    %265 = tpu.matmul %255, %264, %cst_134 {dimension_numbers = #tpu.dot_dimension_numbers<[1], [0], [0], [1], [0, 0, 1, 1], [], []>} : vector<8x8xbf16>, vector<8x256xbf16>, vector<8x256xf32> -> vector<8x256xf32>
    %266 = arith.addf %253, %265 : vector<8x256xf32>
    %c12 = arith.constant 12 : index
    %c0_135 = arith.constant 0 : index
    %c0_136 = arith.constant 0 : index
    %267 = vector.load %arg4[%c12, %c0_135, %c0_136] : memref<25x8x8xbf16, #tpu.memory_space<vmem>>, vector<1x8x8xbf16>
    %268 = vector.shape_cast %267 : vector<1x8x8xbf16> to vector<8x8xbf16>
    %cst_137 = arith.constant dense<0.000000e+00> : vector<8x256xf32>
    %269 = tpu.matmul %268, %123, %cst_137 {dimension_numbers = #tpu.dot_dimension_numbers<[1], [0], [0], [1], [0, 0, 1, 1], [], []>} : vector<8x8xbf16>, vector<8x256xbf16>, vector<8x256xf32> -> vector<8x256xf32>
    %270 = arith.addf %266, %269 : vector<8x256xf32>
    %c13 = arith.constant 13 : index
    %c0_138 = arith.constant 0 : index
    %c0_139 = arith.constant 0 : index
    %271 = vector.load %arg4[%c13, %c0_138, %c0_139] : memref<25x8x8xbf16, #tpu.memory_space<vmem>>, vector<1x8x8xbf16>
    %272 = vector.shape_cast %271 : vector<1x8x8xbf16> to vector<8x8xbf16>
    %273 = vector.extract_strided_slice %123 {offsets = [0, 1], sizes = [8, 255], strides = [1, 1]} : vector<8x256xbf16> to vector<8x255xbf16>
    %cst_140 = arith.constant 0.000000e+00 : bf16
    %274 = vector.broadcast %cst_140 : bf16 to vector<8x1xbf16>
    %275 = tpu.concatenate %273, %274 in 1 : vector<8x255xbf16>, vector<8x1xbf16> -> vector<8x256xbf16>
    %c15_i32_141 = arith.constant 15 : i32
    %276 = vector.broadcast %c15_i32_141 : i32 to vector<1x256xi32>
    %277 = arith.cmpi slt, %16, %276 : vector<1x256xi32>
    %cst_142 = arith.constant 0.000000e+00 : bf16
    %278 = vector.broadcast %cst_142 : bf16 to vector<8x256xbf16>
    %279 = vector.shape_cast %277 : vector<1x256xi1> to vector<1x256xi1>
    %280 = vector.broadcast %279 : vector<1x256xi1> to vector<8x256xi1>
    %281 = arith.select %280, %275, %278 : vector<8x256xi1>, vector<8x256xbf16>
    %cst_143 = arith.constant dense<0.000000e+00> : vector<8x256xf32>
    %282 = tpu.matmul %272, %281, %cst_143 {dimension_numbers = #tpu.dot_dimension_numbers<[1], [0], [0], [1], [0, 0, 1, 1], [], []>} : vector<8x8xbf16>, vector<8x256xbf16>, vector<8x256xf32> -> vector<8x256xf32>
    %283 = arith.addf %270, %282 : vector<8x256xf32>
    %c14 = arith.constant 14 : index
    %c0_144 = arith.constant 0 : index
    %c0_145 = arith.constant 0 : index
    %284 = vector.load %arg4[%c14, %c0_144, %c0_145] : memref<25x8x8xbf16, #tpu.memory_space<vmem>>, vector<1x8x8xbf16>
    %285 = vector.shape_cast %284 : vector<1x8x8xbf16> to vector<8x8xbf16>
    %286 = vector.extract_strided_slice %123 {offsets = [0, 2], sizes = [8, 254], strides = [1, 1]} : vector<8x256xbf16> to vector<8x254xbf16>
    %cst_146 = arith.constant 0.000000e+00 : bf16
    %287 = vector.broadcast %cst_146 : bf16 to vector<8x2xbf16>
    %288 = tpu.concatenate %286, %287 in 1 : vector<8x254xbf16>, vector<8x2xbf16> -> vector<8x256xbf16>
    %c14_i32_147 = arith.constant 14 : i32
    %289 = vector.broadcast %c14_i32_147 : i32 to vector<1x256xi32>
    %290 = arith.cmpi slt, %16, %289 : vector<1x256xi32>
    %cst_148 = arith.constant 0.000000e+00 : bf16
    %291 = vector.broadcast %cst_148 : bf16 to vector<8x256xbf16>
    %292 = vector.shape_cast %290 : vector<1x256xi1> to vector<1x256xi1>
    %293 = vector.broadcast %292 : vector<1x256xi1> to vector<8x256xi1>
    %294 = arith.select %293, %288, %291 : vector<8x256xi1>, vector<8x256xbf16>
    %cst_149 = arith.constant dense<0.000000e+00> : vector<8x256xf32>
    %295 = tpu.matmul %285, %294, %cst_149 {dimension_numbers = #tpu.dot_dimension_numbers<[1], [0], [0], [1], [0, 0, 1, 1], [], []>} : vector<8x8xbf16>, vector<8x256xbf16>, vector<8x256xf32> -> vector<8x256xf32>
    %296 = arith.addf %283, %295 : vector<8x256xf32>
    %c15 = arith.constant 15 : index
    %c0_150 = arith.constant 0 : index
    %c0_151 = arith.constant 0 : index
    %297 = vector.load %arg4[%c15, %c0_150, %c0_151] : memref<25x8x8xbf16, #tpu.memory_space<vmem>>, vector<1x8x8xbf16>
    %298 = vector.shape_cast %297 : vector<1x8x8xbf16> to vector<8x8xbf16>
    %299 = vector.extract_strided_slice %123 {offsets = [0, 14], sizes = [8, 242], strides = [1, 1]} : vector<8x256xbf16> to vector<8x242xbf16>
    %cst_152 = arith.constant 0.000000e+00 : bf16
    %300 = vector.broadcast %cst_152 : bf16 to vector<8x14xbf16>
    %301 = tpu.concatenate %299, %300 in 1 : vector<8x242xbf16>, vector<8x14xbf16> -> vector<8x256xbf16>
    %c2_i32_153 = arith.constant 2 : i32
    %302 = vector.broadcast %c2_i32_153 : i32 to vector<1x256xi32>
    %303 = arith.cmpi sge, %16, %302 : vector<1x256xi32>
    %cst_154 = arith.constant 0.000000e+00 : bf16
    %304 = vector.broadcast %cst_154 : bf16 to vector<8x256xbf16>
    %305 = vector.shape_cast %303 : vector<1x256xi1> to vector<1x256xi1>
    %306 = vector.broadcast %305 : vector<1x256xi1> to vector<8x256xi1>
    %307 = arith.select %306, %301, %304 : vector<8x256xi1>, vector<8x256xbf16>
    %cst_155 = arith.constant dense<0.000000e+00> : vector<8x256xf32>
    %308 = tpu.matmul %298, %307, %cst_155 {dimension_numbers = #tpu.dot_dimension_numbers<[1], [0], [0], [1], [0, 0, 1, 1], [], []>} : vector<8x8xbf16>, vector<8x256xbf16>, vector<8x256xf32> -> vector<8x256xf32>
    %309 = arith.addf %296, %308 : vector<8x256xf32>
    %c16 = arith.constant 16 : index
    %c0_156 = arith.constant 0 : index
    %c0_157 = arith.constant 0 : index
    %310 = vector.load %arg4[%c16, %c0_156, %c0_157] : memref<25x8x8xbf16, #tpu.memory_space<vmem>>, vector<1x8x8xbf16>
    %311 = vector.shape_cast %310 : vector<1x8x8xbf16> to vector<8x8xbf16>
    %312 = vector.extract_strided_slice %123 {offsets = [0, 15], sizes = [8, 241], strides = [1, 1]} : vector<8x256xbf16> to vector<8x241xbf16>
    %cst_158 = arith.constant 0.000000e+00 : bf16
    %313 = vector.broadcast %cst_158 : bf16 to vector<8x15xbf16>
    %314 = tpu.concatenate %312, %313 in 1 : vector<8x241xbf16>, vector<8x15xbf16> -> vector<8x256xbf16>
    %c1_i32_159 = arith.constant 1 : i32
    %315 = vector.broadcast %c1_i32_159 : i32 to vector<1x256xi32>
    %316 = arith.cmpi sge, %16, %315 : vector<1x256xi32>
    %cst_160 = arith.constant 0.000000e+00 : bf16
    %317 = vector.broadcast %cst_160 : bf16 to vector<8x256xbf16>
    %318 = vector.shape_cast %316 : vector<1x256xi1> to vector<1x256xi1>
    %319 = vector.broadcast %318 : vector<1x256xi1> to vector<8x256xi1>
    %320 = arith.select %319, %314, %317 : vector<8x256xi1>, vector<8x256xbf16>
    %cst_161 = arith.constant dense<0.000000e+00> : vector<8x256xf32>
    %321 = tpu.matmul %311, %320, %cst_161 {dimension_numbers = #tpu.dot_dimension_numbers<[1], [0], [0], [1], [0, 0, 1, 1], [], []>} : vector<8x8xbf16>, vector<8x256xbf16>, vector<8x256xf32> -> vector<8x256xf32>
    %322 = arith.addf %309, %321 : vector<8x256xf32>
    %c17 = arith.constant 17 : index
    %c0_162 = arith.constant 0 : index
    %c0_163 = arith.constant 0 : index
    %323 = vector.load %arg4[%c17, %c0_162, %c0_163] : memref<25x8x8xbf16, #tpu.memory_space<vmem>>, vector<1x8x8xbf16>
    %324 = vector.shape_cast %323 : vector<1x8x8xbf16> to vector<8x8xbf16>
    %325 = vector.extract_strided_slice %123 {offsets = [0, 16], sizes = [8, 240], strides = [1, 1]} : vector<8x256xbf16> to vector<8x240xbf16>
    %cst_164 = arith.constant 0.000000e+00 : bf16
    %326 = vector.broadcast %cst_164 : bf16 to vector<8x16xbf16>
    %327 = tpu.concatenate %325, %326 in 1 : vector<8x240xbf16>, vector<8x16xbf16> -> vector<8x256xbf16>
    %cst_165 = arith.constant dense<0.000000e+00> : vector<8x256xf32>
    %328 = tpu.matmul %324, %327, %cst_165 {dimension_numbers = #tpu.dot_dimension_numbers<[1], [0], [0], [1], [0, 0, 1, 1], [], []>} : vector<8x8xbf16>, vector<8x256xbf16>, vector<8x256xf32> -> vector<8x256xf32>
    %329 = arith.addf %322, %328 : vector<8x256xf32>
    %c18 = arith.constant 18 : index
    %c0_166 = arith.constant 0 : index
    %c0_167 = arith.constant 0 : index
    %330 = vector.load %arg4[%c18, %c0_166, %c0_167] : memref<25x8x8xbf16, #tpu.memory_space<vmem>>, vector<1x8x8xbf16>
    %331 = vector.shape_cast %330 : vector<1x8x8xbf16> to vector<8x8xbf16>
    %332 = vector.extract_strided_slice %123 {offsets = [0, 17], sizes = [8, 239], strides = [1, 1]} : vector<8x256xbf16> to vector<8x239xbf16>
    %cst_168 = arith.constant 0.000000e+00 : bf16
    %333 = vector.broadcast %cst_168 : bf16 to vector<8x17xbf16>
    %334 = tpu.concatenate %332, %333 in 1 : vector<8x239xbf16>, vector<8x17xbf16> -> vector<8x256xbf16>
    %c15_i32_169 = arith.constant 15 : i32
    %335 = vector.broadcast %c15_i32_169 : i32 to vector<1x256xi32>
    %336 = arith.cmpi slt, %16, %335 : vector<1x256xi32>
    %cst_170 = arith.constant 0.000000e+00 : bf16
    %337 = vector.broadcast %cst_170 : bf16 to vector<8x256xbf16>
    %338 = vector.shape_cast %336 : vector<1x256xi1> to vector<1x256xi1>
    %339 = vector.broadcast %338 : vector<1x256xi1> to vector<8x256xi1>
    %340 = arith.select %339, %334, %337 : vector<8x256xi1>, vector<8x256xbf16>
    %cst_171 = arith.constant dense<0.000000e+00> : vector<8x256xf32>
    %341 = tpu.matmul %331, %340, %cst_171 {dimension_numbers = #tpu.dot_dimension_numbers<[1], [0], [0], [1], [0, 0, 1, 1], [], []>} : vector<8x8xbf16>, vector<8x256xbf16>, vector<8x256xf32> -> vector<8x256xf32>
    %342 = arith.addf %329, %341 : vector<8x256xf32>
    %c19 = arith.constant 19 : index
    %c0_172 = arith.constant 0 : index
    %c0_173 = arith.constant 0 : index
    %343 = vector.load %arg4[%c19, %c0_172, %c0_173] : memref<25x8x8xbf16, #tpu.memory_space<vmem>>, vector<1x8x8xbf16>
    %344 = vector.shape_cast %343 : vector<1x8x8xbf16> to vector<8x8xbf16>
    %345 = vector.extract_strided_slice %123 {offsets = [0, 18], sizes = [8, 238], strides = [1, 1]} : vector<8x256xbf16> to vector<8x238xbf16>
    %cst_174 = arith.constant 0.000000e+00 : bf16
    %346 = vector.broadcast %cst_174 : bf16 to vector<8x18xbf16>
    %347 = tpu.concatenate %345, %346 in 1 : vector<8x238xbf16>, vector<8x18xbf16> -> vector<8x256xbf16>
    %c14_i32_175 = arith.constant 14 : i32
    %348 = vector.broadcast %c14_i32_175 : i32 to vector<1x256xi32>
    %349 = arith.cmpi slt, %16, %348 : vector<1x256xi32>
    %cst_176 = arith.constant 0.000000e+00 : bf16
    %350 = vector.broadcast %cst_176 : bf16 to vector<8x256xbf16>
    %351 = vector.shape_cast %349 : vector<1x256xi1> to vector<1x256xi1>
    %352 = vector.broadcast %351 : vector<1x256xi1> to vector<8x256xi1>
    %353 = arith.select %352, %347, %350 : vector<8x256xi1>, vector<8x256xbf16>
    %cst_177 = arith.constant dense<0.000000e+00> : vector<8x256xf32>
    %354 = tpu.matmul %344, %353, %cst_177 {dimension_numbers = #tpu.dot_dimension_numbers<[1], [0], [0], [1], [0, 0, 1, 1], [], []>} : vector<8x8xbf16>, vector<8x256xbf16>, vector<8x256xf32> -> vector<8x256xf32>
    %355 = arith.addf %342, %354 : vector<8x256xf32>
    %c20 = arith.constant 20 : index
    %c0_178 = arith.constant 0 : index
    %c0_179 = arith.constant 0 : index
    %356 = vector.load %arg4[%c20, %c0_178, %c0_179] : memref<25x8x8xbf16, #tpu.memory_space<vmem>>, vector<1x8x8xbf16>
    %357 = vector.shape_cast %356 : vector<1x8x8xbf16> to vector<8x8xbf16>
    %358 = vector.extract_strided_slice %123 {offsets = [0, 30], sizes = [8, 226], strides = [1, 1]} : vector<8x256xbf16> to vector<8x226xbf16>
    %cst_180 = arith.constant 0.000000e+00 : bf16
    %359 = vector.broadcast %cst_180 : bf16 to vector<8x30xbf16>
    %360 = tpu.concatenate %358, %359 in 1 : vector<8x226xbf16>, vector<8x30xbf16> -> vector<8x256xbf16>
    %c2_i32_181 = arith.constant 2 : i32
    %361 = vector.broadcast %c2_i32_181 : i32 to vector<1x256xi32>
    %362 = arith.cmpi sge, %16, %361 : vector<1x256xi32>
    %cst_182 = arith.constant 0.000000e+00 : bf16
    %363 = vector.broadcast %cst_182 : bf16 to vector<8x256xbf16>
    %364 = vector.shape_cast %362 : vector<1x256xi1> to vector<1x256xi1>
    %365 = vector.broadcast %364 : vector<1x256xi1> to vector<8x256xi1>
    %366 = arith.select %365, %360, %363 : vector<8x256xi1>, vector<8x256xbf16>
    %cst_183 = arith.constant dense<0.000000e+00> : vector<8x256xf32>
    %367 = tpu.matmul %357, %366, %cst_183 {dimension_numbers = #tpu.dot_dimension_numbers<[1], [0], [0], [1], [0, 0, 1, 1], [], []>} : vector<8x8xbf16>, vector<8x256xbf16>, vector<8x256xf32> -> vector<8x256xf32>
    %368 = arith.addf %355, %367 : vector<8x256xf32>
    %c21 = arith.constant 21 : index
    %c0_184 = arith.constant 0 : index
    %c0_185 = arith.constant 0 : index
    %369 = vector.load %arg4[%c21, %c0_184, %c0_185] : memref<25x8x8xbf16, #tpu.memory_space<vmem>>, vector<1x8x8xbf16>
    %370 = vector.shape_cast %369 : vector<1x8x8xbf16> to vector<8x8xbf16>
    %371 = vector.extract_strided_slice %123 {offsets = [0, 31], sizes = [8, 225], strides = [1, 1]} : vector<8x256xbf16> to vector<8x225xbf16>
    %cst_186 = arith.constant 0.000000e+00 : bf16
    %372 = vector.broadcast %cst_186 : bf16 to vector<8x31xbf16>
    %373 = tpu.concatenate %371, %372 in 1 : vector<8x225xbf16>, vector<8x31xbf16> -> vector<8x256xbf16>
    %c1_i32_187 = arith.constant 1 : i32
    %374 = vector.broadcast %c1_i32_187 : i32 to vector<1x256xi32>
    %375 = arith.cmpi sge, %16, %374 : vector<1x256xi32>
    %cst_188 = arith.constant 0.000000e+00 : bf16
    %376 = vector.broadcast %cst_188 : bf16 to vector<8x256xbf16>
    %377 = vector.shape_cast %375 : vector<1x256xi1> to vector<1x256xi1>
    %378 = vector.broadcast %377 : vector<1x256xi1> to vector<8x256xi1>
    %379 = arith.select %378, %373, %376 : vector<8x256xi1>, vector<8x256xbf16>
    %cst_189 = arith.constant dense<0.000000e+00> : vector<8x256xf32>
    %380 = tpu.matmul %370, %379, %cst_189 {dimension_numbers = #tpu.dot_dimension_numbers<[1], [0], [0], [1], [0, 0, 1, 1], [], []>} : vector<8x8xbf16>, vector<8x256xbf16>, vector<8x256xf32> -> vector<8x256xf32>
    %381 = arith.addf %368, %380 : vector<8x256xf32>
    %c22 = arith.constant 22 : index
    %c0_190 = arith.constant 0 : index
    %c0_191 = arith.constant 0 : index
    %382 = vector.load %arg4[%c22, %c0_190, %c0_191] : memref<25x8x8xbf16, #tpu.memory_space<vmem>>, vector<1x8x8xbf16>
    %383 = vector.shape_cast %382 : vector<1x8x8xbf16> to vector<8x8xbf16>
    %384 = vector.extract_strided_slice %123 {offsets = [0, 32], sizes = [8, 224], strides = [1, 1]} : vector<8x256xbf16> to vector<8x224xbf16>
    %cst_192 = arith.constant 0.000000e+00 : bf16
    %385 = vector.broadcast %cst_192 : bf16 to vector<8x32xbf16>
    %386 = tpu.concatenate %384, %385 in 1 : vector<8x224xbf16>, vector<8x32xbf16> -> vector<8x256xbf16>
    %cst_193 = arith.constant dense<0.000000e+00> : vector<8x256xf32>
    %387 = tpu.matmul %383, %386, %cst_193 {dimension_numbers = #tpu.dot_dimension_numbers<[1], [0], [0], [1], [0, 0, 1, 1], [], []>} : vector<8x8xbf16>, vector<8x256xbf16>, vector<8x256xf32> -> vector<8x256xf32>
    %388 = arith.addf %381, %387 : vector<8x256xf32>
    %c23 = arith.constant 23 : index
    %c0_194 = arith.constant 0 : index
    %c0_195 = arith.constant 0 : index
    %389 = vector.load %arg4[%c23, %c0_194, %c0_195] : memref<25x8x8xbf16, #tpu.memory_space<vmem>>, vector<1x8x8xbf16>
    %390 = vector.shape_cast %389 : vector<1x8x8xbf16> to vector<8x8xbf16>
    %391 = vector.extract_strided_slice %123 {offsets = [0, 33], sizes = [8, 223], strides = [1, 1]} : vector<8x256xbf16> to vector<8x223xbf16>
    %cst_196 = arith.constant 0.000000e+00 : bf16
    %392 = vector.broadcast %cst_196 : bf16 to vector<8x33xbf16>
    %393 = tpu.concatenate %391, %392 in 1 : vector<8x223xbf16>, vector<8x33xbf16> -> vector<8x256xbf16>
    %c15_i32_197 = arith.constant 15 : i32
    %394 = vector.broadcast %c15_i32_197 : i32 to vector<1x256xi32>
    %395 = arith.cmpi slt, %16, %394 : vector<1x256xi32>
    %cst_198 = arith.constant 0.000000e+00 : bf16
    %396 = vector.broadcast %cst_198 : bf16 to vector<8x256xbf16>
    %397 = vector.shape_cast %395 : vector<1x256xi1> to vector<1x256xi1>
    %398 = vector.broadcast %397 : vector<1x256xi1> to vector<8x256xi1>
    %399 = arith.select %398, %393, %396 : vector<8x256xi1>, vector<8x256xbf16>
    %cst_199 = arith.constant dense<0.000000e+00> : vector<8x256xf32>
    %400 = tpu.matmul %390, %399, %cst_199 {dimension_numbers = #tpu.dot_dimension_numbers<[1], [0], [0], [1], [0, 0, 1, 1], [], []>} : vector<8x8xbf16>, vector<8x256xbf16>, vector<8x256xf32> -> vector<8x256xf32>
    %401 = arith.addf %388, %400 : vector<8x256xf32>
    %c24 = arith.constant 24 : index
    %c0_200 = arith.constant 0 : index
    %c0_201 = arith.constant 0 : index
    %402 = vector.load %arg4[%c24, %c0_200, %c0_201] : memref<25x8x8xbf16, #tpu.memory_space<vmem>>, vector<1x8x8xbf16>
    %403 = vector.shape_cast %402 : vector<1x8x8xbf16> to vector<8x8xbf16>
    %404 = vector.extract_strided_slice %123 {offsets = [0, 34], sizes = [8, 222], strides = [1, 1]} : vector<8x256xbf16> to vector<8x222xbf16>
    %cst_202 = arith.constant 0.000000e+00 : bf16
    %405 = vector.broadcast %cst_202 : bf16 to vector<8x34xbf16>
    %406 = tpu.concatenate %404, %405 in 1 : vector<8x222xbf16>, vector<8x34xbf16> -> vector<8x256xbf16>
    %c14_i32_203 = arith.constant 14 : i32
    %407 = vector.broadcast %c14_i32_203 : i32 to vector<1x256xi32>
    %408 = arith.cmpi slt, %16, %407 : vector<1x256xi32>
    %cst_204 = arith.constant 0.000000e+00 : bf16
    %409 = vector.broadcast %cst_204 : bf16 to vector<8x256xbf16>
    %410 = vector.shape_cast %408 : vector<1x256xi1> to vector<1x256xi1>
    %411 = vector.broadcast %410 : vector<1x256xi1> to vector<8x256xi1>
    %412 = arith.select %411, %406, %409 : vector<8x256xi1>, vector<8x256xbf16>
    %cst_205 = arith.constant dense<0.000000e+00> : vector<8x256xf32>
    %413 = tpu.matmul %403, %412, %cst_205 {dimension_numbers = #tpu.dot_dimension_numbers<[1], [0], [0], [1], [0, 0, 1, 1], [], []>} : vector<8x8xbf16>, vector<8x256xbf16>, vector<8x256xf32> -> vector<8x256xf32>
    %414 = arith.addf %401, %413 : vector<8x256xf32>
    %415 = arith.addf %414, %18 : vector<8x256xf32>
    %cst_206 = arith.constant 0.000000e+00 : f32
    %416 = vector.broadcast %cst_206 : f32 to vector<8x256xf32>
    %417 = arith.maximumf %415, %416 : vector<8x256xf32>
    %418 = vector.broadcast %19 : vector<8x1xf32> to vector<8x256xf32>
    %419 = arith.mulf %417, %418 : vector<8x256xf32>
    %420 = vector.broadcast %20 : vector<8x1xf32> to vector<8x256xf32>
    %421 = arith.addf %419, %420 : vector<8x256xf32>
    %cst_207 = arith.constant 0.000000e+00 : f32
    %422 = vector.broadcast %cst_207 : f32 to vector<8x256xf32>
    %423 = arith.maximumf %421, %422 : vector<8x256xf32>
    %c0_208 = arith.constant 0 : index
    %c0_209 = arith.constant 0 : index
    %c0_210 = arith.constant 0 : index
    %424 = vector.load %arg8[%c0_208, %c0_209, %c0_210] : memref<2x8x256xf32, #tpu.memory_space<vmem>>, vector<1x8x256xf32>
    %425 = vector.shape_cast %424 : vector<1x8x256xf32> to vector<8x256xf32>
    %426 = vector.shape_cast %423 : vector<8x256xf32> to vector<1x8x256xf32>
    tpu.vector_store %arg8[%c0_208, %c0_209, %c0_210], %426 {strides = array<i32>} : memref<2x8x256xf32, #tpu.memory_space<vmem>>, vector<1x8x256xf32>,
    %c1_211 = arith.constant 1 : index
    %c0_212 = arith.constant 0 : index
    %c0_213 = arith.constant 0 : index
    %427 = vector.load %arg1[%c1_211, %c0_212, %c0_213] : memref<2x4x256xf32, #tpu.memory_space<vmem>>, vector<1x4x256xf32>
    %428 = vector.shape_cast %427 : vector<1x4x256xf32> to vector<4x256xf32>
    %429 = arith.truncf %428 : vector<4x256xf32> to vector<4x256xbf16>
    %c0_214 = arith.constant 0 : index
    %c0_215 = arith.constant 0 : index
    %c0_216 = arith.constant 0 : index
    %430 = vector.load %arg2[%c0_214, %c0_215, %c0_216] : memref<9x8x4xbf16, #tpu.memory_space<vmem>>, vector<1x8x4xbf16>
    %431 = vector.shape_cast %430 : vector<1x8x4xbf16> to vector<8x4xbf16>
    %cst_217 = arith.constant 0.000000e+00 : bf16
    %432 = vector.broadcast %cst_217 : bf16 to vector<4x17xbf16>
    %433 = vector.extract_strided_slice %429 {offsets = [0, 0], sizes = [4, 239], strides = [1, 1]} : vector<4x256xbf16> to vector<4x239xbf16>
    %434 = tpu.concatenate %432, %433 in 1 : vector<4x17xbf16>, vector<4x239xbf16> -> vector<4x256xbf16>
    %c1_i32_218 = arith.constant 1 : i32
    %435 = vector.broadcast %c1_i32_218 : i32 to vector<1x256xi32>
    %436 = arith.cmpi sge, %16, %435 : vector<1x256xi32>
    %cst_219 = arith.constant 0.000000e+00 : bf16
    %437 = vector.broadcast %cst_219 : bf16 to vector<4x256xbf16>
    %438 = vector.shape_cast %436 : vector<1x256xi1> to vector<1x256xi1>
    %439 = vector.broadcast %438 : vector<1x256xi1> to vector<4x256xi1>
    %440 = arith.select %439, %434, %437 : vector<4x256xi1>, vector<4x256xbf16>
    %cst_220 = arith.constant dense<0.000000e+00> : vector<8x256xf32>
    %441 = tpu.matmul %431, %440, %cst_220 {dimension_numbers = #tpu.dot_dimension_numbers<[1], [0], [0], [1], [0, 0, 1, 1], [], []>} : vector<8x4xbf16>, vector<4x256xbf16>, vector<8x256xf32> -> vector<8x256xf32>
    %c1_221 = arith.constant 1 : index
    %c0_222 = arith.constant 0 : index
    %c0_223 = arith.constant 0 : index
    %442 = vector.load %arg2[%c1_221, %c0_222, %c0_223] : memref<9x8x4xbf16, #tpu.memory_space<vmem>>, vector<1x8x4xbf16>
    %443 = vector.shape_cast %442 : vector<1x8x4xbf16> to vector<8x4xbf16>
    %cst_224 = arith.constant 0.000000e+00 : bf16
    %444 = vector.broadcast %cst_224 : bf16 to vector<4x16xbf16>
    %445 = vector.extract_strided_slice %429 {offsets = [0, 0], sizes = [4, 240], strides = [1, 1]} : vector<4x256xbf16> to vector<4x240xbf16>
    %446 = tpu.concatenate %444, %445 in 1 : vector<4x16xbf16>, vector<4x240xbf16> -> vector<4x256xbf16>
    %cst_225 = arith.constant dense<0.000000e+00> : vector<8x256xf32>
    %447 = tpu.matmul %443, %446, %cst_225 {dimension_numbers = #tpu.dot_dimension_numbers<[1], [0], [0], [1], [0, 0, 1, 1], [], []>} : vector<8x4xbf16>, vector<4x256xbf16>, vector<8x256xf32> -> vector<8x256xf32>
    %448 = arith.addf %441, %447 : vector<8x256xf32>
    %c2_226 = arith.constant 2 : index
    %c0_227 = arith.constant 0 : index
    %c0_228 = arith.constant 0 : index
    %449 = vector.load %arg2[%c2_226, %c0_227, %c0_228] : memref<9x8x4xbf16, #tpu.memory_space<vmem>>, vector<1x8x4xbf16>
    %450 = vector.shape_cast %449 : vector<1x8x4xbf16> to vector<8x4xbf16>
    %cst_229 = arith.constant 0.000000e+00 : bf16
    %451 = vector.broadcast %cst_229 : bf16 to vector<4x15xbf16>
    %452 = vector.extract_strided_slice %429 {offsets = [0, 0], sizes = [4, 241], strides = [1, 1]} : vector<4x256xbf16> to vector<4x241xbf16>
    %453 = tpu.concatenate %451, %452 in 1 : vector<4x15xbf16>, vector<4x241xbf16> -> vector<4x256xbf16>
    %c15_i32_230 = arith.constant 15 : i32
    %454 = vector.broadcast %c15_i32_230 : i32 to vector<1x256xi32>
    %455 = arith.cmpi slt, %16, %454 : vector<1x256xi32>
    %cst_231 = arith.constant 0.000000e+00 : bf16
    %456 = vector.broadcast %cst_231 : bf16 to vector<4x256xbf16>
    %457 = vector.shape_cast %455 : vector<1x256xi1> to vector<1x256xi1>
    %458 = vector.broadcast %457 : vector<1x256xi1> to vector<4x256xi1>
    %459 = arith.select %458, %453, %456 : vector<4x256xi1>, vector<4x256xbf16>
    %cst_232 = arith.constant dense<0.000000e+00> : vector<8x256xf32>
    %460 = tpu.matmul %450, %459, %cst_232 {dimension_numbers = #tpu.dot_dimension_numbers<[1], [0], [0], [1], [0, 0, 1, 1], [], []>} : vector<8x4xbf16>, vector<4x256xbf16>, vector<8x256xf32> -> vector<8x256xf32>
    %461 = arith.addf %448, %460 : vector<8x256xf32>
    %c3_233 = arith.constant 3 : index
    %c0_234 = arith.constant 0 : index
    %c0_235 = arith.constant 0 : index
    %462 = vector.load %arg2[%c3_233, %c0_234, %c0_235] : memref<9x8x4xbf16, #tpu.memory_space<vmem>>, vector<1x8x4xbf16>
    %463 = vector.shape_cast %462 : vector<1x8x4xbf16> to vector<8x4xbf16>
    %cst_236 = arith.constant 0.000000e+00 : bf16
    %464 = vector.broadcast %cst_236 : bf16 to vector<4x1xbf16>
    %465 = vector.extract_strided_slice %429 {offsets = [0, 0], sizes = [4, 255], strides = [1, 1]} : vector<4x256xbf16> to vector<4x255xbf16>
    %466 = tpu.concatenate %464, %465 in 1 : vector<4x1xbf16>, vector<4x255xbf16> -> vector<4x256xbf16>
    %c1_i32_237 = arith.constant 1 : i32
    %467 = vector.broadcast %c1_i32_237 : i32 to vector<1x256xi32>
    %468 = arith.cmpi sge, %16, %467 : vector<1x256xi32>
    %cst_238 = arith.constant 0.000000e+00 : bf16
    %469 = vector.broadcast %cst_238 : bf16 to vector<4x256xbf16>
    %470 = vector.shape_cast %468 : vector<1x256xi1> to vector<1x256xi1>
    %471 = vector.broadcast %470 : vector<1x256xi1> to vector<4x256xi1>
    %472 = arith.select %471, %466, %469 : vector<4x256xi1>, vector<4x256xbf16>
    %cst_239 = arith.constant dense<0.000000e+00> : vector<8x256xf32>
    %473 = tpu.matmul %463, %472, %cst_239 {dimension_numbers = #tpu.dot_dimension_numbers<[1], [0], [0], [1], [0, 0, 1, 1], [], []>} : vector<8x4xbf16>, vector<4x256xbf16>, vector<8x256xf32> -> vector<8x256xf32>
    %474 = arith.addf %461, %473 : vector<8x256xf32>
    %c4_240 = arith.constant 4 : index
    %c0_241 = arith.constant 0 : index
    %c0_242 = arith.constant 0 : index
    %475 = vector.load %arg2[%c4_240, %c0_241, %c0_242] : memref<9x8x4xbf16, #tpu.memory_space<vmem>>, vector<1x8x4xbf16>
    %476 = vector.shape_cast %475 : vector<1x8x4xbf16> to vector<8x4xbf16>
    %cst_243 = arith.constant dense<0.000000e+00> : vector<8x256xf32>
    %477 = tpu.matmul %476, %429, %cst_243 {dimension_numbers = #tpu.dot_dimension_numbers<[1], [0], [0], [1], [0, 0, 1, 1], [], []>} : vector<8x4xbf16>, vector<4x256xbf16>, vector<8x256xf32> -> vector<8x256xf32>
    %478 = arith.addf %474, %477 : vector<8x256xf32>
    %c5_244 = arith.constant 5 : index
    %c0_245 = arith.constant 0 : index
    %c0_246 = arith.constant 0 : index
    %479 = vector.load %arg2[%c5_244, %c0_245, %c0_246] : memref<9x8x4xbf16, #tpu.memory_space<vmem>>, vector<1x8x4xbf16>
    %480 = vector.shape_cast %479 : vector<1x8x4xbf16> to vector<8x4xbf16>
    %481 = vector.extract_strided_slice %429 {offsets = [0, 1], sizes = [4, 255], strides = [1, 1]} : vector<4x256xbf16> to vector<4x255xbf16>
    %cst_247 = arith.constant 0.000000e+00 : bf16
    %482 = vector.broadcast %cst_247 : bf16 to vector<4x1xbf16>
    %483 = tpu.concatenate %481, %482 in 1 : vector<4x255xbf16>, vector<4x1xbf16> -> vector<4x256xbf16>
    %c15_i32_248 = arith.constant 15 : i32
    %484 = vector.broadcast %c15_i32_248 : i32 to vector<1x256xi32>
    %485 = arith.cmpi slt, %16, %484 : vector<1x256xi32>
    %cst_249 = arith.constant 0.000000e+00 : bf16
    %486 = vector.broadcast %cst_249 : bf16 to vector<4x256xbf16>
    %487 = vector.shape_cast %485 : vector<1x256xi1> to vector<1x256xi1>
    %488 = vector.broadcast %487 : vector<1x256xi1> to vector<4x256xi1>
    %489 = arith.select %488, %483, %486 : vector<4x256xi1>, vector<4x256xbf16>
    %cst_250 = arith.constant dense<0.000000e+00> : vector<8x256xf32>
    %490 = tpu.matmul %480, %489, %cst_250 {dimension_numbers = #tpu.dot_dimension_numbers<[1], [0], [0], [1], [0, 0, 1, 1], [], []>} : vector<8x4xbf16>, vector<4x256xbf16>, vector<8x256xf32> -> vector<8x256xf32>
    %491 = arith.addf %478, %490 : vector<8x256xf32>
    %c6_251 = arith.constant 6 : index
    %c0_252 = arith.constant 0 : index
    %c0_253 = arith.constant 0 : index
    %492 = vector.load %arg2[%c6_251, %c0_252, %c0_253] : memref<9x8x4xbf16, #tpu.memory_space<vmem>>, vector<1x8x4xbf16>
    %493 = vector.shape_cast %492 : vector<1x8x4xbf16> to vector<8x4xbf16>
    %494 = vector.extract_strided_slice %429 {offsets = [0, 15], sizes = [4, 241], strides = [1, 1]} : vector<4x256xbf16> to vector<4x241xbf16>
    %cst_254 = arith.constant 0.000000e+00 : bf16
    %495 = vector.broadcast %cst_254 : bf16 to vector<4x15xbf16>
    %496 = tpu.concatenate %494, %495 in 1 : vector<4x241xbf16>, vector<4x15xbf16> -> vector<4x256xbf16>
    %c1_i32_255 = arith.constant 1 : i32
    %497 = vector.broadcast %c1_i32_255 : i32 to vector<1x256xi32>
    %498 = arith.cmpi sge, %16, %497 : vector<1x256xi32>
    %cst_256 = arith.constant 0.000000e+00 : bf16
    %499 = vector.broadcast %cst_256 : bf16 to vector<4x256xbf16>
    %500 = vector.shape_cast %498 : vector<1x256xi1> to vector<1x256xi1>
    %501 = vector.broadcast %500 : vector<1x256xi1> to vector<4x256xi1>
    %502 = arith.select %501, %496, %499 : vector<4x256xi1>, vector<4x256xbf16>
    %cst_257 = arith.constant dense<0.000000e+00> : vector<8x256xf32>
    %503 = tpu.matmul %493, %502, %cst_257 {dimension_numbers = #tpu.dot_dimension_numbers<[1], [0], [0], [1], [0, 0, 1, 1], [], []>} : vector<8x4xbf16>, vector<4x256xbf16>, vector<8x256xf32> -> vector<8x256xf32>
    %504 = arith.addf %491, %503 : vector<8x256xf32>
    %c7_258 = arith.constant 7 : index
    %c0_259 = arith.constant 0 : index
    %c0_260 = arith.constant 0 : index
    %505 = vector.load %arg2[%c7_258, %c0_259, %c0_260] : memref<9x8x4xbf16, #tpu.memory_space<vmem>>, vector<1x8x4xbf16>
    %506 = vector.shape_cast %505 : vector<1x8x4xbf16> to vector<8x4xbf16>
    %507 = vector.extract_strided_slice %429 {offsets = [0, 16], sizes = [4, 240], strides = [1, 1]} : vector<4x256xbf16> to vector<4x240xbf16>
    %cst_261 = arith.constant 0.000000e+00 : bf16
    %508 = vector.broadcast %cst_261 : bf16 to vector<4x16xbf16>
    %509 = tpu.concatenate %507, %508 in 1 : vector<4x240xbf16>, vector<4x16xbf16> -> vector<4x256xbf16>
    %cst_262 = arith.constant dense<0.000000e+00> : vector<8x256xf32>
    %510 = tpu.matmul %506, %509, %cst_262 {dimension_numbers = #tpu.dot_dimension_numbers<[1], [0], [0], [1], [0, 0, 1, 1], [], []>} : vector<8x4xbf16>, vector<4x256xbf16>, vector<8x256xf32> -> vector<8x256xf32>
    %511 = arith.addf %504, %510 : vector<8x256xf32>
    %c8_263 = arith.constant 8 : index
    %c0_264 = arith.constant 0 : index
    %c0_265 = arith.constant 0 : index
    %512 = vector.load %arg2[%c8_263, %c0_264, %c0_265] : memref<9x8x4xbf16, #tpu.memory_space<vmem>>, vector<1x8x4xbf16>
    %513 = vector.shape_cast %512 : vector<1x8x4xbf16> to vector<8x4xbf16>
    %514 = vector.extract_strided_slice %429 {offsets = [0, 17], sizes = [4, 239], strides = [1, 1]} : vector<4x256xbf16> to vector<4x239xbf16>
    %cst_266 = arith.constant 0.000000e+00 : bf16
    %515 = vector.broadcast %cst_266 : bf16 to vector<4x17xbf16>
    %516 = tpu.concatenate %514, %515 in 1 : vector<4x239xbf16>, vector<4x17xbf16> -> vector<4x256xbf16>
    %c15_i32_267 = arith.constant 15 : i32
    %517 = vector.broadcast %c15_i32_267 : i32 to vector<1x256xi32>
    %518 = arith.cmpi slt, %16, %517 : vector<1x256xi32>
    %cst_268 = arith.constant 0.000000e+00 : bf16
    %519 = vector.broadcast %cst_268 : bf16 to vector<4x256xbf16>
    %520 = vector.shape_cast %518 : vector<1x256xi1> to vector<1x256xi1>
    %521 = vector.broadcast %520 : vector<1x256xi1> to vector<4x256xi1>
    %522 = arith.select %521, %516, %519 : vector<4x256xi1>, vector<4x256xbf16>
    %cst_269 = arith.constant dense<0.000000e+00> : vector<8x256xf32>
    %523 = tpu.matmul %513, %522, %cst_269 {dimension_numbers = #tpu.dot_dimension_numbers<[1], [0], [0], [1], [0, 0, 1, 1], [], []>} : vector<8x4xbf16>, vector<4x256xbf16>, vector<8x256xf32> -> vector<8x256xf32>
    %524 = arith.addf %511, %523 : vector<8x256xf32>
    %525 = vector.broadcast %17 : vector<8x1xf32> to vector<8x256xf32>
    %526 = arith.addf %524, %525 : vector<8x256xf32>
    %cst_270 = arith.constant 0.000000e+00 : f32
    %527 = vector.broadcast %cst_270 : f32 to vector<8x256xf32>
    %528 = arith.maximumf %526, %527 : vector<8x256xf32>
    %529 = arith.truncf %528 : vector<8x256xf32> to vector<8x256xbf16>
    %c0_271 = arith.constant 0 : index
    %c0_272 = arith.constant 0 : index
    %c0_273 = arith.constant 0 : index
    %530 = vector.load %arg4[%c0_271, %c0_272, %c0_273] : memref<25x8x8xbf16, #tpu.memory_space<vmem>>, vector<1x8x8xbf16>
    %531 = vector.shape_cast %530 : vector<1x8x8xbf16> to vector<8x8xbf16>
    %cst_274 = arith.constant 0.000000e+00 : bf16
    %532 = vector.broadcast %cst_274 : bf16 to vector<8x34xbf16>
    %533 = vector.extract_strided_slice %529 {offsets = [0, 0], sizes = [8, 222], strides = [1, 1]} : vector<8x256xbf16> to vector<8x222xbf16>
    %534 = tpu.concatenate %532, %533 in 1 : vector<8x34xbf16>, vector<8x222xbf16> -> vector<8x256xbf16>
    %c2_i32_275 = arith.constant 2 : i32
    %535 = vector.broadcast %c2_i32_275 : i32 to vector<1x256xi32>
    %536 = arith.cmpi sge, %16, %535 : vector<1x256xi32>
    %cst_276 = arith.constant 0.000000e+00 : bf16
    %537 = vector.broadcast %cst_276 : bf16 to vector<8x256xbf16>
    %538 = vector.shape_cast %536 : vector<1x256xi1> to vector<1x256xi1>
    %539 = vector.broadcast %538 : vector<1x256xi1> to vector<8x256xi1>
    %540 = arith.select %539, %534, %537 : vector<8x256xi1>, vector<8x256xbf16>
    %cst_277 = arith.constant dense<0.000000e+00> : vector<8x256xf32>
    %541 = tpu.matmul %531, %540, %cst_277 {dimension_numbers = #tpu.dot_dimension_numbers<[1], [0], [0], [1], [0, 0, 1, 1], [], []>} : vector<8x8xbf16>, vector<8x256xbf16>, vector<8x256xf32> -> vector<8x256xf32>
    %c1_278 = arith.constant 1 : index
    %c0_279 = arith.constant 0 : index
    %c0_280 = arith.constant 0 : index
    %542 = vector.load %arg4[%c1_278, %c0_279, %c0_280] : memref<25x8x8xbf16, #tpu.memory_space<vmem>>, vector<1x8x8xbf16>
    %543 = vector.shape_cast %542 : vector<1x8x8xbf16> to vector<8x8xbf16>
    %cst_281 = arith.constant 0.000000e+00 : bf16
    %544 = vector.broadcast %cst_281 : bf16 to vector<8x33xbf16>
    %545 = vector.extract_strided_slice %529 {offsets = [0, 0], sizes = [8, 223], strides = [1, 1]} : vector<8x256xbf16> to vector<8x223xbf16>
    %546 = tpu.concatenate %544, %545 in 1 : vector<8x33xbf16>, vector<8x223xbf16> -> vector<8x256xbf16>
    %c1_i32_282 = arith.constant 1 : i32
    %547 = vector.broadcast %c1_i32_282 : i32 to vector<1x256xi32>
    %548 = arith.cmpi sge, %16, %547 : vector<1x256xi32>
    %cst_283 = arith.constant 0.000000e+00 : bf16
    %549 = vector.broadcast %cst_283 : bf16 to vector<8x256xbf16>
    %550 = vector.shape_cast %548 : vector<1x256xi1> to vector<1x256xi1>
    %551 = vector.broadcast %550 : vector<1x256xi1> to vector<8x256xi1>
    %552 = arith.select %551, %546, %549 : vector<8x256xi1>, vector<8x256xbf16>
    %cst_284 = arith.constant dense<0.000000e+00> : vector<8x256xf32>
    %553 = tpu.matmul %543, %552, %cst_284 {dimension_numbers = #tpu.dot_dimension_numbers<[1], [0], [0], [1], [0, 0, 1, 1], [], []>} : vector<8x8xbf16>, vector<8x256xbf16>, vector<8x256xf32> -> vector<8x256xf32>
    %554 = arith.addf %541, %553 : vector<8x256xf32>
    %c2_285 = arith.constant 2 : index
    %c0_286 = arith.constant 0 : index
    %c0_287 = arith.constant 0 : index
    %555 = vector.load %arg4[%c2_285, %c0_286, %c0_287] : memref<25x8x8xbf16, #tpu.memory_space<vmem>>, vector<1x8x8xbf16>
    %556 = vector.shape_cast %555 : vector<1x8x8xbf16> to vector<8x8xbf16>
    %cst_288 = arith.constant 0.000000e+00 : bf16
    %557 = vector.broadcast %cst_288 : bf16 to vector<8x32xbf16>
    %558 = vector.extract_strided_slice %529 {offsets = [0, 0], sizes = [8, 224], strides = [1, 1]} : vector<8x256xbf16> to vector<8x224xbf16>
    %559 = tpu.concatenate %557, %558 in 1 : vector<8x32xbf16>, vector<8x224xbf16> -> vector<8x256xbf16>
    %cst_289 = arith.constant dense<0.000000e+00> : vector<8x256xf32>
    %560 = tpu.matmul %556, %559, %cst_289 {dimension_numbers = #tpu.dot_dimension_numbers<[1], [0], [0], [1], [0, 0, 1, 1], [], []>} : vector<8x8xbf16>, vector<8x256xbf16>, vector<8x256xf32> -> vector<8x256xf32>
    %561 = arith.addf %554, %560 : vector<8x256xf32>
    %c3_290 = arith.constant 3 : index
    %c0_291 = arith.constant 0 : index
    %c0_292 = arith.constant 0 : index
    %562 = vector.load %arg4[%c3_290, %c0_291, %c0_292] : memref<25x8x8xbf16, #tpu.memory_space<vmem>>, vector<1x8x8xbf16>
    %563 = vector.shape_cast %562 : vector<1x8x8xbf16> to vector<8x8xbf16>
    %cst_293 = arith.constant 0.000000e+00 : bf16
    %564 = vector.broadcast %cst_293 : bf16 to vector<8x31xbf16>
    %565 = vector.extract_strided_slice %529 {offsets = [0, 0], sizes = [8, 225], strides = [1, 1]} : vector<8x256xbf16> to vector<8x225xbf16>
    %566 = tpu.concatenate %564, %565 in 1 : vector<8x31xbf16>, vector<8x225xbf16> -> vector<8x256xbf16>
    %c15_i32_294 = arith.constant 15 : i32
    %567 = vector.broadcast %c15_i32_294 : i32 to vector<1x256xi32>
    %568 = arith.cmpi slt, %16, %567 : vector<1x256xi32>
    %cst_295 = arith.constant 0.000000e+00 : bf16
    %569 = vector.broadcast %cst_295 : bf16 to vector<8x256xbf16>
    %570 = vector.shape_cast %568 : vector<1x256xi1> to vector<1x256xi1>
    %571 = vector.broadcast %570 : vector<1x256xi1> to vector<8x256xi1>
    %572 = arith.select %571, %566, %569 : vector<8x256xi1>, vector<8x256xbf16>
    %cst_296 = arith.constant dense<0.000000e+00> : vector<8x256xf32>
    %573 = tpu.matmul %563, %572, %cst_296 {dimension_numbers = #tpu.dot_dimension_numbers<[1], [0], [0], [1], [0, 0, 1, 1], [], []>} : vector<8x8xbf16>, vector<8x256xbf16>, vector<8x256xf32> -> vector<8x256xf32>
    %574 = arith.addf %561, %573 : vector<8x256xf32>
    %c4_297 = arith.constant 4 : index
    %c0_298 = arith.constant 0 : index
    %c0_299 = arith.constant 0 : index
    %575 = vector.load %arg4[%c4_297, %c0_298, %c0_299] : memref<25x8x8xbf16, #tpu.memory_space<vmem>>, vector<1x8x8xbf16>
    %576 = vector.shape_cast %575 : vector<1x8x8xbf16> to vector<8x8xbf16>
    %cst_300 = arith.constant 0.000000e+00 : bf16
    %577 = vector.broadcast %cst_300 : bf16 to vector<8x30xbf16>
    %578 = vector.extract_strided_slice %529 {offsets = [0, 0], sizes = [8, 226], strides = [1, 1]} : vector<8x256xbf16> to vector<8x226xbf16>
    %579 = tpu.concatenate %577, %578 in 1 : vector<8x30xbf16>, vector<8x226xbf16> -> vector<8x256xbf16>
    %c14_i32_301 = arith.constant 14 : i32
    %580 = vector.broadcast %c14_i32_301 : i32 to vector<1x256xi32>
    %581 = arith.cmpi slt, %16, %580 : vector<1x256xi32>
    %cst_302 = arith.constant 0.000000e+00 : bf16
    %582 = vector.broadcast %cst_302 : bf16 to vector<8x256xbf16>
    %583 = vector.shape_cast %581 : vector<1x256xi1> to vector<1x256xi1>
    %584 = vector.broadcast %583 : vector<1x256xi1> to vector<8x256xi1>
    %585 = arith.select %584, %579, %582 : vector<8x256xi1>, vector<8x256xbf16>
    %cst_303 = arith.constant dense<0.000000e+00> : vector<8x256xf32>
    %586 = tpu.matmul %576, %585, %cst_303 {dimension_numbers = #tpu.dot_dimension_numbers<[1], [0], [0], [1], [0, 0, 1, 1], [], []>} : vector<8x8xbf16>, vector<8x256xbf16>, vector<8x256xf32> -> vector<8x256xf32>
    %587 = arith.addf %574, %586 : vector<8x256xf32>
    %c5_304 = arith.constant 5 : index
    %c0_305 = arith.constant 0 : index
    %c0_306 = arith.constant 0 : index
    %588 = vector.load %arg4[%c5_304, %c0_305, %c0_306] : memref<25x8x8xbf16, #tpu.memory_space<vmem>>, vector<1x8x8xbf16>
    %589 = vector.shape_cast %588 : vector<1x8x8xbf16> to vector<8x8xbf16>
    %cst_307 = arith.constant 0.000000e+00 : bf16
    %590 = vector.broadcast %cst_307 : bf16 to vector<8x18xbf16>
    %591 = vector.extract_strided_slice %529 {offsets = [0, 0], sizes = [8, 238], strides = [1, 1]} : vector<8x256xbf16> to vector<8x238xbf16>
    %592 = tpu.concatenate %590, %591 in 1 : vector<8x18xbf16>, vector<8x238xbf16> -> vector<8x256xbf16>
    %c2_i32_308 = arith.constant 2 : i32
    %593 = vector.broadcast %c2_i32_308 : i32 to vector<1x256xi32>
    %594 = arith.cmpi sge, %16, %593 : vector<1x256xi32>
    %cst_309 = arith.constant 0.000000e+00 : bf16
    %595 = vector.broadcast %cst_309 : bf16 to vector<8x256xbf16>
    %596 = vector.shape_cast %594 : vector<1x256xi1> to vector<1x256xi1>
    %597 = vector.broadcast %596 : vector<1x256xi1> to vector<8x256xi1>
    %598 = arith.select %597, %592, %595 : vector<8x256xi1>, vector<8x256xbf16>
    %cst_310 = arith.constant dense<0.000000e+00> : vector<8x256xf32>
    %599 = tpu.matmul %589, %598, %cst_310 {dimension_numbers = #tpu.dot_dimension_numbers<[1], [0], [0], [1], [0, 0, 1, 1], [], []>} : vector<8x8xbf16>, vector<8x256xbf16>, vector<8x256xf32> -> vector<8x256xf32>
    %600 = arith.addf %587, %599 : vector<8x256xf32>
    %c6_311 = arith.constant 6 : index
    %c0_312 = arith.constant 0 : index
    %c0_313 = arith.constant 0 : index
    %601 = vector.load %arg4[%c6_311, %c0_312, %c0_313] : memref<25x8x8xbf16, #tpu.memory_space<vmem>>, vector<1x8x8xbf16>
    %602 = vector.shape_cast %601 : vector<1x8x8xbf16> to vector<8x8xbf16>
    %cst_314 = arith.constant 0.000000e+00 : bf16
    %603 = vector.broadcast %cst_314 : bf16 to vector<8x17xbf16>
    %604 = vector.extract_strided_slice %529 {offsets = [0, 0], sizes = [8, 239], strides = [1, 1]} : vector<8x256xbf16> to vector<8x239xbf16>
    %605 = tpu.concatenate %603, %604 in 1 : vector<8x17xbf16>, vector<8x239xbf16> -> vector<8x256xbf16>
    %c1_i32_315 = arith.constant 1 : i32
    %606 = vector.broadcast %c1_i32_315 : i32 to vector<1x256xi32>
    %607 = arith.cmpi sge, %16, %606 : vector<1x256xi32>
    %cst_316 = arith.constant 0.000000e+00 : bf16
    %608 = vector.broadcast %cst_316 : bf16 to vector<8x256xbf16>
    %609 = vector.shape_cast %607 : vector<1x256xi1> to vector<1x256xi1>
    %610 = vector.broadcast %609 : vector<1x256xi1> to vector<8x256xi1>
    %611 = arith.select %610, %605, %608 : vector<8x256xi1>, vector<8x256xbf16>
    %cst_317 = arith.constant dense<0.000000e+00> : vector<8x256xf32>
    %612 = tpu.matmul %602, %611, %cst_317 {dimension_numbers = #tpu.dot_dimension_numbers<[1], [0], [0], [1], [0, 0, 1, 1], [], []>} : vector<8x8xbf16>, vector<8x256xbf16>, vector<8x256xf32> -> vector<8x256xf32>
    %613 = arith.addf %600, %612 : vector<8x256xf32>
    %c7_318 = arith.constant 7 : index
    %c0_319 = arith.constant 0 : index
    %c0_320 = arith.constant 0 : index
    %614 = vector.load %arg4[%c7_318, %c0_319, %c0_320] : memref<25x8x8xbf16, #tpu.memory_space<vmem>>, vector<1x8x8xbf16>
    %615 = vector.shape_cast %614 : vector<1x8x8xbf16> to vector<8x8xbf16>
    %cst_321 = arith.constant 0.000000e+00 : bf16
    %616 = vector.broadcast %cst_321 : bf16 to vector<8x16xbf16>
    %617 = vector.extract_strided_slice %529 {offsets = [0, 0], sizes = [8, 240], strides = [1, 1]} : vector<8x256xbf16> to vector<8x240xbf16>
    %618 = tpu.concatenate %616, %617 in 1 : vector<8x16xbf16>, vector<8x240xbf16> -> vector<8x256xbf16>
    %cst_322 = arith.constant dense<0.000000e+00> : vector<8x256xf32>
    %619 = tpu.matmul %615, %618, %cst_322 {dimension_numbers = #tpu.dot_dimension_numbers<[1], [0], [0], [1], [0, 0, 1, 1], [], []>} : vector<8x8xbf16>, vector<8x256xbf16>, vector<8x256xf32> -> vector<8x256xf32>
    %620 = arith.addf %613, %619 : vector<8x256xf32>
    %c8_323 = arith.constant 8 : index
    %c0_324 = arith.constant 0 : index
    %c0_325 = arith.constant 0 : index
    %621 = vector.load %arg4[%c8_323, %c0_324, %c0_325] : memref<25x8x8xbf16, #tpu.memory_space<vmem>>, vector<1x8x8xbf16>
    %622 = vector.shape_cast %621 : vector<1x8x8xbf16> to vector<8x8xbf16>
    %cst_326 = arith.constant 0.000000e+00 : bf16
    %623 = vector.broadcast %cst_326 : bf16 to vector<8x15xbf16>
    %624 = vector.extract_strided_slice %529 {offsets = [0, 0], sizes = [8, 241], strides = [1, 1]} : vector<8x256xbf16> to vector<8x241xbf16>
    %625 = tpu.concatenate %623, %624 in 1 : vector<8x15xbf16>, vector<8x241xbf16> -> vector<8x256xbf16>
    %c15_i32_327 = arith.constant 15 : i32
    %626 = vector.broadcast %c15_i32_327 : i32 to vector<1x256xi32>
    %627 = arith.cmpi slt, %16, %626 : vector<1x256xi32>
    %cst_328 = arith.constant 0.000000e+00 : bf16
    %628 = vector.broadcast %cst_328 : bf16 to vector<8x256xbf16>
    %629 = vector.shape_cast %627 : vector<1x256xi1> to vector<1x256xi1>
    %630 = vector.broadcast %629 : vector<1x256xi1> to vector<8x256xi1>
    %631 = arith.select %630, %625, %628 : vector<8x256xi1>, vector<8x256xbf16>
    %cst_329 = arith.constant dense<0.000000e+00> : vector<8x256xf32>
    %632 = tpu.matmul %622, %631, %cst_329 {dimension_numbers = #tpu.dot_dimension_numbers<[1], [0], [0], [1], [0, 0, 1, 1], [], []>} : vector<8x8xbf16>, vector<8x256xbf16>, vector<8x256xf32> -> vector<8x256xf32>
    %633 = arith.addf %620, %632 : vector<8x256xf32>
    %c9_330 = arith.constant 9 : index
    %c0_331 = arith.constant 0 : index
    %c0_332 = arith.constant 0 : index
    %634 = vector.load %arg4[%c9_330, %c0_331, %c0_332] : memref<25x8x8xbf16, #tpu.memory_space<vmem>>, vector<1x8x8xbf16>
    %635 = vector.shape_cast %634 : vector<1x8x8xbf16> to vector<8x8xbf16>
    %cst_333 = arith.constant 0.000000e+00 : bf16
    %636 = vector.broadcast %cst_333 : bf16 to vector<8x14xbf16>
    %637 = vector.extract_strided_slice %529 {offsets = [0, 0], sizes = [8, 242], strides = [1, 1]} : vector<8x256xbf16> to vector<8x242xbf16>
    %638 = tpu.concatenate %636, %637 in 1 : vector<8x14xbf16>, vector<8x242xbf16> -> vector<8x256xbf16>
    %c14_i32_334 = arith.constant 14 : i32
    %639 = vector.broadcast %c14_i32_334 : i32 to vector<1x256xi32>
    %640 = arith.cmpi slt, %16, %639 : vector<1x256xi32>
    %cst_335 = arith.constant 0.000000e+00 : bf16
    %641 = vector.broadcast %cst_335 : bf16 to vector<8x256xbf16>
    %642 = vector.shape_cast %640 : vector<1x256xi1> to vector<1x256xi1>
    %643 = vector.broadcast %642 : vector<1x256xi1> to vector<8x256xi1>
    %644 = arith.select %643, %638, %641 : vector<8x256xi1>, vector<8x256xbf16>
    %cst_336 = arith.constant dense<0.000000e+00> : vector<8x256xf32>
    %645 = tpu.matmul %635, %644, %cst_336 {dimension_numbers = #tpu.dot_dimension_numbers<[1], [0], [0], [1], [0, 0, 1, 1], [], []>} : vector<8x8xbf16>, vector<8x256xbf16>, vector<8x256xf32> -> vector<8x256xf32>
    %646 = arith.addf %633, %645 : vector<8x256xf32>
    %c10_337 = arith.constant 10 : index
    %c0_338 = arith.constant 0 : index
    %c0_339 = arith.constant 0 : index
    %647 = vector.load %arg4[%c10_337, %c0_338, %c0_339] : memref<25x8x8xbf16, #tpu.memory_space<vmem>>, vector<1x8x8xbf16>
    %648 = vector.shape_cast %647 : vector<1x8x8xbf16> to vector<8x8xbf16>
    %cst_340 = arith.constant 0.000000e+00 : bf16
    %649 = vector.broadcast %cst_340 : bf16 to vector<8x2xbf16>
    %650 = vector.extract_strided_slice %529 {offsets = [0, 0], sizes = [8, 254], strides = [1, 1]} : vector<8x256xbf16> to vector<8x254xbf16>
    %651 = tpu.concatenate %649, %650 in 1 : vector<8x2xbf16>, vector<8x254xbf16> -> vector<8x256xbf16>
    %c2_i32_341 = arith.constant 2 : i32
    %652 = vector.broadcast %c2_i32_341 : i32 to vector<1x256xi32>
    %653 = arith.cmpi sge, %16, %652 : vector<1x256xi32>
    %cst_342 = arith.constant 0.000000e+00 : bf16
    %654 = vector.broadcast %cst_342 : bf16 to vector<8x256xbf16>
    %655 = vector.shape_cast %653 : vector<1x256xi1> to vector<1x256xi1>
    %656 = vector.broadcast %655 : vector<1x256xi1> to vector<8x256xi1>
    %657 = arith.select %656, %651, %654 : vector<8x256xi1>, vector<8x256xbf16>
    %cst_343 = arith.constant dense<0.000000e+00> : vector<8x256xf32>
    %658 = tpu.matmul %648, %657, %cst_343 {dimension_numbers = #tpu.dot_dimension_numbers<[1], [0], [0], [1], [0, 0, 1, 1], [], []>} : vector<8x8xbf16>, vector<8x256xbf16>, vector<8x256xf32> -> vector<8x256xf32>
    %659 = arith.addf %646, %658 : vector<8x256xf32>
    %c11_344 = arith.constant 11 : index
    %c0_345 = arith.constant 0 : index
    %c0_346 = arith.constant 0 : index
    %660 = vector.load %arg4[%c11_344, %c0_345, %c0_346] : memref<25x8x8xbf16, #tpu.memory_space<vmem>>, vector<1x8x8xbf16>
    %661 = vector.shape_cast %660 : vector<1x8x8xbf16> to vector<8x8xbf16>
    %cst_347 = arith.constant 0.000000e+00 : bf16
    %662 = vector.broadcast %cst_347 : bf16 to vector<8x1xbf16>
    %663 = vector.extract_strided_slice %529 {offsets = [0, 0], sizes = [8, 255], strides = [1, 1]} : vector<8x256xbf16> to vector<8x255xbf16>
    %664 = tpu.concatenate %662, %663 in 1 : vector<8x1xbf16>, vector<8x255xbf16> -> vector<8x256xbf16>
    %c1_i32_348 = arith.constant 1 : i32
    %665 = vector.broadcast %c1_i32_348 : i32 to vector<1x256xi32>
    %666 = arith.cmpi sge, %16, %665 : vector<1x256xi32>
    %cst_349 = arith.constant 0.000000e+00 : bf16
    %667 = vector.broadcast %cst_349 : bf16 to vector<8x256xbf16>
    %668 = vector.shape_cast %666 : vector<1x256xi1> to vector<1x256xi1>
    %669 = vector.broadcast %668 : vector<1x256xi1> to vector<8x256xi1>
    %670 = arith.select %669, %664, %667 : vector<8x256xi1>, vector<8x256xbf16>
    %cst_350 = arith.constant dense<0.000000e+00> : vector<8x256xf32>
    %671 = tpu.matmul %661, %670, %cst_350 {dimension_numbers = #tpu.dot_dimension_numbers<[1], [0], [0], [1], [0, 0, 1, 1], [], []>} : vector<8x8xbf16>, vector<8x256xbf16>, vector<8x256xf32> -> vector<8x256xf32>
    %672 = arith.addf %659, %671 : vector<8x256xf32>
    %c12_351 = arith.constant 12 : index
    %c0_352 = arith.constant 0 : index
    %c0_353 = arith.constant 0 : index
    %673 = vector.load %arg4[%c12_351, %c0_352, %c0_353] : memref<25x8x8xbf16, #tpu.memory_space<vmem>>, vector<1x8x8xbf16>
    %674 = vector.shape_cast %673 : vector<1x8x8xbf16> to vector<8x8xbf16>
    %cst_354 = arith.constant dense<0.000000e+00> : vector<8x256xf32>
    %675 = tpu.matmul %674, %529, %cst_354 {dimension_numbers = #tpu.dot_dimension_numbers<[1], [0], [0], [1], [0, 0, 1, 1], [], []>} : vector<8x8xbf16>, vector<8x256xbf16>, vector<8x256xf32> -> vector<8x256xf32>
    %676 = arith.addf %672, %675 : vector<8x256xf32>
    %c13_355 = arith.constant 13 : index
    %c0_356 = arith.constant 0 : index
    %c0_357 = arith.constant 0 : index
    %677 = vector.load %arg4[%c13_355, %c0_356, %c0_357] : memref<25x8x8xbf16, #tpu.memory_space<vmem>>, vector<1x8x8xbf16>
    %678 = vector.shape_cast %677 : vector<1x8x8xbf16> to vector<8x8xbf16>
    %679 = vector.extract_strided_slice %529 {offsets = [0, 1], sizes = [8, 255], strides = [1, 1]} : vector<8x256xbf16> to vector<8x255xbf16>
    %cst_358 = arith.constant 0.000000e+00 : bf16
    %680 = vector.broadcast %cst_358 : bf16 to vector<8x1xbf16>
    %681 = tpu.concatenate %679, %680 in 1 : vector<8x255xbf16>, vector<8x1xbf16> -> vector<8x256xbf16>
    %c15_i32_359 = arith.constant 15 : i32
    %682 = vector.broadcast %c15_i32_359 : i32 to vector<1x256xi32>
    %683 = arith.cmpi slt, %16, %682 : vector<1x256xi32>
    %cst_360 = arith.constant 0.000000e+00 : bf16
    %684 = vector.broadcast %cst_360 : bf16 to vector<8x256xbf16>
    %685 = vector.shape_cast %683 : vector<1x256xi1> to vector<1x256xi1>
    %686 = vector.broadcast %685 : vector<1x256xi1> to vector<8x256xi1>
    %687 = arith.select %686, %681, %684 : vector<8x256xi1>, vector<8x256xbf16>
    %cst_361 = arith.constant dense<0.000000e+00> : vector<8x256xf32>
    %688 = tpu.matmul %678, %687, %cst_361 {dimension_numbers = #tpu.dot_dimension_numbers<[1], [0], [0], [1], [0, 0, 1, 1], [], []>} : vector<8x8xbf16>, vector<8x256xbf16>, vector<8x256xf32> -> vector<8x256xf32>
    %689 = arith.addf %676, %688 : vector<8x256xf32>
    %c14_362 = arith.constant 14 : index
    %c0_363 = arith.constant 0 : index
    %c0_364 = arith.constant 0 : index
    %690 = vector.load %arg4[%c14_362, %c0_363, %c0_364] : memref<25x8x8xbf16, #tpu.memory_space<vmem>>, vector<1x8x8xbf16>
    %691 = vector.shape_cast %690 : vector<1x8x8xbf16> to vector<8x8xbf16>
    %692 = vector.extract_strided_slice %529 {offsets = [0, 2], sizes = [8, 254], strides = [1, 1]} : vector<8x256xbf16> to vector<8x254xbf16>
    %cst_365 = arith.constant 0.000000e+00 : bf16
    %693 = vector.broadcast %cst_365 : bf16 to vector<8x2xbf16>
    %694 = tpu.concatenate %692, %693 in 1 : vector<8x254xbf16>, vector<8x2xbf16> -> vector<8x256xbf16>
    %c14_i32_366 = arith.constant 14 : i32
    %695 = vector.broadcast %c14_i32_366 : i32 to vector<1x256xi32>
    %696 = arith.cmpi slt, %16, %695 : vector<1x256xi32>
    %cst_367 = arith.constant 0.000000e+00 : bf16
    %697 = vector.broadcast %cst_367 : bf16 to vector<8x256xbf16>
    %698 = vector.shape_cast %696 : vector<1x256xi1> to vector<1x256xi1>
    %699 = vector.broadcast %698 : vector<1x256xi1> to vector<8x256xi1>
    %700 = arith.select %699, %694, %697 : vector<8x256xi1>, vector<8x256xbf16>
    %cst_368 = arith.constant dense<0.000000e+00> : vector<8x256xf32>
    %701 = tpu.matmul %691, %700, %cst_368 {dimension_numbers = #tpu.dot_dimension_numbers<[1], [0], [0], [1], [0, 0, 1, 1], [], []>} : vector<8x8xbf16>, vector<8x256xbf16>, vector<8x256xf32> -> vector<8x256xf32>
    %702 = arith.addf %689, %701 : vector<8x256xf32>
    %c15_369 = arith.constant 15 : index
    %c0_370 = arith.constant 0 : index
    %c0_371 = arith.constant 0 : index
    %703 = vector.load %arg4[%c15_369, %c0_370, %c0_371] : memref<25x8x8xbf16, #tpu.memory_space<vmem>>, vector<1x8x8xbf16>
    %704 = vector.shape_cast %703 : vector<1x8x8xbf16> to vector<8x8xbf16>
    %705 = vector.extract_strided_slice %529 {offsets = [0, 14], sizes = [8, 242], strides = [1, 1]} : vector<8x256xbf16> to vector<8x242xbf16>
    %cst_372 = arith.constant 0.000000e+00 : bf16
    %706 = vector.broadcast %cst_372 : bf16 to vector<8x14xbf16>
    %707 = tpu.concatenate %705, %706 in 1 : vector<8x242xbf16>, vector<8x14xbf16> -> vector<8x256xbf16>
    %c2_i32_373 = arith.constant 2 : i32
    %708 = vector.broadcast %c2_i32_373 : i32 to vector<1x256xi32>
    %709 = arith.cmpi sge, %16, %708 : vector<1x256xi32>
    %cst_374 = arith.constant 0.000000e+00 : bf16
    %710 = vector.broadcast %cst_374 : bf16 to vector<8x256xbf16>
    %711 = vector.shape_cast %709 : vector<1x256xi1> to vector<1x256xi1>
    %712 = vector.broadcast %711 : vector<1x256xi1> to vector<8x256xi1>
    %713 = arith.select %712, %707, %710 : vector<8x256xi1>, vector<8x256xbf16>
    %cst_375 = arith.constant dense<0.000000e+00> : vector<8x256xf32>
    %714 = tpu.matmul %704, %713, %cst_375 {dimension_numbers = #tpu.dot_dimension_numbers<[1], [0], [0], [1], [0, 0, 1, 1], [], []>} : vector<8x8xbf16>, vector<8x256xbf16>, vector<8x256xf32> -> vector<8x256xf32>
    %715 = arith.addf %702, %714 : vector<8x256xf32>
    %c16_376 = arith.constant 16 : index
    %c0_377 = arith.constant 0 : index
    %c0_378 = arith.constant 0 : index
    %716 = vector.load %arg4[%c16_376, %c0_377, %c0_378] : memref<25x8x8xbf16, #tpu.memory_space<vmem>>, vector<1x8x8xbf16>
    %717 = vector.shape_cast %716 : vector<1x8x8xbf16> to vector<8x8xbf16>
    %718 = vector.extract_strided_slice %529 {offsets = [0, 15], sizes = [8, 241], strides = [1, 1]} : vector<8x256xbf16> to vector<8x241xbf16>
    %cst_379 = arith.constant 0.000000e+00 : bf16
    %719 = vector.broadcast %cst_379 : bf16 to vector<8x15xbf16>
    %720 = tpu.concatenate %718, %719 in 1 : vector<8x241xbf16>, vector<8x15xbf16> -> vector<8x256xbf16>
    %c1_i32_380 = arith.constant 1 : i32
    %721 = vector.broadcast %c1_i32_380 : i32 to vector<1x256xi32>
    %722 = arith.cmpi sge, %16, %721 : vector<1x256xi32>
    %cst_381 = arith.constant 0.000000e+00 : bf16
    %723 = vector.broadcast %cst_381 : bf16 to vector<8x256xbf16>
    %724 = vector.shape_cast %722 : vector<1x256xi1> to vector<1x256xi1>
    %725 = vector.broadcast %724 : vector<1x256xi1> to vector<8x256xi1>
    %726 = arith.select %725, %720, %723 : vector<8x256xi1>, vector<8x256xbf16>
    %cst_382 = arith.constant dense<0.000000e+00> : vector<8x256xf32>
    %727 = tpu.matmul %717, %726, %cst_382 {dimension_numbers = #tpu.dot_dimension_numbers<[1], [0], [0], [1], [0, 0, 1, 1], [], []>} : vector<8x8xbf16>, vector<8x256xbf16>, vector<8x256xf32> -> vector<8x256xf32>
    %728 = arith.addf %715, %727 : vector<8x256xf32>
    %c17_383 = arith.constant 17 : index
    %c0_384 = arith.constant 0 : index
    %c0_385 = arith.constant 0 : index
    %729 = vector.load %arg4[%c17_383, %c0_384, %c0_385] : memref<25x8x8xbf16, #tpu.memory_space<vmem>>, vector<1x8x8xbf16>
    %730 = vector.shape_cast %729 : vector<1x8x8xbf16> to vector<8x8xbf16>
    %731 = vector.extract_strided_slice %529 {offsets = [0, 16], sizes = [8, 240], strides = [1, 1]} : vector<8x256xbf16> to vector<8x240xbf16>
    %cst_386 = arith.constant 0.000000e+00 : bf16
    %732 = vector.broadcast %cst_386 : bf16 to vector<8x16xbf16>
    %733 = tpu.concatenate %731, %732 in 1 : vector<8x240xbf16>, vector<8x16xbf16> -> vector<8x256xbf16>
    %cst_387 = arith.constant dense<0.000000e+00> : vector<8x256xf32>
    %734 = tpu.matmul %730, %733, %cst_387 {dimension_numbers = #tpu.dot_dimension_numbers<[1], [0], [0], [1], [0, 0, 1, 1], [], []>} : vector<8x8xbf16>, vector<8x256xbf16>, vector<8x256xf32> -> vector<8x256xf32>
    %735 = arith.addf %728, %734 : vector<8x256xf32>
    %c18_388 = arith.constant 18 : index
    %c0_389 = arith.constant 0 : index
    %c0_390 = arith.constant 0 : index
    %736 = vector.load %arg4[%c18_388, %c0_389, %c0_390] : memref<25x8x8xbf16, #tpu.memory_space<vmem>>, vector<1x8x8xbf16>
    %737 = vector.shape_cast %736 : vector<1x8x8xbf16> to vector<8x8xbf16>
    %738 = vector.extract_strided_slice %529 {offsets = [0, 17], sizes = [8, 239], strides = [1, 1]} : vector<8x256xbf16> to vector<8x239xbf16>
    %cst_391 = arith.constant 0.000000e+00 : bf16
    %739 = vector.broadcast %cst_391 : bf16 to vector<8x17xbf16>
    %740 = tpu.concatenate %738, %739 in 1 : vector<8x239xbf16>, vector<8x17xbf16> -> vector<8x256xbf16>
    %c15_i32_392 = arith.constant 15 : i32
    %741 = vector.broadcast %c15_i32_392 : i32 to vector<1x256xi32>
    %742 = arith.cmpi slt, %16, %741 : vector<1x256xi32>
    %cst_393 = arith.constant 0.000000e+00 : bf16
    %743 = vector.broadcast %cst_393 : bf16 to vector<8x256xbf16>
    %744 = vector.shape_cast %742 : vector<1x256xi1> to vector<1x256xi1>
    %745 = vector.broadcast %744 : vector<1x256xi1> to vector<8x256xi1>
    %746 = arith.select %745, %740, %743 : vector<8x256xi1>, vector<8x256xbf16>
    %cst_394 = arith.constant dense<0.000000e+00> : vector<8x256xf32>
    %747 = tpu.matmul %737, %746, %cst_394 {dimension_numbers = #tpu.dot_dimension_numbers<[1], [0], [0], [1], [0, 0, 1, 1], [], []>} : vector<8x8xbf16>, vector<8x256xbf16>, vector<8x256xf32> -> vector<8x256xf32>
    %748 = arith.addf %735, %747 : vector<8x256xf32>
    %c19_395 = arith.constant 19 : index
    %c0_396 = arith.constant 0 : index
    %c0_397 = arith.constant 0 : index
    %749 = vector.load %arg4[%c19_395, %c0_396, %c0_397] : memref<25x8x8xbf16, #tpu.memory_space<vmem>>, vector<1x8x8xbf16>
    %750 = vector.shape_cast %749 : vector<1x8x8xbf16> to vector<8x8xbf16>
    %751 = vector.extract_strided_slice %529 {offsets = [0, 18], sizes = [8, 238], strides = [1, 1]} : vector<8x256xbf16> to vector<8x238xbf16>
    %cst_398 = arith.constant 0.000000e+00 : bf16
    %752 = vector.broadcast %cst_398 : bf16 to vector<8x18xbf16>
    %753 = tpu.concatenate %751, %752 in 1 : vector<8x238xbf16>, vector<8x18xbf16> -> vector<8x256xbf16>
    %c14_i32_399 = arith.constant 14 : i32
    %754 = vector.broadcast %c14_i32_399 : i32 to vector<1x256xi32>
    %755 = arith.cmpi slt, %16, %754 : vector<1x256xi32>
    %cst_400 = arith.constant 0.000000e+00 : bf16
    %756 = vector.broadcast %cst_400 : bf16 to vector<8x256xbf16>
    %757 = vector.shape_cast %755 : vector<1x256xi1> to vector<1x256xi1>
    %758 = vector.broadcast %757 : vector<1x256xi1> to vector<8x256xi1>
    %759 = arith.select %758, %753, %756 : vector<8x256xi1>, vector<8x256xbf16>
    %cst_401 = arith.constant dense<0.000000e+00> : vector<8x256xf32>
    %760 = tpu.matmul %750, %759, %cst_401 {dimension_numbers = #tpu.dot_dimension_numbers<[1], [0], [0], [1], [0, 0, 1, 1], [], []>} : vector<8x8xbf16>, vector<8x256xbf16>, vector<8x256xf32> -> vector<8x256xf32>
    %761 = arith.addf %748, %760 : vector<8x256xf32>
    %c20_402 = arith.constant 20 : index
    %c0_403 = arith.constant 0 : index
    %c0_404 = arith.constant 0 : index
    %762 = vector.load %arg4[%c20_402, %c0_403, %c0_404] : memref<25x8x8xbf16, #tpu.memory_space<vmem>>, vector<1x8x8xbf16>
    %763 = vector.shape_cast %762 : vector<1x8x8xbf16> to vector<8x8xbf16>
    %764 = vector.extract_strided_slice %529 {offsets = [0, 30], sizes = [8, 226], strides = [1, 1]} : vector<8x256xbf16> to vector<8x226xbf16>
    %cst_405 = arith.constant 0.000000e+00 : bf16
    %765 = vector.broadcast %cst_405 : bf16 to vector<8x30xbf16>
    %766 = tpu.concatenate %764, %765 in 1 : vector<8x226xbf16>, vector<8x30xbf16> -> vector<8x256xbf16>
    %c2_i32_406 = arith.constant 2 : i32
    %767 = vector.broadcast %c2_i32_406 : i32 to vector<1x256xi32>
    %768 = arith.cmpi sge, %16, %767 : vector<1x256xi32>
    %cst_407 = arith.constant 0.000000e+00 : bf16
    %769 = vector.broadcast %cst_407 : bf16 to vector<8x256xbf16>
    %770 = vector.shape_cast %768 : vector<1x256xi1> to vector<1x256xi1>
    %771 = vector.broadcast %770 : vector<1x256xi1> to vector<8x256xi1>
    %772 = arith.select %771, %766, %769 : vector<8x256xi1>, vector<8x256xbf16>
    %cst_408 = arith.constant dense<0.000000e+00> : vector<8x256xf32>
    %773 = tpu.matmul %763, %772, %cst_408 {dimension_numbers = #tpu.dot_dimension_numbers<[1], [0], [0], [1], [0, 0, 1, 1], [], []>} : vector<8x8xbf16>, vector<8x256xbf16>, vector<8x256xf32> -> vector<8x256xf32>
    %774 = arith.addf %761, %773 : vector<8x256xf32>
    %c21_409 = arith.constant 21 : index
    %c0_410 = arith.constant 0 : index
    %c0_411 = arith.constant 0 : index
    %775 = vector.load %arg4[%c21_409, %c0_410, %c0_411] : memref<25x8x8xbf16, #tpu.memory_space<vmem>>, vector<1x8x8xbf16>
    %776 = vector.shape_cast %775 : vector<1x8x8xbf16> to vector<8x8xbf16>
    %777 = vector.extract_strided_slice %529 {offsets = [0, 31], sizes = [8, 225], strides = [1, 1]} : vector<8x256xbf16> to vector<8x225xbf16>
    %cst_412 = arith.constant 0.000000e+00 : bf16
    %778 = vector.broadcast %cst_412 : bf16 to vector<8x31xbf16>
    %779 = tpu.concatenate %777, %778 in 1 : vector<8x225xbf16>, vector<8x31xbf16> -> vector<8x256xbf16>
    %c1_i32_413 = arith.constant 1 : i32
    %780 = vector.broadcast %c1_i32_413 : i32 to vector<1x256xi32>
    %781 = arith.cmpi sge, %16, %780 : vector<1x256xi32>
    %cst_414 = arith.constant 0.000000e+00 : bf16
    %782 = vector.broadcast %cst_414 : bf16 to vector<8x256xbf16>
    %783 = vector.shape_cast %781 : vector<1x256xi1> to vector<1x256xi1>
    %784 = vector.broadcast %783 : vector<1x256xi1> to vector<8x256xi1>
    %785 = arith.select %784, %779, %782 : vector<8x256xi1>, vector<8x256xbf16>
    %cst_415 = arith.constant dense<0.000000e+00> : vector<8x256xf32>
    %786 = tpu.matmul %776, %785, %cst_415 {dimension_numbers = #tpu.dot_dimension_numbers<[1], [0], [0], [1], [0, 0, 1, 1], [], []>} : vector<8x8xbf16>, vector<8x256xbf16>, vector<8x256xf32> -> vector<8x256xf32>
    %787 = arith.addf %774, %786 : vector<8x256xf32>
    %c22_416 = arith.constant 22 : index
    %c0_417 = arith.constant 0 : index
    %c0_418 = arith.constant 0 : index
    %788 = vector.load %arg4[%c22_416, %c0_417, %c0_418] : memref<25x8x8xbf16, #tpu.memory_space<vmem>>, vector<1x8x8xbf16>
    %789 = vector.shape_cast %788 : vector<1x8x8xbf16> to vector<8x8xbf16>
    %790 = vector.extract_strided_slice %529 {offsets = [0, 32], sizes = [8, 224], strides = [1, 1]} : vector<8x256xbf16> to vector<8x224xbf16>
    %cst_419 = arith.constant 0.000000e+00 : bf16
    %791 = vector.broadcast %cst_419 : bf16 to vector<8x32xbf16>
    %792 = tpu.concatenate %790, %791 in 1 : vector<8x224xbf16>, vector<8x32xbf16> -> vector<8x256xbf16>
    %cst_420 = arith.constant dense<0.000000e+00> : vector<8x256xf32>
    %793 = tpu.matmul %789, %792, %cst_420 {dimension_numbers = #tpu.dot_dimension_numbers<[1], [0], [0], [1], [0, 0, 1, 1], [], []>} : vector<8x8xbf16>, vector<8x256xbf16>, vector<8x256xf32> -> vector<8x256xf32>
    %794 = arith.addf %787, %793 : vector<8x256xf32>
    %c23_421 = arith.constant 23 : index
    %c0_422 = arith.constant 0 : index
    %c0_423 = arith.constant 0 : index
    %795 = vector.load %arg4[%c23_421, %c0_422, %c0_423] : memref<25x8x8xbf16, #tpu.memory_space<vmem>>, vector<1x8x8xbf16>
    %796 = vector.shape_cast %795 : vector<1x8x8xbf16> to vector<8x8xbf16>
    %797 = vector.extract_strided_slice %529 {offsets = [0, 33], sizes = [8, 223], strides = [1, 1]} : vector<8x256xbf16> to vector<8x223xbf16>
    %cst_424 = arith.constant 0.000000e+00 : bf16
    %798 = vector.broadcast %cst_424 : bf16 to vector<8x33xbf16>
    %799 = tpu.concatenate %797, %798 in 1 : vector<8x223xbf16>, vector<8x33xbf16> -> vector<8x256xbf16>
    %c15_i32_425 = arith.constant 15 : i32
    %800 = vector.broadcast %c15_i32_425 : i32 to vector<1x256xi32>
    %801 = arith.cmpi slt, %16, %800 : vector<1x256xi32>
    %cst_426 = arith.constant 0.000000e+00 : bf16
    %802 = vector.broadcast %cst_426 : bf16 to vector<8x256xbf16>
    %803 = vector.shape_cast %801 : vector<1x256xi1> to vector<1x256xi1>
    %804 = vector.broadcast %803 : vector<1x256xi1> to vector<8x256xi1>
    %805 = arith.select %804, %799, %802 : vector<8x256xi1>, vector<8x256xbf16>
    %cst_427 = arith.constant dense<0.000000e+00> : vector<8x256xf32>
    %806 = tpu.matmul %796, %805, %cst_427 {dimension_numbers = #tpu.dot_dimension_numbers<[1], [0], [0], [1], [0, 0, 1, 1], [], []>} : vector<8x8xbf16>, vector<8x256xbf16>, vector<8x256xf32> -> vector<8x256xf32>
    %807 = arith.addf %794, %806 : vector<8x256xf32>
    %c24_428 = arith.constant 24 : index
    %c0_429 = arith.constant 0 : index
    %c0_430 = arith.constant 0 : index
    %808 = vector.load %arg4[%c24_428, %c0_429, %c0_430] : memref<25x8x8xbf16, #tpu.memory_space<vmem>>, vector<1x8x8xbf16>
    %809 = vector.shape_cast %808 : vector<1x8x8xbf16> to vector<8x8xbf16>
    %810 = vector.extract_strided_slice %529 {offsets = [0, 34], sizes = [8, 222], strides = [1, 1]} : vector<8x256xbf16> to vector<8x222xbf16>
    %cst_431 = arith.constant 0.000000e+00 : bf16
    %811 = vector.broadcast %cst_431 : bf16 to vector<8x34xbf16>
    %812 = tpu.concatenate %810, %811 in 1 : vector<8x222xbf16>, vector<8x34xbf16> -> vector<8x256xbf16>
    %c14_i32_432 = arith.constant 14 : i32
    %813 = vector.broadcast %c14_i32_432 : i32 to vector<1x256xi32>
    %814 = arith.cmpi slt, %16, %813 : vector<1x256xi32>
    %cst_433 = arith.constant 0.000000e+00 : bf16
    %815 = vector.broadcast %cst_433 : bf16 to vector<8x256xbf16>
    %816 = vector.shape_cast %814 : vector<1x256xi1> to vector<1x256xi1>
    %817 = vector.broadcast %816 : vector<1x256xi1> to vector<8x256xi1>
    %818 = arith.select %817, %812, %815 : vector<8x256xi1>, vector<8x256xbf16>
    %cst_434 = arith.constant dense<0.000000e+00> : vector<8x256xf32>
    %819 = tpu.matmul %809, %818, %cst_434 {dimension_numbers = #tpu.dot_dimension_numbers<[1], [0], [0], [1], [0, 0, 1, 1], [], []>} : vector<8x8xbf16>, vector<8x256xbf16>, vector<8x256xf32> -> vector<8x256xf32>
    %820 = arith.addf %807, %819 : vector<8x256xf32>
    %821 = arith.addf %820, %18 : vector<8x256xf32>
    %cst_435 = arith.constant 0.000000e+00 : f32
    %822 = vector.broadcast %cst_435 : f32 to vector<8x256xf32>
    %823 = arith.maximumf %821, %822 : vector<8x256xf32>
    %824 = vector.broadcast %19 : vector<8x1xf32> to vector<8x256xf32>
    %825 = arith.mulf %823, %824 : vector<8x256xf32>
    %826 = vector.broadcast %20 : vector<8x1xf32> to vector<8x256xf32>
    %827 = arith.addf %825, %826 : vector<8x256xf32>
    %cst_436 = arith.constant 0.000000e+00 : f32
    %828 = vector.broadcast %cst_436 : f32 to vector<8x256xf32>
    %829 = arith.maximumf %827, %828 : vector<8x256xf32>
    %c1_437 = arith.constant 1 : index
    %c0_438 = arith.constant 0 : index
    %c0_439 = arith.constant 0 : index
    %830 = vector.load %arg8[%c1_437, %c0_438, %c0_439] : memref<2x8x256xf32, #tpu.memory_space<vmem>>, vector<1x8x256xf32>
    %831 = vector.shape_cast %830 : vector<1x8x256xf32> to vector<8x256xf32>
    %832 = vector.shape_cast %829 : vector<8x256xf32> to vector<1x8x256xf32>
    tpu.vector_store %arg8[%c1_437, %c0_438, %c0_439], %832 {strides = array<i32>} : memref<2x8x256xf32, #tpu.memory_space<vmem>>, vector<1x8x256xf32>,
    return
  }
  func.func @transform_0(%arg0: i32) -> (i32, i32, i32) {
    %c0_i32 = arith.constant 0 : i32
    %c0_i32_0 = arith.constant 0 : i32
    %c0_i32_1 = arith.constant 0 : i32
    return %arg0, %c0_i32, %c0_i32_0 : i32, i32, i32
  }
  func.func @transform_1(%arg0: i32) -> (i32, i32, i32) {
    %c0_i32 = arith.constant 0 : i32
    %c0_i32_0 = arith.constant 0 : i32
    %c0_i32_1 = arith.constant 0 : i32
    %c0_i32_2 = arith.constant 0 : i32
    return %c0_i32, %c0_i32_0, %c0_i32_1 : i32, i32, i32
  }
  func.func @transform_2(%arg0: i32) -> (i32, i32) {
    %c0_i32 = arith.constant 0 : i32
    %c0_i32_0 = arith.constant 0 : i32
    %c0_i32_1 = arith.constant 0 : i32
    return %c0_i32, %c0_i32_0 : i32, i32
  }
  func.func @transform_3(%arg0: i32) -> (i32, i32, i32) {
    %c0_i32 = arith.constant 0 : i32
    %c0_i32_0 = arith.constant 0 : i32
    %c0_i32_1 = arith.constant 0 : i32
    %c0_i32_2 = arith.constant 0 : i32
    return %c0_i32, %c0_i32_0, %c0_i32_1 : i32, i32, i32
  }
  func.func @transform_4(%arg0: i32) -> (i32, i32) {
    %c0_i32 = arith.constant 0 : i32
    %c0_i32_0 = arith.constant 0 : i32
    %c0_i32_1 = arith.constant 0 : i32
    return %c0_i32, %c0_i32_0 : i32, i32
  }
  func.func @transform_5(%arg0: i32) -> (i32, i32) {
    %c0_i32 = arith.constant 0 : i32
    %c0_i32_0 = arith.constant 0 : i32
    %c0_i32_1 = arith.constant 0 : i32
    return %c0_i32, %c0_i32_0 : i32, i32
  }
  func.func @transform_6(%arg0: i32) -> (i32, i32) {
    %c0_i32 = arith.constant 0 : i32
    %c0_i32_0 = arith.constant 0 : i32
    %c0_i32_1 = arith.constant 0 : i32
    return %c0_i32, %c0_i32_0 : i32, i32
  }
  func.func @transform_7(%arg0: i32) -> (i32, i32, i32) {
    %c0_i32 = arith.constant 0 : i32
    %c0_i32_0 = arith.constant 0 : i32
    %c0_i32_1 = arith.constant 0 : i32
    return %arg0, %c0_i32, %c0_i32_0 : i32, i32, i32
  }
}

</mosaic_0001>

<llo_original>
// kernel: double_conv_inception_pallas.1
$region0: #{double_conv_inception_pallas.1}
  #allocation0 [shape = 'u32[]', space=smem, size = 0x4, offset = 0x4, fixed_abs, tag = 'smem constant byte address 0x4 - core index']
  #allocation1 [shape = 'u32[72,128]{1,0:T(1,128)}', space=vmem, size = 0x9000, scoped, tag = 'internal scratch']
  %s0 = inlined_call_operand.vmem [shape: f32[2,4,256], index: 0, kind: input, shape index: {}]
  %s1 = inlined_call_operand.vmem [shape: bf16[9,8,4], index: 1, kind: input, shape index: {}]
  %s2 = inlined_call_operand.vmem [shape: f32[8,1], index: 2, kind: input, shape index: {}]
  %s3 = inlined_call_operand.vmem [shape: bf16[25,8,8], index: 3, kind: input, shape index: {}]
  %s4 = inlined_call_operand.vmem [shape: f32[8,256], index: 4, kind: input, shape index: {}]
  %s5 = inlined_call_operand.vmem [shape: f32[8,1], index: 5, kind: input, shape index: {}]
  %s6 = inlined_call_operand.vmem [shape: f32[8,1], index: 6, kind: input, shape index: {}]
  %s7 = inlined_call_operand.vmem [shape: f32[2,8,256], index: 7, kind: output, shape index: {}]
  %s8 = sld [smem:[#allocation0]]
  $region38: #{double_conv_inception_pallas.1} parent=0
    _
  %s10 = ssub.s32 1, %s8
  %s11 = scalar_select 0, %s10, %s8
  // Predicated region
  $region2: #{double_conv_inception_pallas.1} parent=0 // pred_check
    _
  $region3: #{double_conv_inception_pallas.1} parent=0 // pred_check_branch
    %13 = sbr.rel (0) target = $region5
  $region4: #{double_conv_inception_pallas.1} parent=0 // pred_region
    _
  $region5: #{double_conv_inception_pallas.1} parent=0 // pred_fallthru
    _
  // Predicated region
  $region6: #{double_conv_inception_pallas.1} parent=0 // pred_check
    _
  $region7: #{double_conv_inception_pallas.1} parent=0 // pred_check_branch
    %15 = sbr.rel (0) target = $region9
  $region8: #{double_conv_inception_pallas.1} parent=0 // pred_region
    _
  $region9: #{double_conv_inception_pallas.1} parent=0 // pred_fallthru
    _
  // Predicated region
  $region10: #{double_conv_inception_pallas.1} parent=0 // pred_check
    _
  $region11: #{double_conv_inception_pallas.1} parent=0 // pred_check_branch
    %17 = sbr.rel (0) target = $region13
  $region12: #{double_conv_inception_pallas.1} parent=0 // pred_region
    _
  $region13: #{double_conv_inception_pallas.1} parent=0 // pred_fallthru
    _
  // Predicated region
  $region14: #{double_conv_inception_pallas.1} parent=0 // pred_check
    _
  $region15: #{double_conv_inception_pallas.1} parent=0 // pred_check_branch
    %19 = sbr.rel (0) target = $region17
  $region16: #{double_conv_inception_pallas.1} parent=0 // pred_region
    _
  $region17: #{double_conv_inception_pallas.1} parent=0 // pred_fallthru
    _
  // Predicated region
  $region18: #{double_conv_inception_pallas.1} parent=0 // pred_check
    _
  $region19: #{double_conv_inception_pallas.1} parent=0 // pred_check_branch
    %21 = sbr.rel (0) target = $region21
  $region20: #{double_conv_inception_pallas.1} parent=0 // pred_region
    _
  $region21: #{double_conv_inception_pallas.1} parent=0 // pred_fallthru
    _
  // Predicated region
  $region22: #{double_conv_inception_pallas.1} parent=0 // pred_check
    _
  $region23: #{double_conv_inception_pallas.1} parent=0 // pred_check_branch
    %23 = sbr.rel (0) target = $region25
  $region24: #{double_conv_inception_pallas.1} parent=0 // pred_region
    _
  $region25: #{double_conv_inception_pallas.1} parent=0 // pred_fallthru
    _
  // Predicated region
  $region26: #{double_conv_inception_pallas.1} parent=0 // pred_check
    _
  $region27: #{double_conv_inception_pallas.1} parent=0 // pred_check_branch
    %25 = sbr.rel (0) target = $region29
  $region28: #{double_conv_inception_pallas.1} parent=0 // pred_region
    _
  $region29: #{double_conv_inception_pallas.1} parent=0 // pred_fallthru
    _
  %v29 = vlaneseq
  %v30 = vand.u32 %v29, 127
  %v31 = vadd.s32 %v30, 128
  %vm32 = vcmp.lt.s32.totalorder %v30, 0
  %v33 = vsub.s32 0, %v30
  %v34 = vsel %vm32, %v33, %v30
  %v35 = vshrl.u32 %v34, 4
  %v36 = vand.u32 %v34, 15
  %v37 = vsub.s32 0, %v36
  %v38 = vsel %vm32, %v37, %v36
  %vm39 = vcmp.lt.s32.totalorder %v31, 0
  %v40 = vsub.s32 0, %v31
  %v41 = vsel %vm39, %v40, %v31
  %v42 = vshrl.u32 %v41, 4
  %v43 = vand.u32 %v41, 15
  %v44 = vsub.s32 0, %v43
  %v45 = vsel %vm39, %v44, %v43
  %vm46 = vcmp.ne.s32.totalorder %v38, 0
  %vm47 = vcmp.ne.s32.totalorder %v45, 0
  %vm48 = vcmp.lt.s32.totalorder %v38, 0
  %vm49 = vcmp.lt.s32.totalorder %v45, 0
  %vm50 = vmand %vm48, %vm46
  %vm51 = vmand %vm49, %vm47
  %v52 = vadd.s32 %v38, 16
  %v53 = vadd.s32 %v45, 16
  %v54 = vsel %vm50, %v52, %v38
  %v55 = vsel %vm51, %v53, %v45
  %v56 = vld [vmem:[%s2] sm:$0xff]
  %v57 = vld [vmem:[%s4] sm:$0xff]
  %v58 = vld [vmem:[%s4 + $0x8] sm:$0xff]
  %v59 = vld [vmem:[%s5] sm:$0xff]
  %v60 = vld [vmem:[%s6] sm:$0xff]
  %v61 = vld [vmem:[%s0] sm:$0xff]
  %63 = vst [vmem:[#allocation1] ss:$2 sm:$0xff] %v61
  %v64 = vld.sshfl [vmem:[#allocation1] sm:$0xff pattern:$0x75316420]
  %v65 = vld.sshfl [vmem:[#allocation1 + $0x8] sm:$0xff pattern:$0x75316420]
  %v68 = vpack.c.bf16 %v65, %v64
  %v69 = vld [vmem:[%s1] sm:$0xf]
  %v71 = vunpack.c.l.b16 %v68
  %v72 = vunpack.c.h.b16 %v68
  %v73 = vpack.c.b16 %v71, %v71
  %v74 = vpack.c.b16 %v72, %v72
  %75 = vrot.lane.b32.xlu0 %v73, 17
  %v76 = vpop.permute.xlu0 %75
  %77 = vrot.lane.b32.xlu0 %v74, 17
  %v78 = vpop.permute.xlu0 %77
  %vm79 = vcmask 138240
  %v80 = vsel %vm79, %v76, %v78
  %vm82 = vcmask 138240
  %v85 = vsel %vm82, 0, %v76
  %vm87 = vcmp.ge.s32.totalorder %v54, 1
  %vm88 = vcmp.ge.s32.totalorder %v55, 1
  %v89 = vsel %vm87, 1, 0
  %v90 = vsel %vm88, 1, 0
  %vm91 = vcmp.eq.s32.totalorder %v89, 1
  %vm92 = vcmp.eq.s32.totalorder %v90, 1
  %vm93 = vmpackc.low %vm92, %vm91
  %v94 = vsel %vm93, 65537, 0
  %v95 = vperm.slane %v94, 0
  %v96 = vperm.slane %v94, 4
  %v97 = vunpack.c.l.b16 %v95
  %v98 = vunpack.c.h.b16 %v95
  %v99 = vunpack.c.l.b16 0
  %v100 = vunpack.c.h.b16 0
  %vm101 = vcmp.ne.s32.totalorder %v97, %v99
  %vm102 = vcmp.ne.s32.totalorder %v98, %v100
  %vm103 = vmpackc.low %vm102, %vm101
  %v104 = vunpack.c.l.b16 %v96
  %v105 = vunpack.c.h.b16 %v96
  %v106 = vunpack.c.l.b16 0
  %v107 = vunpack.c.h.b16 0
  %vm108 = vcmp.ne.s32.totalorder %v104, %v106
  %vm109 = vcmp.ne.s32.totalorder %v105, %v107
  %vm110 = vmpackc.low %vm109, %vm108
  %v111 = vsel %vm103, %v85, 0
  %v112 = vsel %vm110, %v80, 0
  %s113 = scalar_lea.vmem %s1, 4
  %v114 = vld [vmem:[%s113] sm:$0xf]
  %115 = vrot.lane.b32.xlu0 %v73, 16
  %v116 = vpop.permute.xlu0 %115
  %117 = vrot.lane.b32.xlu0 %v74, 16
  %v118 = vpop.permute.xlu0 %117
  %vm119 = vcmask 130048
  %v120 = vsel %vm119, %v116, %v118
  %vm121 = vcmask 130048
  %v123 = vsel %vm121, 0, %v116
  %vm124 = vcmask 31744
  %v126 = vsel %vm124, %v114, 0
  %vm128 = vcmask 1041408
  %v129 = vsel %vm128, %v123, 0
  %v132 = vsel %vm128, %v120, 0
  %134 = vmatpush.bf16.msra.mxu0 0
  %135 = vmatpush.bf16.msra.mxu0 0
  %136 = vmatpush.bf16.msra.mxu0 0
  %137 = vmatpush.bf16.msra.mxu0 0
  %138 = vmatpush.bf16.msra.mxu0 0
  %139 = vmatpush.bf16.msra.mxu0 0
  %140 = vmatpush.bf16.msra.mxu0 0
  %141 = vmatpush.bf16.msra.mxu0 %v129
  %142 = vmatmul.bf16.gmra.mxu0 %v126
  %v143 = vpop.f32.mrf.mxu0
  %v144 = vadd.f32 0.0, %v143
  %v145 = vpop.f32.mrf.mxu0
  %146 = vdwg.mxu0
  %147 = vmatpush.bf16.msra.mxu0 0
  %148 = vmatpush.bf16.msra.mxu0 0
  %149 = vmatpush.bf16.msra.mxu0 0
  %150 = vmatpush.bf16.msra.mxu0 0
  %151 = vmatpush.bf16.msra.mxu0 0
  %152 = vmatpush.bf16.msra.mxu0 0
  %153 = vmatpush.bf16.msra.mxu0 0
  %154 = vmatpush.bf16.msra.mxu0 %v132
  %155 = vmatmul.bf16.gmra.mxu0 %v126
  %v156 = vpop.f32.mrf.mxu0
  %v157 = vadd.f32 0.0, %v156
  %v158 = vpop.f32.mrf.mxu0
  %159 = vdwg.mxu0
  %v161 = vsel %vm124, %v69, 0
  %v164 = vsel %vm128, %v111, 0
  %v167 = vsel %vm128, %v112, 0
  %169 = vmatpush.bf16.msra.mxu0 0
  %170 = vmatpush.bf16.msra.mxu0 0
  %171 = vmatpush.bf16.msra.mxu0 0
  %172 = vmatpush.bf16.msra.mxu0 0
  %173 = vmatpush.bf16.msra.mxu0 0
  %174 = vmatpush.bf16.msra.mxu0 0
  %175 = vmatpush.bf16.msra.mxu0 0
  %176 = vmatpush.bf16.msra.mxu0 %v164
  %177 = vmatmul.bf16.gmra.mxu0 %v161
  %v178 = vpop.f32.mrf.mxu0
  %v179 = vadd.f32 %v144, %v178
  %v180 = vpop.f32.mrf.mxu0
  %181 = vdwg.mxu0
  %182 = vmatpush.bf16.msra.mxu0 0
  %183 = vmatpush.bf16.msra.mxu0 0
  %184 = vmatpush.bf16.msra.mxu0 0
  %185 = vmatpush.bf16.msra.mxu0 0
  %186 = vmatpush.bf16.msra.mxu0 0
  %187 = vmatpush.bf16.msra.mxu0 0
  %188 = vmatpush.bf16.msra.mxu0 0
  %189 = vmatpush.bf16.msra.mxu0 %v167
  %190 = vmatmul.bf16.gmra.mxu0 %v161
  %v191 = vpop.f32.mrf.mxu0
  %v192 = vadd.f32 %v157, %v191
  %v193 = vpop.f32.mrf.mxu0
  %194 = vdwg.mxu0
  %s195 = scalar_lea.vmem %s1, 8
  %v196 = vld [vmem:[%s195] sm:$0xf]
  %197 = vrot.lane.b32.xlu0 %v73, 15
  %v198 = vpop.permute.xlu0 %197
  %199 = vrot.lane.b32.xlu0 %v74, 15
  %v200 = vpop.permute.xlu0 %199
  %vm201 = vcmask 121856
  %v202 = vsel %vm201, %v198, %v200
  %vm204 = vcmask 121856
  %v206 = vsel %vm204, 0, %v198
  %vm208 = vcmp.lt.s32.totalorder %v54, 15
  %vm209 = vcmp.lt.s32.totalorder %v55, 15
  %v210 = vsel %vm208, 1, 0
  %v211 = vsel %vm209, 1, 0
  %vm212 = vcmp.eq.s32.totalorder %v210, 1
  %vm213 = vcmp.eq.s32.totalorder %v211, 1
  %vm214 = vmpackc.low %vm213, %vm212
  %v215 = vsel %vm214, 65537, 0
  %v216 = vperm.slane %v215, 0
  %v217 = vperm.slane %v215, 4
  %v218 = vunpack.c.l.b16 %v216
  %v219 = vunpack.c.h.b16 %v216
  %v220 = vunpack.c.l.b16 0
  %v221 = vunpack.c.h.b16 0
  %vm222 = vcmp.ne.s32.totalorder %v218, %v220
  %vm223 = vcmp.ne.s32.totalorder %v219, %v221
  %vm224 = vmpackc.low %vm223, %vm222
  %v225 = vunpack.c.l.b16 %v217
  %v226 = vunpack.c.h.b16 %v217
  %v227 = vunpack.c.l.b16 0
  %v228 = vunpack.c.h.b16 0
  %vm229 = vcmp.ne.s32.totalorder %v225, %v227
  %vm230 = vcmp.ne.s32.totalorder %v226, %v228
  %vm231 = vmpackc.low %vm230, %vm229
  %v232 = vsel %vm224, %v206, 0
  %v233 = vsel %vm231, %v202, 0
  %v235 = vsel %vm124, %v196, 0
  %v238 = vsel %vm128, %v232, 0
  %v241 = vsel %vm128, %v233, 0
  %243 = vmatpush.bf16.msra.mxu0 0
  %244 = vmatpush.bf16.msra.mxu0 0
  %245 = vmatpush.bf16.msra.mxu0 0
  %246 = vmatpush.bf16.msra.mxu0 0
  %247 = vmatpush.bf16.msra.mxu0 0
  %248 = vmatpush.bf16.msra.mxu0 0
  %249 = vmatpush.bf16.msra.mxu0 0
  %250 = vmatpush.bf16.msra.mxu0 %v238
  %251 = vmatmul.bf16.gmra.mxu0 %v235
  %v252 = vpop.f32.mrf.mxu0
  %v253 = vadd.f32 0.0, %v252
  %v254 = vpop.f32.mrf.mxu0
  %255 = vdwg.mxu0
  %256 = vmatpush.bf16.msra.mxu0 0
  %257 = vmatpush.bf16.msra.mxu0 0
  %258 = vmatpush.bf16.msra.mxu0 0
  %259 = vmatpush.bf16.msra.mxu0 0
  %260 = vmatpush.bf16.msra.mxu0 0
  %261 = vmatpush.bf16.msra.mxu0 0
  %262 = vmatpush.bf16.msra.mxu0 0
  %263 = vmatpush.bf16.msra.mxu0 %v241
  %264 = vmatmul.bf16.gmra.mxu0 %v235
  %v265 = vpop.f32.mrf.mxu0
  %v266 = vadd.f32 0.0, %v265
  %v267 = vpop.f32.mrf.mxu0
  %268 = vdwg.mxu0
  %v269 = vadd.f32 %v179, %v253
  %v270 = vadd.f32 %v192, %v266
  %s271 = scalar_lea.vmem %s1, 12
  %v272 = vld [vmem:[%s271] sm:$0xf]
  %273 = vrot.lane.b32.xlu0 %v73, 1
  %v274 = vpop.permute.xlu0 %273
  %275 = vrot.lane.b32.xlu0 %v74, 1
  %v276 = vpop.permute.xlu0 %275
  %vm277 = vcmask 7168
  %v278 = vsel %vm277, %v274, %v276
  %vm280 = vcmask 7168
  %v282 = vsel %vm280, 0, %v274
  %v284 = vsel %vm103, %v282, 0
  %v285 = vsel %vm110, %v278, 0
  %v287 = vsel %vm124, %v272, 0
  %v290 = vsel %vm128, %v284, 0
  %v293 = vsel %vm128, %v285, 0
  %295 = vmatpush.bf16.msra.mxu0 0
  %296 = vmatpush.bf16.msra.mxu0 0
  %297 = vmatpush.bf16.msra.mxu0 0
  %298 = vmatpush.bf16.msra.mxu0 0
  %299 = vmatpush.bf16.msra.mxu0 0
  %300 = vmatpush.bf16.msra.mxu0 0
  %301 = vmatpush.bf16.msra.mxu0 0
  %302 = vmatpush.bf16.msra.mxu0 %v290
  %303 = vmatmul.bf16.gmra.mxu0 %v287
  %v304 = vpop.f32.mrf.mxu0
  %v305 = vadd.f32 0.0, %v304
  %v306 = vpop.f32.mrf.mxu0
  %307 = vdwg.mxu0
  %308 = vmatpush.bf16.msra.mxu0 0
  %309 = vmatpush.bf16.msra.mxu0 0
  %310 = vmatpush.bf16.msra.mxu0 0
  %311 = vmatpush.bf16.msra.mxu0 0
  %312 = vmatpush.bf16.msra.mxu0 0
  %313 = vmatpush.bf16.msra.mxu0 0
  %314 = vmatpush.bf16.msra.mxu0 0
  %315 = vmatpush.bf16.msra.mxu0 %v293
  %316 = vmatmul.bf16.gmra.mxu0 %v287
  %v317 = vpop.f32.mrf.mxu0
  %v318 = vadd.f32 0.0, %v317
  %v319 = vpop.f32.mrf.mxu0
  %320 = vdwg.mxu0
  %v321 = vadd.f32 %v269, %v305
  %v322 = vadd.f32 %v270, %v318
  %s323 = scalar_lea.vmem %s1, 16
  %v324 = vld [vmem:[%s323] sm:$0xf]
  %v326 = vsel %vm124, %v324, 0
  %v329 = vsel %vm128, %v73, 0
  %v332 = vsel %vm128, %v74, 0
  %334 = vmatpush.bf16.msra.mxu0 0
  %335 = vmatpush.bf16.msra.mxu0 0
  %336 = vmatpush.bf16.msra.mxu0 0
  %337 = vmatpush.bf16.msra.mxu0 0
  %338 = vmatpush.bf16.msra.mxu0 0
  %339 = vmatpush.bf16.msra.mxu0 0
  %340 = vmatpush.bf16.msra.mxu0 0
  %341 = vmatpush.bf16.msra.mxu0 %v329
  %342 = vmatmul.bf16.gmra.mxu0 %v326
  %v343 = vpop.f32.mrf.mxu0
  %v344 = vadd.f32 0.0, %v343
  %v345 = vpop.f32.mrf.mxu0
  %346 = vdwg.mxu0
  %347 = vmatpush.bf16.msra.mxu0 0
  %348 = vmatpush.bf16.msra.mxu0 0
  %349 = vmatpush.bf16.msra.mxu0 0
  %350 = vmatpush.bf16.msra.mxu0 0
  %351 = vmatpush.bf16.msra.mxu0 0
  %352 = vmatpush.bf16.msra.mxu0 0
  %353 = vmatpush.bf16.msra.mxu0 0
  %354 = vmatpush.bf16.msra.mxu0 %v332
  %355 = vmatmul.bf16.gmra.mxu0 %v326
  %v356 = vpop.f32.mrf.mxu0
  %v357 = vadd.f32 0.0, %v356
  %v358 = vpop.f32.mrf.mxu0
  %359 = vdwg.mxu0
  %v360 = vadd.f32 %v321, %v344
  %v361 = vadd.f32 %v322, %v357
  %s362 = scalar_lea.vmem %s1, 20
  %v363 = vld [vmem:[%s362] sm:$0xf]
  %364 = vrot.lane.b32.xlu0 %v73, 127
  %v365 = vpop.permute.xlu0 %364
  %366 = vrot.lane.b32.xlu0 %v74, 127
  %v367 = vpop.permute.xlu0 %366
  %vm368 = vcmask 1039360
  %v369 = vsel %vm368, %v365, %v367
  %vm371 = vcmask 1039360
  %v373 = vsel %vm371, %v367, 0
  %v375 = vsel %vm224, %v369, 0
  %v376 = vsel %vm231, %v373, 0
  %v378 = vsel %vm124, %v363, 0
  %v381 = vsel %vm128, %v375, 0
  %v384 = vsel %vm128, %v376, 0
  %386 = vmatpush.bf16.msra.mxu0 0
  %387 = vmatpush.bf16.msra.mxu0 0
  %388 = vmatpush.bf16.msra.mxu0 0
  %389 = vmatpush.bf16.msra.mxu0 0
  %390 = vmatpush.bf16.msra.mxu0 0
  %391 = vmatpush.bf16.msra.mxu0 0
  %392 = vmatpush.bf16.msra.mxu0 0
  %393 = vmatpush.bf16.msra.mxu0 %v381
  %394 = vmatmul.bf16.gmra.mxu0 %v378
  %v395 = vpop.f32.mrf.mxu0
  %v396 = vadd.f32 0.0, %v395
  %v397 = vpop.f32.mrf.mxu0
  %398 = vdwg.mxu0
  %399 = vmatpush.bf16.msra.mxu0 0
  %400 = vmatpush.bf16.msra.mxu0 0
  %401 = vmatpush.bf16.msra.mxu0 0
  %402 = vmatpush.bf16.msra.mxu0 0
  %403 = vmatpush.bf16.msra.mxu0 0
  %404 = vmatpush.bf16.msra.mxu0 0
  %405 = vmatpush.bf16.msra.mxu0 0
  %406 = vmatpush.bf16.msra.mxu0 %v384
  %407 = vmatmul.bf16.gmra.mxu0 %v378
  %v408 = vpop.f32.mrf.mxu0
  %v409 = vadd.f32 0.0, %v408
  %v410 = vpop.f32.mrf.mxu0
  %411 = vdwg.mxu0
  %v412 = vadd.f32 %v360, %v396
  %v413 = vadd.f32 %v361, %v409
  %s414 = scalar_lea.vmem %s1, 24
  %v415 = vld [vmem:[%s414] sm:$0xf]
  %416 = vrot.lane.b32.xlu0 %v73, 113
  %v417 = vpop.permute.xlu0 %416
  %418 = vrot.lane.b32.xlu0 %v74, 113
  %v419 = vpop.permute.xlu0 %418
  %vm420 = vcmask 924672
  %v421 = vsel %vm420, %v417, %v419
  %vm423 = vcmask 924672
  %v425 = vsel %vm423, %v419, 0
  %v427 = vsel %vm103, %v421, 0
  %v428 = vsel %vm110, %v425, 0
  %v430 = vsel %vm124, %v415, 0
  %v433 = vsel %vm128, %v427, 0
  %v436 = vsel %vm128, %v428, 0
  %438 = vmatpush.bf16.msra.mxu0 0
  %439 = vmatpush.bf16.msra.mxu0 0
  %440 = vmatpush.bf16.msra.mxu0 0
  %441 = vmatpush.bf16.msra.mxu0 0
  %442 = vmatpush.bf16.msra.mxu0 0
  %443 = vmatpush.bf16.msra.mxu0 0
  %444 = vmatpush.bf16.msra.mxu0 0
  %445 = vmatpush.bf16.msra.mxu0 %v433
  %446 = vmatmul.bf16.gmra.mxu0 %v430
  %v447 = vpop.f32.mrf.mxu0
  %v448 = vadd.f32 0.0, %v447
  %v449 = vpop.f32.mrf.mxu0
  %450 = vdwg.mxu0
  %451 = vmatpush.bf16.msra.mxu0 0
  %452 = vmatpush.bf16.msra.mxu0 0
  %453 = vmatpush.bf16.msra.mxu0 0
  %454 = vmatpush.bf16.msra.mxu0 0
  %455 = vmatpush.bf16.msra.mxu0 0
  %456 = vmatpush.bf16.msra.mxu0 0
  %457 = vmatpush.bf16.msra.mxu0 0
  %458 = vmatpush.bf16.msra.mxu0 %v436
  %459 = vmatmul.bf16.gmra.mxu0 %v430
  %v460 = vpop.f32.mrf.mxu0
  %v461 = vadd.f32 0.0, %v460
  %v462 = vpop.f32.mrf.mxu0
  %463 = vdwg.mxu0
  %v464 = vadd.f32 %v412, %v448
  %v465 = vadd.f32 %v413, %v461
  %s466 = scalar_lea.vmem %s1, 28
  %v467 = vld [vmem:[%s466] sm:$0xf]
  %468 = vrot.lane.b32.xlu0 %v73, 112
  %v469 = vpop.permute.xlu0 %468
  %470 = vrot.lane.b32.xlu0 %v74, 112
  %v471 = vpop.permute.xlu0 %470
  %vm472 = vcmask 916480
  %v473 = vsel %vm472, %v469, %v471
  %vm474 = vcmask 916480
  %v476 = vsel %vm474, %v471, 0
  %v478 = vsel %vm124, %v467, 0
  %v481 = vsel %vm128, %v473, 0
  %v483 = vsel %vm128, %v476, 0
  %485 = vmatpush.bf16.msra.mxu0 0
  %486 = vmatpush.bf16.msra.mxu0 0
  %487 = vmatpush.bf16.msra.mxu0 0
  %488 = vmatpush.bf16.msra.mxu0 0
  %489 = vmatpush.bf16.msra.mxu0 0
  %490 = vmatpush.bf16.msra.mxu0 0
  %491 = vmatpush.bf16.msra.mxu0 0
  %492 = vmatpush.bf16.msra.mxu0 %v481
  %493 = vmatmul.bf16.gmra.mxu0 %v478
  %v494 = vpop.f32.mrf.mxu0
  %v495 = vadd.f32 0.0, %v494
  %v496 = vpop.f32.mrf.mxu0
  %497 = vdwg.mxu0
  %498 = vmatpush.bf16.msra.mxu0 0
  %499 = vmatpush.bf16.msra.mxu0 0
  %500 = vmatpush.bf16.msra.mxu0 0
  %501 = vmatpush.bf16.msra.mxu0 0
  %502 = vmatpush.bf16.msra.mxu0 0
  %503 = vmatpush.bf16.msra.mxu0 0
  %504 = vmatpush.bf16.msra.mxu0 0
  %505 = vmatpush.bf16.msra.mxu0 %v483
  %506 = vmatmul.bf16.gmra.mxu0 %v478
  %v507 = vpop.f32.mrf.mxu0
  %v508 = vadd.f32 0.0, %v507
  %v509 = vpop.f32.mrf.mxu0
  %510 = vdwg.mxu0
  %v511 = vadd.f32 %v464, %v495
  %v512 = vadd.f32 %v465, %v508
  %s513 = scalar_lea.vmem %s1, 32
  %v514 = vld [vmem:[%s513] sm:$0xf]
  %515 = vrot.lane.b32.xlu0 %v73, 111
  %v516 = vpop.permute.xlu0 %515
  %517 = vrot.lane.b32.xlu0 %v74, 111
  %v518 = vpop.permute.xlu0 %517
  %vm519 = vcmask 908288
  %v520 = vsel %vm519, %v516, %v518
  %vm522 = vcmask 908288
  %v524 = vsel %vm522, %v518, 0
  %v526 = vsel %vm224, %v520, 0
  %v527 = vsel %vm231, %v524, 0
  %v529 = vsel %vm124, %v514, 0
  %v532 = vsel %vm128, %v526, 0
  %v535 = vsel %vm128, %v527, 0
  %537 = vmatpush.bf16.msra.mxu0 0
  %538 = vmatpush.bf16.msra.mxu0 0
  %539 = vmatpush.bf16.msra.mxu0 0
  %540 = vmatpush.bf16.msra.mxu0 0
  %541 = vmatpush.bf16.msra.mxu0 0
  %542 = vmatpush.bf16.msra.mxu0 0
  %543 = vmatpush.bf16.msra.mxu0 0
  %544 = vmatpush.bf16.msra.mxu0 %v532
  %545 = vmatmul.bf16.gmra.mxu0 %v529
  %v546 = vpop.f32.mrf.mxu0
  %v547 = vadd.f32 0.0, %v546
  %v548 = vpop.f32.mrf.mxu0
  %549 = vdwg.mxu0
  %550 = vmatpush.bf16.msra.mxu0 0
  %551 = vmatpush.bf16.msra.mxu0 0
  %552 = vmatpush.bf16.msra.mxu0 0
  %553 = vmatpush.bf16.msra.mxu0 0
  %554 = vmatpush.bf16.msra.mxu0 0
  %555 = vmatpush.bf16.msra.mxu0 0
  %556 = vmatpush.bf16.msra.mxu0 0
  %557 = vmatpush.bf16.msra.mxu0 %v535
  %558 = vmatmul.bf16.gmra.mxu0 %v529
  %v559 = vpop.f32.mrf.mxu0
  %v560 = vadd.f32 0.0, %v559
  %v561 = vpop.f32.mrf.mxu0
  %562 = vdwg.mxu0
  %v563 = vadd.f32 %v511, %v547
  %v564 = vadd.f32 %v512, %v560
  %566 = vset.pattern.permute.xlu0 0
  %567 = vperm.xlu0 %566, %v56
  %v568 = vpop.permute.xlu0 %567
  %v570 = vadd.f32 %v563, %v568
  %v571 = vadd.f32 %v564, %v568
  %v572 = vmax.f32 %v570, 0.0
  %v573 = vmax.f32 %v571, 0.0
  %v574 = vpack.c.bf16 %v573, %v572
  %v575 = vld [vmem:[%s3] sm:$0xf]
  %v577 = vunpack.c.l.b16 %v574
  %v578 = vunpack.c.h.b16 %v574
  %v579 = vpack.c.b16 %v577, %v577
  %v580 = vpack.c.b16 %v578, %v578
  %581 = vrot.lane.b32.xlu0 %v579, 34
  %v582 = vpop.permute.xlu0 %581
  %583 = vrot.lane.b32.xlu0 %v580, 34
  %v584 = vpop.permute.xlu0 %583
  %vm585 = vcmask 277504
  %v586 = vsel %vm585, %v582, %v584
  %vm588 = vcmask 277504
  %v590 = vsel %vm588, 0, %v582
  %vm592 = vcmp.ge.s32.totalorder %v54, 2
  %vm593 = vcmp.ge.s32.totalorder %v55, 2
  %v594 = vsel %vm592, 1, 0
  %v595 = vsel %vm593, 1, 0
  %vm596 = vcmp.eq.s32.totalorder %v594, 1
  %vm597 = vcmp.eq.s32.totalorder %v595, 1
  %vm598 = vmpackc.low %vm597, %vm596
  %v599 = vsel %vm598, 65537, 0
  %v600 = vperm.slane %v599, 0
  %v601 = vperm.slane %v599, 4
  %v602 = vunpack.c.l.b16 %v600
  %v603 = vunpack.c.h.b16 %v600
  %v604 = vunpack.c.l.b16 0
  %v605 = vunpack.c.h.b16 0
  %vm606 = vcmp.ne.s32.totalorder %v602, %v604
  %vm607 = vcmp.ne.s32.totalorder %v603, %v605
  %vm608 = vmpackc.low %vm607, %vm606
  %v609 = vunpack.c.l.b16 %v601
  %v610 = vunpack.c.h.b16 %v601
  %v611 = vunpack.c.l.b16 0
  %v612 = vunpack.c.h.b16 0
  %vm613 = vcmp.ne.s32.totalorder %v609, %v611
  %vm614 = vcmp.ne.s32.totalorder %v610, %v612
  %vm615 = vmpackc.low %vm614, %vm613
  %v616 = vsel %vm608, %v590, 0
  %v617 = vsel %vm615, %v586, 0
  %s618 = scalar_lea.vmem %s3, 4
  %v619 = vld [vmem:[%s618] sm:$0xf]
  %620 = vrot.lane.b32.xlu0 %v579, 33
  %v621 = vpop.permute.xlu0 %620
  %622 = vrot.lane.b32.xlu0 %v580, 33
  %v623 = vpop.permute.xlu0 %622
  %vm624 = vcmask 269312
  %v625 = vsel %vm624, %v621, %v623
  %vm627 = vcmask 269312
  %v629 = vsel %vm627, 0, %v621
  %v631 = vsel %vm103, %v629, 0
  %v632 = vsel %vm110, %v625, 0
  %vm633 = vcmask 64512
  %v635 = vsel %vm633, %v619, 0
  %vm637 = vcmask 1043456
  %v639 = vsel %vm637, %v631, 0
  %v642 = vsel %vm637, %v632, 0
  %644 = vmatpush.bf16.msra.mxu0 0
  %645 = vmatpush.bf16.msra.mxu0 0
  %646 = vmatpush.bf16.msra.mxu0 0
  %647 = vmatpush.bf16.msra.mxu0 0
  %648 = vmatpush.bf16.msra.mxu0 0
  %649 = vmatpush.bf16.msra.mxu0 0
  %650 = vmatpush.bf16.msra.mxu0 0
  %651 = vmatpush.bf16.msra.mxu0 %v639
  %652 = vmatmul.bf16.gmra.mxu0 %v635
  %v653 = vpop.f32.mrf.mxu0
  %v654 = vadd.f32 0.0, %v653
  %v655 = vpop.f32.mrf.mxu0
  %656 = vdwg.mxu0
  %657 = vmatpush.bf16.msra.mxu0 0
  %658 = vmatpush.bf16.msra.mxu0 0
  %659 = vmatpush.bf16.msra.mxu0 0
  %660 = vmatpush.bf16.msra.mxu0 0
  %661 = vmatpush.bf16.msra.mxu0 0
  %662 = vmatpush.bf16.msra.mxu0 0
  %663 = vmatpush.bf16.msra.mxu0 0
  %664 = vmatpush.bf16.msra.mxu0 %v642
  %665 = vmatmul.bf16.gmra.mxu0 %v635
  %v666 = vpop.f32.mrf.mxu0
  %v667 = vadd.f32 0.0, %v666
  %v668 = vpop.f32.mrf.mxu0
  %669 = vdwg.mxu0
  %v671 = vsel %vm633, %v575, 0
  %v674 = vsel %vm637, %v616, 0
  %v677 = vsel %vm637, %v617, 0
  %679 = vmatpush.bf16.msra.mxu0 0
  %680 = vmatpush.bf16.msra.mxu0 0
  %681 = vmatpush.bf16.msra.mxu0 0
  %682 = vmatpush.bf16.msra.mxu0 0
  %683 = vmatpush.bf16.msra.mxu0 0
  %684 = vmatpush.bf16.msra.mxu0 0
  %685 = vmatpush.bf16.msra.mxu0 0
  %686 = vmatpush.bf16.msra.mxu0 %v674
  %687 = vmatmul.bf16.gmra.mxu0 %v671
  %v688 = vpop.f32.mrf.mxu0
  %v689 = vadd.f32 %v654, %v688
  %v690 = vpop.f32.mrf.mxu0
  %691 = vdwg.mxu0
  %692 = vmatpush.bf16.msra.mxu0 0
  %693 = vmatpush.bf16.msra.mxu0 0
  %694 = vmatpush.bf16.msra.mxu0 0
  %695 = vmatpush.bf16.msra.mxu0 0
  %696 = vmatpush.bf16.msra.mxu0 0
  %697 = vmatpush.bf16.msra.mxu0 0
  %698 = vmatpush.bf16.msra.mxu0 0
  %699 = vmatpush.bf16.msra.mxu0 %v677
  %700 = vmatmul.bf16.gmra.mxu0 %v671
  %v701 = vpop.f32.mrf.mxu0
  %v702 = vadd.f32 %v667, %v701
  %v703 = vpop.f32.mrf.mxu0
  %704 = vdwg.mxu0
  %s705 = scalar_lea.vmem %s3, 8
  %v706 = vld [vmem:[%s705] sm:$0xf]
  %707 = vrot.lane.b32.xlu0 %v579, 32
  %v708 = vpop.permute.xlu0 %707
  %709 = vrot.lane.b32.xlu0 %v580, 32
  %v710 = vpop.permute.xlu0 %709
  %vm711 = vcmask 261120
  %v712 = vsel %vm711, %v708, %v710
  %vm713 = vcmask 261120
  %v715 = vsel %vm713, 0, %v708
  %v717 = vsel %vm633, %v706, 0
  %v719 = vsel %vm637, %v715, 0
  %v722 = vsel %vm637, %v712, 0
  %724 = vmatpush.bf16.msra.mxu0 0
  %725 = vmatpush.bf16.msra.mxu0 0
  %726 = vmatpush.bf16.msra.mxu0 0
  %727 = vmatpush.bf16.msra.mxu0 0
  %728 = vmatpush.bf16.msra.mxu0 0
  %729 = vmatpush.bf16.msra.mxu0 0
  %730 = vmatpush.bf16.msra.mxu0 0
  %731 = vmatpush.bf16.msra.mxu0 %v719
  %732 = vmatmul.bf16.gmra.mxu0 %v717
  %v733 = vpop.f32.mrf.mxu0
  %v734 = vadd.f32 0.0, %v733
  %v735 = vpop.f32.mrf.mxu0
  %736 = vdwg.mxu0
  %737 = vmatpush.bf16.msra.mxu0 0
  %738 = vmatpush.bf16.msra.mxu0 0
  %739 = vmatpush.bf16.msra.mxu0 0
  %740 = vmatpush.bf16.msra.mxu0 0
  %741 = vmatpush.bf16.msra.mxu0 0
  %742 = vmatpush.bf16.msra.mxu0 0
  %743 = vmatpush.bf16.msra.mxu0 0
  %744 = vmatpush.bf16.msra.mxu0 %v722
  %745 = vmatmul.bf16.gmra.mxu0 %v717
  %v746 = vpop.f32.mrf.mxu0
  %v747 = vadd.f32 0.0, %v746
  %v748 = vpop.f32.mrf.mxu0
  %749 = vdwg.mxu0
  %v750 = vadd.f32 %v689, %v734
  %v751 = vadd.f32 %v702, %v747
  %s752 = scalar_lea.vmem %s3, 12
  %v753 = vld [vmem:[%s752] sm:$0xf]
  %754 = vrot.lane.b32.xlu0 %v579, 31
  %v755 = vpop.permute.xlu0 %754
  %756 = vrot.lane.b32.xlu0 %v580, 31
  %v757 = vpop.permute.xlu0 %756
  %vm758 = vcmask 252928
  %v759 = vsel %vm758, %v755, %v757
  %vm761 = vcmask 252928
  %v763 = vsel %vm761, 0, %v755
  %v765 = vsel %vm224, %v763, 0
  %v766 = vsel %vm231, %v759, 0
  %v768 = vsel %vm633, %v753, 0
  %v771 = vsel %vm637, %v765, 0
  %v774 = vsel %vm637, %v766, 0
  %776 = vmatpush.bf16.msra.mxu0 0
  %777 = vmatpush.bf16.msra.mxu0 0
  %778 = vmatpush.bf16.msra.mxu0 0
  %779 = vmatpush.bf16.msra.mxu0 0
  %780 = vmatpush.bf16.msra.mxu0 0
  %781 = vmatpush.bf16.msra.mxu0 0
  %782 = vmatpush.bf16.msra.mxu0 0
  %783 = vmatpush.bf16.msra.mxu0 %v771
  %784 = vmatmul.bf16.gmra.mxu0 %v768
  %v785 = vpop.f32.mrf.mxu0
  %v786 = vadd.f32 0.0, %v785
  %v787 = vpop.f32.mrf.mxu0
  %788 = vdwg.mxu0
  %789 = vmatpush.bf16.msra.mxu0 0
  %790 = vmatpush.bf16.msra.mxu0 0
  %791 = vmatpush.bf16.msra.mxu0 0
  %792 = vmatpush.bf16.msra.mxu0 0
  %793 = vmatpush.bf16.msra.mxu0 0
  %794 = vmatpush.bf16.msra.mxu0 0
  %795 = vmatpush.bf16.msra.mxu0 0
  %796 = vmatpush.bf16.msra.mxu0 %v774
  %797 = vmatmul.bf16.gmra.mxu0 %v768
  %v798 = vpop.f32.mrf.mxu0
  %v799 = vadd.f32 0.0, %v798
  %v800 = vpop.f32.mrf.mxu0
  %801 = vdwg.mxu0
  %v802 = vadd.f32 %v750, %v786
  %v803 = vadd.f32 %v751, %v799
  %s804 = scalar_lea.vmem %s3, 16
  %v805 = vld [vmem:[%s804] sm:$0xf]
  %806 = vrot.lane.b32.xlu0 %v579, 30
  %v807 = vpop.permute.xlu0 %806
  %808 = vrot.lane.b32.xlu0 %v580, 30
  %v809 = vpop.permute.xlu0 %808
  %vm810 = vcmask 244736
  %v811 = vsel %vm810, %v807, %v809
  %vm813 = vcmask 244736
  %v815 = vsel %vm813, 0, %v807
  %vm817 = vcmp.lt.s32.totalorder %v54, 14
  %vm818 = vcmp.lt.s32.totalorder %v55, 14
  %v819 = vsel %vm817, 1, 0
  %v820 = vsel %vm818, 1, 0
  %vm821 = vcmp.eq.s32.totalorder %v819, 1
  %vm822 = vcmp.eq.s32.totalorder %v820, 1
  %vm823 = vmpackc.low %vm822, %vm821
  %v824 = vsel %vm823, 65537, 0
  %v825 = vperm.slane %v824, 0
  %v826 = vperm.slane %v824, 4
  %v827 = vunpack.c.l.b16 %v825
  %v828 = vunpack.c.h.b16 %v825
  %v829 = vunpack.c.l.b16 0
  %v830 = vunpack.c.h.b16 0
  %vm831 = vcmp.ne.s32.totalorder %v827, %v829
  %vm832 = vcmp.ne.s32.totalorder %v828, %v830
  %vm833 = vmpackc.low %vm832, %vm831
  %v834 = vunpack.c.l.b16 %v826
  %v835 = vunpack.c.h.b16 %v826
  %v836 = vunpack.c.l.b16 0
  %v837 = vunpack.c.h.b16 0
  %vm838 = vcmp.ne.s32.totalorder %v834, %v836
  %vm839 = vcmp.ne.s32.totalorder %v835, %v837
  %vm840 = vmpackc.low %vm839, %vm838
  %v841 = vsel %vm833, %v815, 0
  %v842 = vsel %vm840, %v811, 0
  %v844 = vsel %vm633, %v805, 0
  %v847 = vsel %vm637, %v841, 0
  %v850 = vsel %vm637, %v842, 0
  %852 = vmatpush.bf16.msra.mxu0 0
  %853 = vmatpush.bf16.msra.mxu0 0
  %854 = vmatpush.bf16.msra.mxu0 0
  %855 = vmatpush.bf16.msra.mxu0 0
  %856 = vmatpush.bf16.msra.mxu0 0
  %857 = vmatpush.bf16.msra.mxu0 0
  %858 = vmatpush.bf16.msra.mxu0 0
  %859 = vmatpush.bf16.msra.mxu0 %v847
  %860 = vmatmul.bf16.gmra.mxu0 %v844
  %v861 = vpop.f32.mrf.mxu0
  %v862 = vadd.f32 0.0, %v861
  %v863 = vpop.f32.mrf.mxu0
  %864 = vdwg.mxu0
  %865 = vmatpush.bf16.msra.mxu0 0
  %866 = vmatpush.bf16.msra.mxu0 0
  %867 = vmatpush.bf16.msra.mxu0 0
  %868 = vmatpush.bf16.msra.mxu0 0
  %869 = vmatpush.bf16.msra.mxu0 0
  %870 = vmatpush.bf16.msra.mxu0 0
  %871 = vmatpush.bf16.msra.mxu0 0
  %872 = vmatpush.bf16.msra.mxu0 %v850
  %873 = vmatmul.bf16.gmra.mxu0 %v844
  %v874 = vpop.f32.mrf.mxu0
  %v875 = vadd.f32 0.0, %v874
  %v876 = vpop.f32.mrf.mxu0
  %877 = vdwg.mxu0
  %v878 = vadd.f32 %v802, %v862
  %v879 = vadd.f32 %v803, %v875
  %s880 = scalar_lea.vmem %s3, 20
  %v881 = vld [vmem:[%s880] sm:$0xf]
  %882 = vrot.lane.b32.xlu0 %v579, 18
  %v883 = vpop.permute.xlu0 %882
  %884 = vrot.lane.b32.xlu0 %v580, 18
  %v885 = vpop.permute.xlu0 %884
  %vm886 = vcmask 146432
  %v887 = vsel %vm886, %v883, %v885
  %vm889 = vcmask 146432
  %v891 = vsel %vm889, 0, %v883
  %v893 = vsel %vm608, %v891, 0
  %v894 = vsel %vm615, %v887, 0
  %v896 = vsel %vm633, %v881, 0
  %v899 = vsel %vm637, %v893, 0
  %v902 = vsel %vm637, %v894, 0
  %904 = vmatpush.bf16.msra.mxu0 0
  %905 = vmatpush.bf16.msra.mxu0 0
  %906 = vmatpush.bf16.msra.mxu0 0
  %907 = vmatpush.bf16.msra.mxu0 0
  %908 = vmatpush.bf16.msra.mxu0 0
  %909 = vmatpush.bf16.msra.mxu0 0
  %910 = vmatpush.bf16.msra.mxu0 0
  %911 = vmatpush.bf16.msra.mxu0 %v899
  %912 = vmatmul.bf16.gmra.mxu0 %v896
  %v913 = vpop.f32.mrf.mxu0
  %v914 = vadd.f32 0.0, %v913
  %v915 = vpop.f32.mrf.mxu0
  %916 = vdwg.mxu0
  %917 = vmatpush.bf16.msra.mxu0 0
  %918 = vmatpush.bf16.msra.mxu0 0
  %919 = vmatpush.bf16.msra.mxu0 0
  %920 = vmatpush.bf16.msra.mxu0 0
  %921 = vmatpush.bf16.msra.mxu0 0
  %922 = vmatpush.bf16.msra.mxu0 0
  %923 = vmatpush.bf16.msra.mxu0 0
  %924 = vmatpush.bf16.msra.mxu0 %v902
  %925 = vmatmul.bf16.gmra.mxu0 %v896
  %v926 = vpop.f32.mrf.mxu0
  %v927 = vadd.f32 0.0, %v926
  %v928 = vpop.f32.mrf.mxu0
  %929 = vdwg.mxu0
  %v930 = vadd.f32 %v878, %v914
  %v931 = vadd.f32 %v879, %v927
  %s932 = scalar_lea.vmem %s3, 24
  %v933 = vld [vmem:[%s932] sm:$0xf]
  %934 = vrot.lane.b32.xlu0 %v579, 17
  %v935 = vpop.permute.xlu0 %934
  %936 = vrot.lane.b32.xlu0 %v580, 17
  %v937 = vpop.permute.xlu0 %936
  %v938 = vsel %vm79, %v935, %v937
  %v941 = vsel %vm82, 0, %v935
  %v943 = vsel %vm103, %v941, 0
  %v944 = vsel %vm110, %v938, 0
  %v946 = vsel %vm633, %v933, 0
  %v949 = vsel %vm637, %v943, 0
  %v952 = vsel %vm637, %v944, 0
  %954 = vmatpush.bf16.msra.mxu0 0
  %955 = vmatpush.bf16.msra.mxu0 0
  %956 = vmatpush.bf16.msra.mxu0 0
  %957 = vmatpush.bf16.msra.mxu0 0
  %958 = vmatpush.bf16.msra.mxu0 0
  %959 = vmatpush.bf16.msra.mxu0 0
  %960 = vmatpush.bf16.msra.mxu0 0
  %961 = vmatpush.bf16.msra.mxu0 %v949
  %962 = vmatmul.bf16.gmra.mxu0 %v946
  %v963 = vpop.f32.mrf.mxu0
  %v964 = vadd.f32 0.0, %v963
  %v965 = vpop.f32.mrf.mxu0
  %966 = vdwg.mxu0
  %967 = vmatpush.bf16.msra.mxu0 0
  %968 = vmatpush.bf16.msra.mxu0 0
  %969 = vmatpush.bf16.msra.mxu0 0
  %970 = vmatpush.bf16.msra.mxu0 0
  %971 = vmatpush.bf16.msra.mxu0 0
  %972 = vmatpush.bf16.msra.mxu0 0
  %973 = vmatpush.bf16.msra.mxu0 0
  %974 = vmatpush.bf16.msra.mxu0 %v952
  %975 = vmatmul.bf16.gmra.mxu0 %v946
  %v976 = vpop.f32.mrf.mxu0
  %v977 = vadd.f32 0.0, %v976
  %v978 = vpop.f32.mrf.mxu0
  %979 = vdwg.mxu0
  %v980 = vadd.f32 %v930, %v964
  %v981 = vadd.f32 %v931, %v977
  %s982 = scalar_lea.vmem %s3, 28
  %v983 = vld [vmem:[%s982] sm:$0xf]
  %984 = vrot.lane.b32.xlu0 %v579, 16
  %v985 = vpop.permute.xlu0 %984
  %986 = vrot.lane.b32.xlu0 %v580, 16
  %v987 = vpop.permute.xlu0 %986
  %v988 = vsel %vm119, %v985, %v987
  %v990 = vsel %vm121, 0, %v985
  %v992 = vsel %vm633, %v983, 0
  %v994 = vsel %vm637, %v990, 0
  %v997 = vsel %vm637, %v988, 0
  %999 = vmatpush.bf16.msra.mxu0 0
  %1000 = vmatpush.bf16.msra.mxu0 0
  %1001 = vmatpush.bf16.msra.mxu0 0
  %1002 = vmatpush.bf16.msra.mxu0 0
  %1003 = vmatpush.bf16.msra.mxu0 0
  %1004 = vmatpush.bf16.msra.mxu0 0
  %1005 = vmatpush.bf16.msra.mxu0 0
  %1006 = vmatpush.bf16.msra.mxu0 %v994
  %1007 = vmatmul.bf16.gmra.mxu0 %v992
  %v1008 = vpop.f32.mrf.mxu0
  %v1009 = vadd.f32 0.0, %v1008
  %v1010 = vpop.f32.mrf.mxu0
  %1011 = vdwg.mxu0
  %1012 = vmatpush.bf16.msra.mxu0 0
  %1013 = vmatpush.bf16.msra.mxu0 0
  %1014 = vmatpush.bf16.msra.mxu0 0
  %1015 = vmatpush.bf16.msra.mxu0 0
  %1016 = vmatpush.bf16.msra.mxu0 0
  %1017 = vmatpush.bf16.msra.mxu0 0
  %1018 = vmatpush.bf16.msra.mxu0 0
  %1019 = vmatpush.bf16.msra.mxu0 %v997
  %1020 = vmatmul.bf16.gmra.mxu0 %v992
  %v1021 = vpop.f32.mrf.mxu0
  %v1022 = vadd.f32 0.0, %v1021
  %v1023 = vpop.f32.mrf.mxu0
  %1024 = vdwg.mxu0
  %v1025 = vadd.f32 %v980, %v1009
  %v1026 = vadd.f32 %v981, %v1022
  %s1027 = scalar_lea.vmem %s3, 32
  %v1028 = vld [vmem:[%s1027] sm:$0xf]
  %1029 = vrot.lane.b32.xlu0 %v579, 15
  %v1030 = vpop.permute.xlu0 %1029
  %1031 = vrot.lane.b32.xlu0 %v580, 15
  %v1032 = vpop.permute.xlu0 %1031
  %v1033 = vsel %vm201, %v1030, %v1032
  %v1036 = vsel %vm204, 0, %v1030
  %v1038 = vsel %vm224, %v1036, 0
  %v1039 = vsel %vm231, %v1033, 0
  %v1041 = vsel %vm633, %v1028, 0
  %v1044 = vsel %vm637, %v1038, 0
  %v1047 = vsel %vm637, %v1039, 0
  %1049 = vmatpush.bf16.msra.mxu0 0
  %1050 = vmatpush.bf16.msra.mxu0 0
  %1051 = vmatpush.bf16.msra.mxu0 0
  %1052 = vmatpush.bf16.msra.mxu0 0
  %1053 = vmatpush.bf16.msra.mxu0 0
  %1054 = vmatpush.bf16.msra.mxu0 0
  %1055 = vmatpush.bf16.msra.mxu0 0
  %1056 = vmatpush.bf16.msra.mxu0 %v1044
  %1057 = vmatmul.bf16.gmra.mxu0 %v1041
  %v1058 = vpop.f32.mrf.mxu0
  %v1059 = vadd.f32 0.0, %v1058
  %v1060 = vpop.f32.mrf.mxu0
  %1061 = vdwg.mxu0
  %1062 = vmatpush.bf16.msra.mxu0 0
  %1063 = vmatpush.bf16.msra.mxu0 0
  %1064 = vmatpush.bf16.msra.mxu0 0
  %1065 = vmatpush.bf16.msra.mxu0 0
  %1066 = vmatpush.bf16.msra.mxu0 0
  %1067 = vmatpush.bf16.msra.mxu0 0
  %1068 = vmatpush.bf16.msra.mxu0 0
  %1069 = vmatpush.bf16.msra.mxu0 %v1047
  %1070 = vmatmul.bf16.gmra.mxu0 %v1041
  %v1071 = vpop.f32.mrf.mxu0
  %v1072 = vadd.f32 0.0, %v1071
  %v1073 = vpop.f32.mrf.mxu0
  %1074 = vdwg.mxu0
  %v1075 = vadd.f32 %v1025, %v1059
  %v1076 = vadd.f32 %v1026, %v1072
  %s1077 = scalar_lea.vmem %s3, 36
  %v1078 = vld [vmem:[%s1077] sm:$0xf]
  %1079 = vrot.lane.b32.xlu0 %v579, 14
  %v1080 = vpop.permute.xlu0 %1079
  %1081 = vrot.lane.b32.xlu0 %v580, 14
  %v1082 = vpop.permute.xlu0 %1081
  %vm1083 = vcmask 113664
  %v1084 = vsel %vm1083, %v1080, %v1082
  %vm1086 = vcmask 113664
  %v1088 = vsel %vm1086, 0, %v1080
  %v1090 = vsel %vm833, %v1088, 0
  %v1091 = vsel %vm840, %v1084, 0
  %v1093 = vsel %vm633, %v1078, 0
  %v1096 = vsel %vm637, %v1090, 0
  %v1099 = vsel %vm637, %v1091, 0
  %1101 = vmatpush.bf16.msra.mxu0 0
  %1102 = vmatpush.bf16.msra.mxu0 0
  %1103 = vmatpush.bf16.msra.mxu0 0
  %1104 = vmatpush.bf16.msra.mxu0 0
  %1105 = vmatpush.bf16.msra.mxu0 0
  %1106 = vmatpush.bf16.msra.mxu0 0
  %1107 = vmatpush.bf16.msra.mxu0 0
  %1108 = vmatpush.bf16.msra.mxu0 %v1096
  %1109 = vmatmul.bf16.gmra.mxu0 %v1093
  %v1110 = vpop.f32.mrf.mxu0
  %v1111 = vadd.f32 0.0, %v1110
  %v1112 = vpop.f32.mrf.mxu0
  %1113 = vdwg.mxu0
  %1114 = vmatpush.bf16.msra.mxu0 0
  %1115 = vmatpush.bf16.msra.mxu0 0
  %1116 = vmatpush.bf16.msra.mxu0 0
  %1117 = vmatpush.bf16.msra.mxu0 0
  %1118 = vmatpush.bf16.msra.mxu0 0
  %1119 = vmatpush.bf16.msra.mxu0 0
  %1120 = vmatpush.bf16.msra.mxu0 0
  %1121 = vmatpush.bf16.msra.mxu0 %v1099
  %1122 = vmatmul.bf16.gmra.mxu0 %v1093
  %v1123 = vpop.f32.mrf.mxu0
  %v1124 = vadd.f32 0.0, %v1123
  %v1125 = vpop.f32.mrf.mxu0
  %1126 = vdwg.mxu0
  %v1127 = vadd.f32 %v1075, %v1111
  %v1128 = vadd.f32 %v1076, %v1124
  %s1129 = scalar_lea.vmem %s3, 40
  %v1130 = vld [vmem:[%s1129] sm:$0xf]
  %1131 = vrot.lane.b32.xlu0 %v579, 2
  %v1132 = vpop.permute.xlu0 %1131
  %1133 = vrot.lane.b32.xlu0 %v580, 2
  %v1134 = vpop.permute.xlu0 %1133
  %vm1135 = vcmask 15360
  %v1136 = vsel %vm1135, %v1132, %v1134
  %vm1138 = vcmask 15360
  %v1140 = vsel %vm1138, 0, %v1132
  %v1142 = vsel %vm608, %v1140, 0
  %v1143 = vsel %vm615, %v1136, 0
  %v1145 = vsel %vm633, %v1130, 0
  %v1148 = vsel %vm637, %v1142, 0
  %v1151 = vsel %vm637, %v1143, 0
  %1153 = vmatpush.bf16.msra.mxu0 0
  %1154 = vmatpush.bf16.msra.mxu0 0
  %1155 = vmatpush.bf16.msra.mxu0 0
  %1156 = vmatpush.bf16.msra.mxu0 0
  %1157 = vmatpush.bf16.msra.mxu0 0
  %1158 = vmatpush.bf16.msra.mxu0 0
  %1159 = vmatpush.bf16.msra.mxu0 0
  %1160 = vmatpush.bf16.msra.mxu0 %v1148
  %1161 = vmatmul.bf16.gmra.mxu0 %v1145
  %v1162 = vpop.f32.mrf.mxu0
  %v1163 = vadd.f32 0.0, %v1162
  %v1164 = vpop.f32.mrf.mxu0
  %1165 = vdwg.mxu0
  %1166 = vmatpush.bf16.msra.mxu0 0
  %1167 = vmatpush.bf16.msra.mxu0 0
  %1168 = vmatpush.bf16.msra.mxu0 0
  %1169 = vmatpush.bf16.msra.mxu0 0
  %1170 = vmatpush.bf16.msra.mxu0 0
  %1171 = vmatpush.bf16.msra.mxu0 0
  %1172 = vmatpush.bf16.msra.mxu0 0
  %1173 = vmatpush.bf16.msra.mxu0 %v1151
  %1174 = vmatmul.bf16.gmra.mxu0 %v1145
  %v1175 = vpop.f32.mrf.mxu0
  %v1176 = vadd.f32 0.0, %v1175
  %v1177 = vpop.f32.mrf.mxu0
  %1178 = vdwg.mxu0
  %v1179 = vadd.f32 %v1127, %v1163
  %v1180 = vadd.f32 %v1128, %v1176
  %s1181 = scalar_lea.vmem %s3, 44
  %v1182 = vld [vmem:[%s1181] sm:$0xf]
  %1183 = vrot.lane.b32.xlu0 %v579, 1
  %v1184 = vpop.permute.xlu0 %1183
  %1185 = vrot.lane.b32.xlu0 %v580, 1
  %v1186 = vpop.permute.xlu0 %1185
  %v1187 = vsel %vm277, %v1184, %v1186
  %v1190 = vsel %vm280, 0, %v1184
  %v1192 = vsel %vm103, %v1190, 0
  %v1193 = vsel %vm110, %v1187, 0
  %v1195 = vsel %vm633, %v1182, 0
  %v1198 = vsel %vm637, %v1192, 0
  %v1201 = vsel %vm637, %v1193, 0
  %1203 = vmatpush.bf16.msra.mxu0 0
  %1204 = vmatpush.bf16.msra.mxu0 0
  %1205 = vmatpush.bf16.msra.mxu0 0
  %1206 = vmatpush.bf16.msra.mxu0 0
  %1207 = vmatpush.bf16.msra.mxu0 0
  %1208 = vmatpush.bf16.msra.mxu0 0
  %1209 = vmatpush.bf16.msra.mxu0 0
  %1210 = vmatpush.bf16.msra.mxu0 %v1198
  %1211 = vmatmul.bf16.gmra.mxu0 %v1195
  %v1212 = vpop.f32.mrf.mxu0
  %v1213 = vadd.f32 0.0, %v1212
  %v1214 = vpop.f32.mrf.mxu0
  %1215 = vdwg.mxu0
  %1216 = vmatpush.bf16.msra.mxu0 0
  %1217 = vmatpush.bf16.msra.mxu0 0
  %1218 = vmatpush.bf16.msra.mxu0 0
  %1219 = vmatpush.bf16.msra.mxu0 0
  %1220 = vmatpush.bf16.msra.mxu0 0
  %1221 = vmatpush.bf16.msra.mxu0 0
  %1222 = vmatpush.bf16.msra.mxu0 0
  %1223 = vmatpush.bf16.msra.mxu0 %v1201
  %1224 = vmatmul.bf16.gmra.mxu0 %v1195
  %v1225 = vpop.f32.mrf.mxu0
  %v1226 = vadd.f32 0.0, %v1225
  %v1227 = vpop.f32.mrf.mxu0
  %1228 = vdwg.mxu0
  %v1229 = vadd.f32 %v1179, %v1213
  %v1230 = vadd.f32 %v1180, %v1226
  %s1231 = scalar_lea.vmem %s3, 48
  %v1232 = vld [vmem:[%s1231] sm:$0xf]
  %v1234 = vsel %vm633, %v1232, 0
  %v1237 = vsel %vm637, %v579, 0
  %v1240 = vsel %vm637, %v580, 0
  %1242 = vmatpush.bf16.msra.mxu0 0
  %1243 = vmatpush.bf16.msra.mxu0 0
  %1244 = vmatpush.bf16.msra.mxu0 0
  %1245 = vmatpush.bf16.msra.mxu0 0
  %1246 = vmatpush.bf16.msra.mxu0 0
  %1247 = vmatpush.bf16.msra.mxu0 0
  %1248 = vmatpush.bf16.msra.mxu0 0
  %1249 = vmatpush.bf16.msra.mxu0 %v1237
  %1250 = vmatmul.bf16.gmra.mxu0 %v1234
  %v1251 = vpop.f32.mrf.mxu0
  %v1252 = vadd.f32 0.0, %v1251
  %v1253 = vpop.f32.mrf.mxu0
  %1254 = vdwg.mxu0
  %1255 = vmatpush.bf16.msra.mxu0 0
  %1256 = vmatpush.bf16.msra.mxu0 0
  %1257 = vmatpush.bf16.msra.mxu0 0
  %1258 = vmatpush.bf16.msra.mxu0 0
  %1259 = vmatpush.bf16.msra.mxu0 0
  %1260 = vmatpush.bf16.msra.mxu0 0
  %1261 = vmatpush.bf16.msra.mxu0 0
  %1262 = vmatpush.bf16.msra.mxu0 %v1240
  %1263 = vmatmul.bf16.gmra.mxu0 %v1234
  %v1264 = vpop.f32.mrf.mxu0
  %v1265 = vadd.f32 0.0, %v1264
  %v1266 = vpop.f32.mrf.mxu0
  %1267 = vdwg.mxu0
  %v1268 = vadd.f32 %v1229, %v1252
  %v1269 = vadd.f32 %v1230, %v1265
  %s1270 = scalar_lea.vmem %s3, 52
  %v1271 = vld [vmem:[%s1270] sm:$0xf]
  %1272 = vrot.lane.b32.xlu0 %v579, 127
  %v1273 = vpop.permute.xlu0 %1272
  %1274 = vrot.lane.b32.xlu0 %v580, 127
  %v1275 = vpop.permute.xlu0 %1274
  %v1276 = vsel %vm368, %v1273, %v1275
  %v1279 = vsel %vm371, %v1275, 0
  %v1281 = vsel %vm224, %v1276, 0
  %v1282 = vsel %vm231, %v1279, 0
  %v1284 = vsel %vm633, %v1271, 0
  %v1287 = vsel %vm637, %v1281, 0
  %v1290 = vsel %vm637, %v1282, 0
  %1292 = vmatpush.bf16.msra.mxu0 0
  %1293 = vmatpush.bf16.msra.mxu0 0
  %1294 = vmatpush.bf16.msra.mxu0 0
  %1295 = vmatpush.bf16.msra.mxu0 0
  %1296 = vmatpush.bf16.msra.mxu0 0
  %1297 = vmatpush.bf16.msra.mxu0 0
  %1298 = vmatpush.bf16.msra.mxu0 0
  %1299 = vmatpush.bf16.msra.mxu0 %v1287
  %1300 = vmatmul.bf16.gmra.mxu0 %v1284
  %v1301 = vpop.f32.mrf.mxu0
  %v1302 = vadd.f32 0.0, %v1301
  %v1303 = vpop.f32.mrf.mxu0
  %1304 = vdwg.mxu0
  %1305 = vmatpush.bf16.msra.mxu0 0
  %1306 = vmatpush.bf16.msra.mxu0 0
  %1307 = vmatpush.bf16.msra.mxu0 0
  %1308 = vmatpush.bf16.msra.mxu0 0
  %1309 = vmatpush.bf16.msra.mxu0 0
  %1310 = vmatpush.bf16.msra.mxu0 0
  %1311 = vmatpush.bf16.msra.mxu0 0
  %1312 = vmatpush.bf16.msra.mxu0 %v1290
  %1313 = vmatmul.bf16.gmra.mxu0 %v1284
  %v1314 = vpop.f32.mrf.mxu0
  %v1315 = vadd.f32 0.0, %v1314
  %v1316 = vpop.f32.mrf.mxu0
  %1317 = vdwg.mxu0
  %v1318 = vadd.f32 %v1268, %v1302
  %v1319 = vadd.f32 %v1269, %v1315
  %s1320 = scalar_lea.vmem %s3, 56
  %v1321 = vld [vmem:[%s1320] sm:$0xf]
  %1322 = vrot.lane.b32.xlu0 %v579, 126
  %v1323 = vpop.permute.xlu0 %1322
  %1324 = vrot.lane.b32.xlu0 %v580, 126
  %v1325 = vpop.permute.xlu0 %1324
  %vm1326 = vcmask 1031168
  %v1327 = vsel %vm1326, %v1323, %v1325
  %vm1329 = vcmask 1031168
  %v1331 = vsel %vm1329, %v1325, 0
  %v1333 = vsel %vm833, %v1327, 0
  %v1334 = vsel %vm840, %v1331, 0
  %v1336 = vsel %vm633, %v1321, 0
  %v1339 = vsel %vm637, %v1333, 0
  %v1342 = vsel %vm637, %v1334, 0
  %1344 = vmatpush.bf16.msra.mxu0 0
  %1345 = vmatpush.bf16.msra.mxu0 0
  %1346 = vmatpush.bf16.msra.mxu0 0
  %1347 = vmatpush.bf16.msra.mxu0 0
  %1348 = vmatpush.bf16.msra.mxu0 0
  %1349 = vmatpush.bf16.msra.mxu0 0
  %1350 = vmatpush.bf16.msra.mxu0 0
  %1351 = vmatpush.bf16.msra.mxu0 %v1339
  %1352 = vmatmul.bf16.gmra.mxu0 %v1336
  %v1353 = vpop.f32.mrf.mxu0
  %v1354 = vadd.f32 0.0, %v1353
  %v1355 = vpop.f32.mrf.mxu0
  %1356 = vdwg.mxu0
  %1357 = vmatpush.bf16.msra.mxu0 0
  %1358 = vmatpush.bf16.msra.mxu0 0
  %1359 = vmatpush.bf16.msra.mxu0 0
  %1360 = vmatpush.bf16.msra.mxu0 0
  %1361 = vmatpush.bf16.msra.mxu0 0
  %1362 = vmatpush.bf16.msra.mxu0 0
  %1363 = vmatpush.bf16.msra.mxu0 0
  %1364 = vmatpush.bf16.msra.mxu0 %v1342
  %1365 = vmatmul.bf16.gmra.mxu0 %v1336
  %v1366 = vpop.f32.mrf.mxu0
  %v1367 = vadd.f32 0.0, %v1366
  %v1368 = vpop.f32.mrf.mxu0
  %1369 = vdwg.mxu0
  %v1370 = vadd.f32 %v1318, %v1354
  %v1371 = vadd.f32 %v1319, %v1367
  %s1372 = scalar_lea.vmem %s3, 60
  %v1373 = vld [vmem:[%s1372] sm:$0xf]
  %1374 = vrot.lane.b32.xlu0 %v579, 114
  %v1375 = vpop.permute.xlu0 %1374
  %1376 = vrot.lane.b32.xlu0 %v580, 114
  %v1377 = vpop.permute.xlu0 %1376
  %vm1378 = vcmask 932864
  %v1379 = vsel %vm1378, %v1375, %v1377
  %vm1381 = vcmask 932864
  %v1383 = vsel %vm1381, %v1377, 0
  %v1385 = vsel %vm608, %v1379, 0
  %v1386 = vsel %vm615, %v1383, 0
  %v1388 = vsel %vm633, %v1373, 0
  %v1391 = vsel %vm637, %v1385, 0
  %v1394 = vsel %vm637, %v1386, 0
  %1396 = vmatpush.bf16.msra.mxu0 0
  %1397 = vmatpush.bf16.msra.mxu0 0
  %1398 = vmatpush.bf16.msra.mxu0 0
  %1399 = vmatpush.bf16.msra.mxu0 0
  %1400 = vmatpush.bf16.msra.mxu0 0
  %1401 = vmatpush.bf16.msra.mxu0 0
  %1402 = vmatpush.bf16.msra.mxu0 0
  %1403 = vmatpush.bf16.msra.mxu0 %v1391
  %1404 = vmatmul.bf16.gmra.mxu0 %v1388
  %v1405 = vpop.f32.mrf.mxu0
  %v1406 = vadd.f32 0.0, %v1405
  %v1407 = vpop.f32.mrf.mxu0
  %1408 = vdwg.mxu0
  %1409 = vmatpush.bf16.msra.mxu0 0
  %1410 = vmatpush.bf16.msra.mxu0 0
  %1411 = vmatpush.bf16.msra.mxu0 0
  %1412 = vmatpush.bf16.msra.mxu0 0
  %1413 = vmatpush.bf16.msra.mxu0 0
  %1414 = vmatpush.bf16.msra.mxu0 0
  %1415 = vmatpush.bf16.msra.mxu0 0
  %1416 = vmatpush.bf16.msra.mxu0 %v1394
  %1417 = vmatmul.bf16.gmra.mxu0 %v1388
  %v1418 = vpop.f32.mrf.mxu0
  %v1419 = vadd.f32 0.0, %v1418
  %v1420 = vpop.f32.mrf.mxu0
  %1421 = vdwg.mxu0
  %v1422 = vadd.f32 %v1370, %v1406
  %v1423 = vadd.f32 %v1371, %v1419
  %s1424 = scalar_lea.vmem %s3, 64
  %v1425 = vld [vmem:[%s1424] sm:$0xf]
  %1426 = vrot.lane.b32.xlu0 %v579, 113
  %v1427 = vpop.permute.xlu0 %1426
  %1428 = vrot.lane.b32.xlu0 %v580, 113
  %v1429 = vpop.permute.xlu0 %1428
  %v1430 = vsel %vm420, %v1427, %v1429
  %v1433 = vsel %vm423, %v1429, 0
  %v1435 = vsel %vm103, %v1430, 0
  %v1436 = vsel %vm110, %v1433, 0
  %v1438 = vsel %vm633, %v1425, 0
  %v1441 = vsel %vm637, %v1435, 0
  %v1444 = vsel %vm637, %v1436, 0
  %1446 = vmatpush.bf16.msra.mxu0 0
  %1447 = vmatpush.bf16.msra.mxu0 0
  %1448 = vmatpush.bf16.msra.mxu0 0
  %1449 = vmatpush.bf16.msra.mxu0 0
  %1450 = vmatpush.bf16.msra.mxu0 0
  %1451 = vmatpush.bf16.msra.mxu0 0
  %1452 = vmatpush.bf16.msra.mxu0 0
  %1453 = vmatpush.bf16.msra.mxu0 %v1441
  %1454 = vmatmul.bf16.gmra.mxu0 %v1438
  %v1455 = vpop.f32.mrf.mxu0
  %v1456 = vadd.f32 0.0, %v1455
  %v1457 = vpop.f32.mrf.mxu0
  %1458 = vdwg.mxu0
  %1459 = vmatpush.bf16.msra.mxu0 0
  %1460 = vmatpush.bf16.msra.mxu0 0
  %1461 = vmatpush.bf16.msra.mxu0 0
  %1462 = vmatpush.bf16.msra.mxu0 0
  %1463 = vmatpush.bf16.msra.mxu0 0
  %1464 = vmatpush.bf16.msra.mxu0 0
  %1465 = vmatpush.bf16.msra.mxu0 0
  %1466 = vmatpush.bf16.msra.mxu0 %v1444
  %1467 = vmatmul.bf16.gmra.mxu0 %v1438
  %v1468 = vpop.f32.mrf.mxu0
  %v1469 = vadd.f32 0.0, %v1468
  %v1470 = vpop.f32.mrf.mxu0
  %1471 = vdwg.mxu0
  %v1472 = vadd.f32 %v1422, %v1456
  %v1473 = vadd.f32 %v1423, %v1469
  %s1474 = scalar_lea.vmem %s3, 68
  %v1475 = vld [vmem:[%s1474] sm:$0xf]
  %1476 = vrot.lane.b32.xlu0 %v579, 112
  %v1477 = vpop.permute.xlu0 %1476
  %1478 = vrot.lane.b32.xlu0 %v580, 112
  %v1479 = vpop.permute.xlu0 %1478
  %v1480 = vsel %vm472, %v1477, %v1479
  %v1482 = vsel %vm474, %v1479, 0
  %v1484 = vsel %vm633, %v1475, 0
  %v1487 = vsel %vm637, %v1480, 0
  %v1489 = vsel %vm637, %v1482, 0
  %1491 = vmatpush.bf16.msra.mxu0 0
  %1492 = vmatpush.bf16.msra.mxu0 0
  %1493 = vmatpush.bf16.msra.mxu0 0
  %1494 = vmatpush.bf16.msra.mxu0 0
  %1495 = vmatpush.bf16.msra.mxu0 0
  %1496 = vmatpush.bf16.msra.mxu0 0
  %1497 = vmatpush.bf16.msra.mxu0 0
  %1498 = vmatpush.bf16.msra.mxu0 %v1487
  %1499 = vmatmul.bf16.gmra.mxu0 %v1484
  %v1500 = vpop.f32.mrf.mxu0
  %v1501 = vadd.f32 0.0, %v1500
  %v1502 = vpop.f32.mrf.mxu0
  %1503 = vdwg.mxu0
  %1504 = vmatpush.bf16.msra.mxu0 0
  %1505 = vmatpush.bf16.msra.mxu0 0
  %1506 = vmatpush.bf16.msra.mxu0 0
  %1507 = vmatpush.bf16.msra.mxu0 0
  %1508 = vmatpush.bf16.msra.mxu0 0
  %1509 = vmatpush.bf16.msra.mxu0 0
  %1510 = vmatpush.bf16.msra.mxu0 0
  %1511 = vmatpush.bf16.msra.mxu0 %v1489
  %1512 = vmatmul.bf16.gmra.mxu0 %v1484
  %v1513 = vpop.f32.mrf.mxu0
  %v1514 = vadd.f32 0.0, %v1513
  %v1515 = vpop.f32.mrf.mxu0
  %1516 = vdwg.mxu0
  %v1517 = vadd.f32 %v1472, %v1501
  %v1518 = vadd.f32 %v1473, %v1514
  %s1519 = scalar_lea.vmem %s3, 72
  %v1520 = vld [vmem:[%s1519] sm:$0xf]
  %1521 = vrot.lane.b32.xlu0 %v579, 111
  %v1522 = vpop.permute.xlu0 %1521
  %1523 = vrot.lane.b32.xlu0 %v580, 111
  %v1524 = vpop.permute.xlu0 %1523
  %v1525 = vsel %vm519, %v1522, %v1524
  %v1528 = vsel %vm522, %v1524, 0
  %v1530 = vsel %vm224, %v1525, 0
  %v1531 = vsel %vm231, %v1528, 0
  %v1533 = vsel %vm633, %v1520, 0
  %v1536 = vsel %vm637, %v1530, 0
  %v1539 = vsel %vm637, %v1531, 0
  %1541 = vmatpush.bf16.msra.mxu0 0
  %1542 = vmatpush.bf16.msra.mxu0 0
  %1543 = vmatpush.bf16.msra.mxu0 0
  %1544 = vmatpush.bf16.msra.mxu0 0
  %1545 = vmatpush.bf16.msra.mxu0 0
  %1546 = vmatpush.bf16.msra.mxu0 0
  %1547 = vmatpush.bf16.msra.mxu0 0
  %1548 = vmatpush.bf16.msra.mxu0 %v1536
  %1549 = vmatmul.bf16.gmra.mxu0 %v1533
  %v1550 = vpop.f32.mrf.mxu0
  %v1551 = vadd.f32 0.0, %v1550
  %v1552 = vpop.f32.mrf.mxu0
  %1553 = vdwg.mxu0
  %1554 = vmatpush.bf16.msra.mxu0 0
  %1555 = vmatpush.bf16.msra.mxu0 0
  %1556 = vmatpush.bf16.msra.mxu0 0
  %1557 = vmatpush.bf16.msra.mxu0 0
  %1558 = vmatpush.bf16.msra.mxu0 0
  %1559 = vmatpush.bf16.msra.mxu0 0
  %1560 = vmatpush.bf16.msra.mxu0 0
  %1561 = vmatpush.bf16.msra.mxu0 %v1539
  %1562 = vmatmul.bf16.gmra.mxu0 %v1533
  %v1563 = vpop.f32.mrf.mxu0
  %v1564 = vadd.f32 0.0, %v1563
  %v1565 = vpop.f32.mrf.mxu0
  %1566 = vdwg.mxu0
  %v1567 = vadd.f32 %v1517, %v1551
  %v1568 = vadd.f32 %v1518, %v1564
  %s1569 = scalar_lea.vmem %s3, 76
  %v1570 = vld [vmem:[%s1569] sm:$0xf]
  %1571 = vrot.lane.b32.xlu0 %v579, 110
  %v1572 = vpop.permute.xlu0 %1571
  %1573 = vrot.lane.b32.xlu0 %v580, 110
  %v1574 = vpop.permute.xlu0 %1573
  %vm1575 = vcmask 900096
  %v1576 = vsel %vm1575, %v1572, %v1574
  %vm1578 = vcmask 900096
  %v1580 = vsel %vm1578, %v1574, 0
  %v1582 = vsel %vm833, %v1576, 0
  %v1583 = vsel %vm840, %v1580, 0
  %v1585 = vsel %vm633, %v1570, 0
  %v1588 = vsel %vm637, %v1582, 0
  %v1591 = vsel %vm637, %v1583, 0
  %1593 = vmatpush.bf16.msra.mxu0 0
  %1594 = vmatpush.bf16.msra.mxu0 0
  %1595 = vmatpush.bf16.msra.mxu0 0
  %1596 = vmatpush.bf16.msra.mxu0 0
  %1597 = vmatpush.bf16.msra.mxu0 0
  %1598 = vmatpush.bf16.msra.mxu0 0
  %1599 = vmatpush.bf16.msra.mxu0 0
  %1600 = vmatpush.bf16.msra.mxu0 %v1588
  %1601 = vmatmul.bf16.gmra.mxu0 %v1585
  %v1602 = vpop.f32.mrf.mxu0
  %v1603 = vadd.f32 0.0, %v1602
  %v1604 = vpop.f32.mrf.mxu0
  %1605 = vdwg.mxu0
  %1606 = vmatpush.bf16.msra.mxu0 0
  %1607 = vmatpush.bf16.msra.mxu0 0
  %1608 = vmatpush.bf16.msra.mxu0 0
  %1609 = vmatpush.bf16.msra.mxu0 0
  %1610 = vmatpush.bf16.msra.mxu0 0
  %1611 = vmatpush.bf16.msra.mxu0 0
  %1612 = vmatpush.bf16.msra.mxu0 0
  %1613 = vmatpush.bf16.msra.mxu0 %v1591
  %1614 = vmatmul.bf16.gmra.mxu0 %v1585
  %v1615 = vpop.f32.mrf.mxu0
  %v1616 = vadd.f32 0.0, %v1615
  %v1617 = vpop.f32.mrf.mxu0
  %1618 = vdwg.mxu0
  %v1619 = vadd.f32 %v1567, %v1603
  %v1620 = vadd.f32 %v1568, %v1616
  %s1621 = scalar_lea.vmem %s3, 80
  %v1622 = vld [vmem:[%s1621] sm:$0xf]
  %1623 = vrot.lane.b32.xlu0 %v579, 98
  %v1624 = vpop.permute.xlu0 %1623
  %1625 = vrot.lane.b32.xlu0 %v580, 98
  %v1626 = vpop.permute.xlu0 %1625
  %vm1627 = vcmask 801792
  %v1628 = vsel %vm1627, %v1624, %v1626
  %vm1630 = vcmask 801792
  %v1632 = vsel %vm1630, %v1626, 0
  %v1634 = vsel %vm608, %v1628, 0
  %v1635 = vsel %vm615, %v1632, 0
  %v1637 = vsel %vm633, %v1622, 0
  %v1640 = vsel %vm637, %v1634, 0
  %v1643 = vsel %vm637, %v1635, 0
  %1645 = vmatpush.bf16.msra.mxu0 0
  %1646 = vmatpush.bf16.msra.mxu0 0
  %1647 = vmatpush.bf16.msra.mxu0 0
  %1648 = vmatpush.bf16.msra.mxu0 0
  %1649 = vmatpush.bf16.msra.mxu0 0
  %1650 = vmatpush.bf16.msra.mxu0 0
  %1651 = vmatpush.bf16.msra.mxu0 0
  %1652 = vmatpush.bf16.msra.mxu0 %v1640
  %1653 = vmatmul.bf16.gmra.mxu0 %v1637
  %v1654 = vpop.f32.mrf.mxu0
  %v1655 = vadd.f32 0.0, %v1654
  %v1656 = vpop.f32.mrf.mxu0
  %1657 = vdwg.mxu0
  %1658 = vmatpush.bf16.msra.mxu0 0
  %1659 = vmatpush.bf16.msra.mxu0 0
  %1660 = vmatpush.bf16.msra.mxu0 0
  %1661 = vmatpush.bf16.msra.mxu0 0
  %1662 = vmatpush.bf16.msra.mxu0 0
  %1663 = vmatpush.bf16.msra.mxu0 0
  %1664 = vmatpush.bf16.msra.mxu0 0
  %1665 = vmatpush.bf16.msra.mxu0 %v1643
  %1666 = vmatmul.bf16.gmra.mxu0 %v1637
  %v1667 = vpop.f32.mrf.mxu0
  %v1668 = vadd.f32 0.0, %v1667
  %v1669 = vpop.f32.mrf.mxu0
  %1670 = vdwg.mxu0
  %v1671 = vadd.f32 %v1619, %v1655
  %v1672 = vadd.f32 %v1620, %v1668
  %s1673 = scalar_lea.vmem %s3, 84
  %v1674 = vld [vmem:[%s1673] sm:$0xf]
  %1675 = vrot.lane.b32.xlu0 %v579, 97
  %v1676 = vpop.permute.xlu0 %1675
  %1677 = vrot.lane.b32.xlu0 %v580, 97
  %v1678 = vpop.permute.xlu0 %1677
  %vm1679 = vcmask 793600
  %v1680 = vsel %vm1679, %v1676, %v1678
  %vm1682 = vcmask 793600
  %v1684 = vsel %vm1682, %v1678, 0
  %v1686 = vsel %vm103, %v1680, 0
  %v1687 = vsel %vm110, %v1684, 0
  %v1689 = vsel %vm633, %v1674, 0
  %v1692 = vsel %vm637, %v1686, 0
  %v1695 = vsel %vm637, %v1687, 0
  %1697 = vmatpush.bf16.msra.mxu0 0
  %1698 = vmatpush.bf16.msra.mxu0 0
  %1699 = vmatpush.bf16.msra.mxu0 0
  %1700 = vmatpush.bf16.msra.mxu0 0
  %1701 = vmatpush.bf16.msra.mxu0 0
  %1702 = vmatpush.bf16.msra.mxu0 0
  %1703 = vmatpush.bf16.msra.mxu0 0
  %1704 = vmatpush.bf16.msra.mxu0 %v1692
  %1705 = vmatmul.bf16.gmra.mxu0 %v1689
  %v1706 = vpop.f32.mrf.mxu0
  %v1707 = vadd.f32 0.0, %v1706
  %v1708 = vpop.f32.mrf.mxu0
  %1709 = vdwg.mxu0
  %1710 = vmatpush.bf16.msra.mxu0 0
  %1711 = vmatpush.bf16.msra.mxu0 0
  %1712 = vmatpush.bf16.msra.mxu0 0
  %1713 = vmatpush.bf16.msra.mxu0 0
  %1714 = vmatpush.bf16.msra.mxu0 0
  %1715 = vmatpush.bf16.msra.mxu0 0
  %1716 = vmatpush.bf16.msra.mxu0 0
  %1717 = vmatpush.bf16.msra.mxu0 %v1695
  %1718 = vmatmul.bf16.gmra.mxu0 %v1689
  %v1719 = vpop.f32.mrf.mxu0
  %v1720 = vadd.f32 0.0, %v1719
  %v1721 = vpop.f32.mrf.mxu0
  %1722 = vdwg.mxu0
  %v1723 = vadd.f32 %v1671, %v1707
  %v1724 = vadd.f32 %v1672, %v1720
  %s1725 = scalar_lea.vmem %s3, 88
  %v1726 = vld [vmem:[%s1725] sm:$0xf]
  %1727 = vrot.lane.b32.xlu0 %v579, 96
  %v1728 = vpop.permute.xlu0 %1727
  %1729 = vrot.lane.b32.xlu0 %v580, 96
  %v1730 = vpop.permute.xlu0 %1729
  %vm1731 = vcmask 785408
  %v1732 = vsel %vm1731, %v1728, %v1730
  %vm1733 = vcmask 785408
  %v1735 = vsel %vm1733, %v1730, 0
  %v1737 = vsel %vm633, %v1726, 0
  %v1740 = vsel %vm637, %v1732, 0
  %v1742 = vsel %vm637, %v1735, 0
  %1744 = vmatpush.bf16.msra.mxu0 0
  %1745 = vmatpush.bf16.msra.mxu0 0
  %1746 = vmatpush.bf16.msra.mxu0 0
  %1747 = vmatpush.bf16.msra.mxu0 0
  %1748 = vmatpush.bf16.msra.mxu0 0
  %1749 = vmatpush.bf16.msra.mxu0 0
  %1750 = vmatpush.bf16.msra.mxu0 0
  %1751 = vmatpush.bf16.msra.mxu0 %v1740
  %1752 = vmatmul.bf16.gmra.mxu0 %v1737
  %v1753 = vpop.f32.mrf.mxu0
  %v1754 = vadd.f32 0.0, %v1753
  %v1755 = vpop.f32.mrf.mxu0
  %1756 = vdwg.mxu0
  %1757 = vmatpush.bf16.msra.mxu0 0
  %1758 = vmatpush.bf16.msra.mxu0 0
  %1759 = vmatpush.bf16.msra.mxu0 0
  %1760 = vmatpush.bf16.msra.mxu0 0
  %1761 = vmatpush.bf16.msra.mxu0 0
  %1762 = vmatpush.bf16.msra.mxu0 0
  %1763 = vmatpush.bf16.msra.mxu0 0
  %1764 = vmatpush.bf16.msra.mxu0 %v1742
  %1765 = vmatmul.bf16.gmra.mxu0 %v1737
  %v1766 = vpop.f32.mrf.mxu0
  %v1767 = vadd.f32 0.0, %v1766
  %v1768 = vpop.f32.mrf.mxu0
  %1769 = vdwg.mxu0
  %v1770 = vadd.f32 %v1723, %v1754
  %v1771 = vadd.f32 %v1724, %v1767
  %s1772 = scalar_lea.vmem %s3, 92
  %v1773 = vld [vmem:[%s1772] sm:$0xf]
  %1774 = vrot.lane.b32.xlu0 %v579, 95
  %v1775 = vpop.permute.xlu0 %1774
  %1776 = vrot.lane.b32.xlu0 %v580, 95
  %v1777 = vpop.permute.xlu0 %1776
  %vm1778 = vcmask 777216
  %v1779 = vsel %vm1778, %v1775, %v1777
  %vm1781 = vcmask 777216
  %v1783 = vsel %vm1781, %v1777, 0
  %v1785 = vsel %vm224, %v1779, 0
  %v1786 = vsel %vm231, %v1783, 0
  %v1788 = vsel %vm633, %v1773, 0
  %v1791 = vsel %vm637, %v1785, 0
  %v1794 = vsel %vm637, %v1786, 0
  %1796 = vmatpush.bf16.msra.mxu0 0
  %1797 = vmatpush.bf16.msra.mxu0 0
  %1798 = vmatpush.bf16.msra.mxu0 0
  %1799 = vmatpush.bf16.msra.mxu0 0
  %1800 = vmatpush.bf16.msra.mxu0 0
  %1801 = vmatpush.bf16.msra.mxu0 0
  %1802 = vmatpush.bf16.msra.mxu0 0
  %1803 = vmatpush.bf16.msra.mxu0 %v1791
  %1804 = vmatmul.bf16.gmra.mxu0 %v1788
  %v1805 = vpop.f32.mrf.mxu0
  %v1806 = vadd.f32 0.0, %v1805
  %v1807 = vpop.f32.mrf.mxu0
  %1808 = vdwg.mxu0
  %1809 = vmatpush.bf16.msra.mxu0 0
  %1810 = vmatpush.bf16.msra.mxu0 0
  %1811 = vmatpush.bf16.msra.mxu0 0
  %1812 = vmatpush.bf16.msra.mxu0 0
  %1813 = vmatpush.bf16.msra.mxu0 0
  %1814 = vmatpush.bf16.msra.mxu0 0
  %1815 = vmatpush.bf16.msra.mxu0 0
  %1816 = vmatpush.bf16.msra.mxu0 %v1794
  %1817 = vmatmul.bf16.gmra.mxu0 %v1788
  %v1818 = vpop.f32.mrf.mxu0
  %v1819 = vadd.f32 0.0, %v1818
  %v1820 = vpop.f32.mrf.mxu0
  %1821 = vdwg.mxu0
  %v1822 = vadd.f32 %v1770, %v1806
  %v1823 = vadd.f32 %v1771, %v1819
  %s1824 = scalar_lea.vmem %s3, 96
  %v1825 = vld [vmem:[%s1824] sm:$0xf]
  %1826 = vrot.lane.b32.xlu0 %v579, 94
  %v1827 = vpop.permute.xlu0 %1826
  %1828 = vrot.lane.b32.xlu0 %v580, 94
  %v1829 = vpop.permute.xlu0 %1828
  %vm1830 = vcmask 769024
  %v1831 = vsel %vm1830, %v1827, %v1829
  %vm1833 = vcmask 769024
  %v1835 = vsel %vm1833, %v1829, 0
  %v1837 = vsel %vm833, %v1831, 0
  %v1838 = vsel %vm840, %v1835, 0
  %v1840 = vsel %vm633, %v1825, 0
  %v1843 = vsel %vm637, %v1837, 0
  %v1846 = vsel %vm637, %v1838, 0
  %1848 = vmatpush.bf16.msra.mxu0 0
  %1849 = vmatpush.bf16.msra.mxu0 0
  %1850 = vmatpush.bf16.msra.mxu0 0
  %1851 = vmatpush.bf16.msra.mxu0 0
  %1852 = vmatpush.bf16.msra.mxu0 0
  %1853 = vmatpush.bf16.msra.mxu0 0
  %1854 = vmatpush.bf16.msra.mxu0 0
  %1855 = vmatpush.bf16.msra.mxu0 %v1843
  %1856 = vmatmul.bf16.gmra.mxu0 %v1840
  %v1857 = vpop.f32.mrf.mxu0
  %v1858 = vadd.f32 0.0, %v1857
  %v1859 = vpop.f32.mrf.mxu0
  %1860 = vdwg.mxu0
  %1861 = vmatpush.bf16.msra.mxu0 0
  %1862 = vmatpush.bf16.msra.mxu0 0
  %1863 = vmatpush.bf16.msra.mxu0 0
  %1864 = vmatpush.bf16.msra.mxu0 0
  %1865 = vmatpush.bf16.msra.mxu0 0
  %1866 = vmatpush.bf16.msra.mxu0 0
  %1867 = vmatpush.bf16.msra.mxu0 0
  %1868 = vmatpush.bf16.msra.mxu0 %v1846
  %1869 = vmatmul.bf16.gmra.mxu0 %v1840
  %v1870 = vpop.f32.mrf.mxu0
  %v1871 = vadd.f32 0.0, %v1870
  %v1872 = vpop.f32.mrf.mxu0
  %1873 = vdwg.mxu0
  %v1874 = vadd.f32 %v1822, %v1858
  %v1875 = vadd.f32 %v1823, %v1871
  %v1876 = vadd.f32 %v1874, %v57
  %v1877 = vadd.f32 %v1875, %v58
  %v1878 = vmax.f32 %v1876, 0.0
  %v1879 = vmax.f32 %v1877, 0.0
  %1881 = vset.pattern.permute.xlu0 0
  %1882 = vperm.xlu0 %1881, %v59
  %v1883 = vpop.permute.xlu0 %1882
  %v1885 = vmul.f32 %v1878, %v1883
  %v1886 = vmul.f32 %v1879, %v1883
  %1888 = vset.pattern.permute.xlu0 0
  %1889 = vperm.xlu0 %1888, %v60
  %v1890 = vpop.permute.xlu0 %1889
  %v1892 = vadd.f32 %v1885, %v1890
  %v1893 = vadd.f32 %v1886, %v1890
  %v1894 = vmax.f32 %v1892, 0.0
  %v1895 = vmax.f32 %v1893, 0.0
  %1896 = vst [vmem:[%s7] sm:$0xff] %v1894
  %1897 = vst [vmem:[%s7 + $0x8] sm:$0xff] %v1895
  %s1898 = scalar_lea.vmem %s0, 8
  %v1899 = vld [vmem:[%s1898] sm:$0xff]
  %1901 = vst [vmem:[#allocation1] ss:$2 sm:$0xff] %v1899
  %v1902 = vld.sshfl [vmem:[#allocation1] sm:$0xff pattern:$0x75316420]
  %v1903 = vld.sshfl [vmem:[#allocation1 + $0x8] sm:$0xff pattern:$0x75316420]
  %v1906 = vpack.c.bf16 %v1903, %v1902
  %v1907 = vld [vmem:[%s1] sm:$0xf]
  %v1909 = vunpack.c.l.b16 %v1906
  %v1910 = vunpack.c.h.b16 %v1906
  %v1911 = vpack.c.b16 %v1909, %v1909
  %v1912 = vpack.c.b16 %v1910, %v1910
  %1913 = vrot.lane.b32.xlu0 %v1911, 17
  %v1914 = vpop.permute.xlu0 %1913
  %1915 = vrot.lane.b32.xlu0 %v1912, 17
  %v1916 = vpop.permute.xlu0 %1915
  %v1917 = vsel %vm79, %v1914, %v1916
  %v1920 = vsel %vm82, 0, %v1914
  %v1922 = vsel %vm103, %v1920, 0
  %v1923 = vsel %vm110, %v1917, 0
  %v1924 = vld [vmem:[%s113] sm:$0xf]
  %1925 = vrot.lane.b32.xlu0 %v1911, 16
  %v1926 = vpop.permute.xlu0 %1925
  %1927 = vrot.lane.b32.xlu0 %v1912, 16
  %v1928 = vpop.permute.xlu0 %1927
  %v1929 = vsel %vm119, %v1926, %v1928
  %v1931 = vsel %vm121, 0, %v1926
  %v1933 = vsel %vm124, %v1924, 0
  %v1935 = vsel %vm128, %v1931, 0
  %v1938 = vsel %vm128, %v1929, 0
  %1940 = vmatpush.bf16.msra.mxu0 0
  %1941 = vmatpush.bf16.msra.mxu0 0
  %1942 = vmatpush.bf16.msra.mxu0 0
  %1943 = vmatpush.bf16.msra.mxu0 0
  %1944 = vmatpush.bf16.msra.mxu0 0
  %1945 = vmatpush.bf16.msra.mxu0 0
  %1946 = vmatpush.bf16.msra.mxu0 0
  %1947 = vmatpush.bf16.msra.mxu0 %v1935
  %1948 = vmatmul.bf16.gmra.mxu0 %v1933
  %v1949 = vpop.f32.mrf.mxu0
  %v1950 = vadd.f32 0.0, %v1949
  %v1951 = vpop.f32.mrf.mxu0
  %1952 = vdwg.mxu0
  %1953 = vmatpush.bf16.msra.mxu0 0
  %1954 = vmatpush.bf16.msra.mxu0 0
  %1955 = vmatpush.bf16.msra.mxu0 0
  %1956 = vmatpush.bf16.msra.mxu0 0
  %1957 = vmatpush.bf16.msra.mxu0 0
  %1958 = vmatpush.bf16.msra.mxu0 0
  %1959 = vmatpush.bf16.msra.mxu0 0
  %1960 = vmatpush.bf16.msra.mxu0 %v1938
  %1961 = vmatmul.bf16.gmra.mxu0 %v1933
  %v1962 = vpop.f32.mrf.mxu0
  %v1963 = vadd.f32 0.0, %v1962
  %v1964 = vpop.f32.mrf.mxu0
  %1965 = vdwg.mxu0
  %v1967 = vsel %vm124, %v1907, 0
  %v1970 = vsel %vm128, %v1922, 0
  %v1973 = vsel %vm128, %v1923, 0
  %1975 = vmatpush.bf16.msra.mxu0 0
  %1976 = vmatpush.bf16.msra.mxu0 0
  %1977 = vmatpush.bf16.msra.mxu0 0
  %1978 = vmatpush.bf16.msra.mxu0 0
  %1979 = vmatpush.bf16.msra.mxu0 0
  %1980 = vmatpush.bf16.msra.mxu0 0
  %1981 = vmatpush.bf16.msra.mxu0 0
  %1982 = vmatpush.bf16.msra.mxu0 %v1970
  %1983 = vmatmul.bf16.gmra.mxu0 %v1967
  %v1984 = vpop.f32.mrf.mxu0
  %v1985 = vadd.f32 %v1950, %v1984
  %v1986 = vpop.f32.mrf.mxu0
  %1987 = vdwg.mxu0
  %1988 = vmatpush.bf16.msra.mxu0 0
  %1989 = vmatpush.bf16.msra.mxu0 0
  %1990 = vmatpush.bf16.msra.mxu0 0
  %1991 = vmatpush.bf16.msra.mxu0 0
  %1992 = vmatpush.bf16.msra.mxu0 0
  %1993 = vmatpush.bf16.msra.mxu0 0
  %1994 = vmatpush.bf16.msra.mxu0 0
  %1995 = vmatpush.bf16.msra.mxu0 %v1973
  %1996 = vmatmul.bf16.gmra.mxu0 %v1967
  %v1997 = vpop.f32.mrf.mxu0
  %v1998 = vadd.f32 %v1963, %v1997
  %v1999 = vpop.f32.mrf.mxu0
  %2000 = vdwg.mxu0
  %v2001 = vld [vmem:[%s195] sm:$0xf]
  %2002 = vrot.lane.b32.xlu0 %v1911, 15
  %v2003 = vpop.permute.xlu0 %2002
  %2004 = vrot.lane.b32.xlu0 %v1912, 15
  %v2005 = vpop.permute.xlu0 %2004
  %v2006 = vsel %vm201, %v2003, %v2005
  %v2009 = vsel %vm204, 0, %v2003
  %v2011 = vsel %vm224, %v2009, 0
  %v2012 = vsel %vm231, %v2006, 0
  %v2014 = vsel %vm124, %v2001, 0
  %v2017 = vsel %vm128, %v2011, 0
  %v2020 = vsel %vm128, %v2012, 0
  %2022 = vmatpush.bf16.msra.mxu0 0
  %2023 = vmatpush.bf16.msra.mxu0 0
  %2024 = vmatpush.bf16.msra.mxu0 0
  %2025 = vmatpush.bf16.msra.mxu0 0
  %2026 = vmatpush.bf16.msra.mxu0 0
  %2027 = vmatpush.bf16.msra.mxu0 0
  %2028 = vmatpush.bf16.msra.mxu0 0
  %2029 = vmatpush.bf16.msra.mxu0 %v2017
  %2030 = vmatmul.bf16.gmra.mxu0 %v2014
  %v2031 = vpop.f32.mrf.mxu0
  %v2032 = vadd.f32 0.0, %v2031
  %v2033 = vpop.f32.mrf.mxu0
  %2034 = vdwg.mxu0
  %2035 = vmatpush.bf16.msra.mxu0 0
  %2036 = vmatpush.bf16.msra.mxu0 0
  %2037 = vmatpush.bf16.msra.mxu0 0
  %2038 = vmatpush.bf16.msra.mxu0 0
  %2039 = vmatpush.bf16.msra.mxu0 0
  %2040 = vmatpush.bf16.msra.mxu0 0
  %2041 = vmatpush.bf16.msra.mxu0 0
  %2042 = vmatpush.bf16.msra.mxu0 %v2020
  %2043 = vmatmul.bf16.gmra.mxu0 %v2014
  %v2044 = vpop.f32.mrf.mxu0
  %v2045 = vadd.f32 0.0, %v2044
  %v2046 = vpop.f32.mrf.mxu0
  %2047 = vdwg.mxu0
  %v2048 = vadd.f32 %v1985, %v2032
  %v2049 = vadd.f32 %v1998, %v2045
  %v2050 = vld [vmem:[%s271] sm:$0xf]
  %2051 = vrot.lane.b32.xlu0 %v1911, 1
  %v2052 = vpop.permute.xlu0 %2051
  %2053 = vrot.lane.b32.xlu0 %v1912, 1
  %v2054 = vpop.permute.xlu0 %2053
  %v2055 = vsel %vm277, %v2052, %v2054
  %v2058 = vsel %vm280, 0, %v2052
  %v2060 = vsel %vm103, %v2058, 0
  %v2061 = vsel %vm110, %v2055, 0
  %v2063 = vsel %vm124, %v2050, 0
  %v2066 = vsel %vm128, %v2060, 0
  %v2069 = vsel %vm128, %v2061, 0
  %2071 = vmatpush.bf16.msra.mxu0 0
  %2072 = vmatpush.bf16.msra.mxu0 0
  %2073 = vmatpush.bf16.msra.mxu0 0
  %2074 = vmatpush.bf16.msra.mxu0 0
  %2075 = vmatpush.bf16.msra.mxu0 0
  %2076 = vmatpush.bf16.msra.mxu0 0
  %2077 = vmatpush.bf16.msra.mxu0 0
  %2078 = vmatpush.bf16.msra.mxu0 %v2066
  %2079 = vmatmul.bf16.gmra.mxu0 %v2063
  %v2080 = vpop.f32.mrf.mxu0
  %v2081 = vadd.f32 0.0, %v2080
  %v2082 = vpop.f32.mrf.mxu0
  %2083 = vdwg.mxu0
  %2084 = vmatpush.bf16.msra.mxu0 0
  %2085 = vmatpush.bf16.msra.mxu0 0
  %2086 = vmatpush.bf16.msra.mxu0 0
  %2087 = vmatpush.bf16.msra.mxu0 0
  %2088 = vmatpush.bf16.msra.mxu0 0
  %2089 = vmatpush.bf16.msra.mxu0 0
  %2090 = vmatpush.bf16.msra.mxu0 0
  %2091 = vmatpush.bf16.msra.mxu0 %v2069
  %2092 = vmatmul.bf16.gmra.mxu0 %v2063
  %v2093 = vpop.f32.mrf.mxu0
  %v2094 = vadd.f32 0.0, %v2093
  %v2095 = vpop.f32.mrf.mxu0
  %2096 = vdwg.mxu0
  %v2097 = vadd.f32 %v2048, %v2081
  %v2098 = vadd.f32 %v2049, %v2094
  %v2099 = vld [vmem:[%s323] sm:$0xf]
  %v2101 = vsel %vm124, %v2099, 0
  %v2104 = vsel %vm128, %v1911, 0
  %v2107 = vsel %vm128, %v1912, 0
  %2109 = vmatpush.bf16.msra.mxu0 0
  %2110 = vmatpush.bf16.msra.mxu0 0
  %2111 = vmatpush.bf16.msra.mxu0 0
  %2112 = vmatpush.bf16.msra.mxu0 0
  %2113 = vmatpush.bf16.msra.mxu0 0
  %2114 = vmatpush.bf16.msra.mxu0 0
  %2115 = vmatpush.bf16.msra.mxu0 0
  %2116 = vmatpush.bf16.msra.mxu0 %v2104
  %2117 = vmatmul.bf16.gmra.mxu0 %v2101
  %v2118 = vpop.f32.mrf.mxu0
  %v2119 = vadd.f32 0.0, %v2118
  %v2120 = vpop.f32.mrf.mxu0
  %2121 = vdwg.mxu0
  %2122 = vmatpush.bf16.msra.mxu0 0
  %2123 = vmatpush.bf16.msra.mxu0 0
  %2124 = vmatpush.bf16.msra.mxu0 0
  %2125 = vmatpush.bf16.msra.mxu0 0
  %2126 = vmatpush.bf16.msra.mxu0 0
  %2127 = vmatpush.bf16.msra.mxu0 0
  %2128 = vmatpush.bf16.msra.mxu0 0
  %2129 = vmatpush.bf16.msra.mxu0 %v2107
  %2130 = vmatmul.bf16.gmra.mxu0 %v2101
  %v2131 = vpop.f32.mrf.mxu0
  %v2132 = vadd.f32 0.0, %v2131
  %v2133 = vpop.f32.mrf.mxu0
  %2134 = vdwg.mxu0
  %v2135 = vadd.f32 %v2097, %v2119
  %v2136 = vadd.f32 %v2098, %v2132
  %v2137 = vld [vmem:[%s362] sm:$0xf]
  %2138 = vrot.lane.b32.xlu0 %v1911, 127
  %v2139 = vpop.permute.xlu0 %2138
  %2140 = vrot.lane.b32.xlu0 %v1912, 127
  %v2141 = vpop.permute.xlu0 %2140
  %v2142 = vsel %vm368, %v2139, %v2141
  %v2145 = vsel %vm371, %v2141, 0
  %v2147 = vsel %vm224, %v2142, 0
  %v2148 = vsel %vm231, %v2145, 0
  %v2150 = vsel %vm124, %v2137, 0
  %v2153 = vsel %vm128, %v2147, 0
  %v2156 = vsel %vm128, %v2148, 0
  %2158 = vmatpush.bf16.msra.mxu0 0
  %2159 = vmatpush.bf16.msra.mxu0 0
  %2160 = vmatpush.bf16.msra.mxu0 0
  %2161 = vmatpush.bf16.msra.mxu0 0
  %2162 = vmatpush.bf16.msra.mxu0 0
  %2163 = vmatpush.bf16.msra.mxu0 0
  %2164 = vmatpush.bf16.msra.mxu0 0
  %2165 = vmatpush.bf16.msra.mxu0 %v2153
  %2166 = vmatmul.bf16.gmra.mxu0 %v2150
  %v2167 = vpop.f32.mrf.mxu0
  %v2168 = vadd.f32 0.0, %v2167
  %v2169 = vpop.f32.mrf.mxu0
  %2170 = vdwg.mxu0
  %2171 = vmatpush.bf16.msra.mxu0 0
  %2172 = vmatpush.bf16.msra.mxu0 0
  %2173 = vmatpush.bf16.msra.mxu0 0
  %2174 = vmatpush.bf16.msra.mxu0 0
  %2175 = vmatpush.bf16.msra.mxu0 0
  %2176 = vmatpush.bf16.msra.mxu0 0
  %2177 = vmatpush.bf16.msra.mxu0 0
  %2178 = vmatpush.bf16.msra.mxu0 %v2156
  %2179 = vmatmul.bf16.gmra.mxu0 %v2150
  %v2180 = vpop.f32.mrf.mxu0
  %v2181 = vadd.f32 0.0, %v2180
  %v2182 = vpop.f32.mrf.mxu0
  %2183 = vdwg.mxu0
  %v2184 = vadd.f32 %v2135, %v2168
  %v2185 = vadd.f32 %v2136, %v2181
  %v2186 = vld [vmem:[%s414] sm:$0xf]
  %2187 = vrot.lane.b32.xlu0 %v1911, 113
  %v2188 = vpop.permute.xlu0 %2187
  %2189 = vrot.lane.b32.xlu0 %v1912, 113
  %v2190 = vpop.permute.xlu0 %2189
  %v2191 = vsel %vm420, %v2188, %v2190
  %v2194 = vsel %vm423, %v2190, 0
  %v2196 = vsel %vm103, %v2191, 0
  %v2197 = vsel %vm110, %v2194, 0
  %v2199 = vsel %vm124, %v2186, 0
  %v2202 = vsel %vm128, %v2196, 0
  %v2205 = vsel %vm128, %v2197, 0
  %2207 = vmatpush.bf16.msra.mxu0 0
  %2208 = vmatpush.bf16.msra.mxu0 0
  %2209 = vmatpush.bf16.msra.mxu0 0
  %2210 = vmatpush.bf16.msra.mxu0 0
  %2211 = vmatpush.bf16.msra.mxu0 0
  %2212 = vmatpush.bf16.msra.mxu0 0
  %2213 = vmatpush.bf16.msra.mxu0 0
  %2214 = vmatpush.bf16.msra.mxu0 %v2202
  %2215 = vmatmul.bf16.gmra.mxu0 %v2199
  %v2216 = vpop.f32.mrf.mxu0
  %v2217 = vadd.f32 0.0, %v2216
  %v2218 = vpop.f32.mrf.mxu0
  %2219 = vdwg.mxu0
  %2220 = vmatpush.bf16.msra.mxu0 0
  %2221 = vmatpush.bf16.msra.mxu0 0
  %2222 = vmatpush.bf16.msra.mxu0 0
  %2223 = vmatpush.bf16.msra.mxu0 0
  %2224 = vmatpush.bf16.msra.mxu0 0
  %2225 = vmatpush.bf16.msra.mxu0 0
  %2226 = vmatpush.bf16.msra.mxu0 0
  %2227 = vmatpush.bf16.msra.mxu0 %v2205
  %2228 = vmatmul.bf16.gmra.mxu0 %v2199
  %v2229 = vpop.f32.mrf.mxu0
  %v2230 = vadd.f32 0.0, %v2229
  %v2231 = vpop.f32.mrf.mxu0
  %2232 = vdwg.mxu0
  %v2233 = vadd.f32 %v2184, %v2217
  %v2234 = vadd.f32 %v2185, %v2230
  %v2235 = vld [vmem:[%s466] sm:$0xf]
  %2236 = vrot.lane.b32.xlu0 %v1911, 112
  %v2237 = vpop.permute.xlu0 %2236
  %2238 = vrot.lane.b32.xlu0 %v1912, 112
  %v2239 = vpop.permute.xlu0 %2238
  %v2240 = vsel %vm472, %v2237, %v2239
  %v2242 = vsel %vm474, %v2239, 0
  %v2244 = vsel %vm124, %v2235, 0
  %v2247 = vsel %vm128, %v2240, 0
  %v2249 = vsel %vm128, %v2242, 0
  %2251 = vmatpush.bf16.msra.mxu0 0
  %2252 = vmatpush.bf16.msra.mxu0 0
  %2253 = vmatpush.bf16.msra.mxu0 0
  %2254 = vmatpush.bf16.msra.mxu0 0
  %2255 = vmatpush.bf16.msra.mxu0 0
  %2256 = vmatpush.bf16.msra.mxu0 0
  %2257 = vmatpush.bf16.msra.mxu0 0
  %2258 = vmatpush.bf16.msra.mxu0 %v2247
  %2259 = vmatmul.bf16.gmra.mxu0 %v2244
  %v2260 = vpop.f32.mrf.mxu0
  %v2261 = vadd.f32 0.0, %v2260
  %v2262 = vpop.f32.mrf.mxu0
  %2263 = vdwg.mxu0
  %2264 = vmatpush.bf16.msra.mxu0 0
  %2265 = vmatpush.bf16.msra.mxu0 0
  %2266 = vmatpush.bf16.msra.mxu0 0
  %2267 = vmatpush.bf16.msra.mxu0 0
  %2268 = vmatpush.bf16.msra.mxu0 0
  %2269 = vmatpush.bf16.msra.mxu0 0
  %2270 = vmatpush.bf16.msra.mxu0 0
  %2271 = vmatpush.bf16.msra.mxu0 %v2249
  %2272 = vmatmul.bf16.gmra.mxu0 %v2244
  %v2273 = vpop.f32.mrf.mxu0
  %v2274 = vadd.f32 0.0, %v2273
  %v2275 = vpop.f32.mrf.mxu0
  %2276 = vdwg.mxu0
  %v2277 = vadd.f32 %v2233, %v2261
  %v2278 = vadd.f32 %v2234, %v2274
  %v2279 = vld [vmem:[%s513] sm:$0xf]
  %2280 = vrot.lane.b32.xlu0 %v1911, 111
  %v2281 = vpop.permute.xlu0 %2280
  %2282 = vrot.lane.b32.xlu0 %v1912, 111
  %v2283 = vpop.permute.xlu0 %2282
  %v2284 = vsel %vm519, %v2281, %v2283
  %v2287 = vsel %vm522, %v2283, 0
  %v2289 = vsel %vm224, %v2284, 0
  %v2290 = vsel %vm231, %v2287, 0
  %v2292 = vsel %vm124, %v2279, 0
  %v2295 = vsel %vm128, %v2289, 0
  %v2298 = vsel %vm128, %v2290, 0
  %2300 = vmatpush.bf16.msra.mxu0 0
  %2301 = vmatpush.bf16.msra.mxu0 0
  %2302 = vmatpush.bf16.msra.mxu0 0
  %2303 = vmatpush.bf16.msra.mxu0 0
  %2304 = vmatpush.bf16.msra.mxu0 0
  %2305 = vmatpush.bf16.msra.mxu0 0
  %2306 = vmatpush.bf16.msra.mxu0 0
  %2307 = vmatpush.bf16.msra.mxu0 %v2295
  %2308 = vmatmul.bf16.gmra.mxu0 %v2292
  %v2309 = vpop.f32.mrf.mxu0
  %v2310 = vadd.f32 0.0, %v2309
  %v2311 = vpop.f32.mrf.mxu0
  %2312 = vdwg.mxu0
  %2313 = vmatpush.bf16.msra.mxu0 0
  %2314 = vmatpush.bf16.msra.mxu0 0
  %2315 = vmatpush.bf16.msra.mxu0 0
  %2316 = vmatpush.bf16.msra.mxu0 0
  %2317 = vmatpush.bf16.msra.mxu0 0
  %2318 = vmatpush.bf16.msra.mxu0 0
  %2319 = vmatpush.bf16.msra.mxu0 0
  %2320 = vmatpush.bf16.msra.mxu0 %v2298
  %2321 = vmatmul.bf16.gmra.mxu0 %v2292
  %v2322 = vpop.f32.mrf.mxu0
  %v2323 = vadd.f32 0.0, %v2322
  %v2324 = vpop.f32.mrf.mxu0
  %2325 = vdwg.mxu0
  %v2326 = vadd.f32 %v2277, %v2310
  %v2327 = vadd.f32 %v2278, %v2323
  %v2328 = vadd.f32 %v2326, %v568
  %v2329 = vadd.f32 %v2327, %v568
  %v2330 = vmax.f32 %v2328, 0.0
  %v2331 = vmax.f32 %v2329, 0.0
  %v2332 = vpack.c.bf16 %v2331, %v2330
  %v2333 = vld [vmem:[%s3] sm:$0xf]
  %v2335 = vunpack.c.l.b16 %v2332
  %v2336 = vunpack.c.h.b16 %v2332
  %v2337 = vpack.c.b16 %v2335, %v2335
  %v2338 = vpack.c.b16 %v2336, %v2336
  %2339 = vrot.lane.b32.xlu0 %v2337, 34
  %v2340 = vpop.permute.xlu0 %2339
  %2341 = vrot.lane.b32.xlu0 %v2338, 34
  %v2342 = vpop.permute.xlu0 %2341
  %v2343 = vsel %vm585, %v2340, %v2342
  %v2346 = vsel %vm588, 0, %v2340
  %v2348 = vsel %vm608, %v2346, 0
  %v2349 = vsel %vm615, %v2343, 0
  %v2350 = vld [vmem:[%s618] sm:$0xf]
  %2351 = vrot.lane.b32.xlu0 %v2337, 33
  %v2352 = vpop.permute.xlu0 %2351
  %2353 = vrot.lane.b32.xlu0 %v2338, 33
  %v2354 = vpop.permute.xlu0 %2353
  %v2355 = vsel %vm624, %v2352, %v2354
  %v2358 = vsel %vm627, 0, %v2352
  %v2360 = vsel %vm103, %v2358, 0
  %v2361 = vsel %vm110, %v2355, 0
  %v2363 = vsel %vm633, %v2350, 0
  %v2366 = vsel %vm637, %v2360, 0
  %v2369 = vsel %vm637, %v2361, 0
  %2371 = vmatpush.bf16.msra.mxu0 0
  %2372 = vmatpush.bf16.msra.mxu0 0
  %2373 = vmatpush.bf16.msra.mxu0 0
  %2374 = vmatpush.bf16.msra.mxu0 0
  %2375 = vmatpush.bf16.msra.mxu0 0
  %2376 = vmatpush.bf16.msra.mxu0 0
  %2377 = vmatpush.bf16.msra.mxu0 0
  %2378 = vmatpush.bf16.msra.mxu0 %v2366
  %2379 = vmatmul.bf16.gmra.mxu0 %v2363
  %v2380 = vpop.f32.mrf.mxu0
  %v2381 = vadd.f32 0.0, %v2380
  %v2382 = vpop.f32.mrf.mxu0
  %2383 = vdwg.mxu0
  %2384 = vmatpush.bf16.msra.mxu0 0
  %2385 = vmatpush.bf16.msra.mxu0 0
  %2386 = vmatpush.bf16.msra.mxu0 0
  %2387 = vmatpush.bf16.msra.mxu0 0
  %2388 = vmatpush.bf16.msra.mxu0 0
  %2389 = vmatpush.bf16.msra.mxu0 0
  %2390 = vmatpush.bf16.msra.mxu0 0
  %2391 = vmatpush.bf16.msra.mxu0 %v2369
  %2392 = vmatmul.bf16.gmra.mxu0 %v2363
  %v2393 = vpop.f32.mrf.mxu0
  %v2394 = vadd.f32 0.0, %v2393
  %v2395 = vpop.f32.mrf.mxu0
  %2396 = vdwg.mxu0
  %v2398 = vsel %vm633, %v2333, 0
  %v2401 = vsel %vm637, %v2348, 0
  %v2404 = vsel %vm637, %v2349, 0
  %2406 = vmatpush.bf16.msra.mxu0 0
  %2407 = vmatpush.bf16.msra.mxu0 0
  %2408 = vmatpush.bf16.msra.mxu0 0
  %2409 = vmatpush.bf16.msra.mxu0 0
  %2410 = vmatpush.bf16.msra.mxu0 0
  %2411 = vmatpush.bf16.msra.mxu0 0
  %2412 = vmatpush.bf16.msra.mxu0 0
  %2413 = vmatpush.bf16.msra.mxu0 %v2401
  %2414 = vmatmul.bf16.gmra.mxu0 %v2398
  %v2415 = vpop.f32.mrf.mxu0
  %v2416 = vadd.f32 %v2381, %v2415
  %v2417 = vpop.f32.mrf.mxu0
  %2418 = vdwg.mxu0
  %2419 = vmatpush.bf16.msra.mxu0 0
  %2420 = vmatpush.bf16.msra.mxu0 0
  %2421 = vmatpush.bf16.msra.mxu0 0
  %2422 = vmatpush.bf16.msra.mxu0 0
  %2423 = vmatpush.bf16.msra.mxu0 0
  %2424 = vmatpush.bf16.msra.mxu0 0
  %2425 = vmatpush.bf16.msra.mxu0 0
  %2426 = vmatpush.bf16.msra.mxu0 %v2404
  %2427 = vmatmul.bf16.gmra.mxu0 %v2398
  %v2428 = vpop.f32.mrf.mxu0
  %v2429 = vadd.f32 %v2394, %v2428
  %v2430 = vpop.f32.mrf.mxu0
  %2431 = vdwg.mxu0
  %v2432 = vld [vmem:[%s705] sm:$0xf]
  %2433 = vrot.lane.b32.xlu0 %v2337, 32
  %v2434 = vpop.permute.xlu0 %2433
  %2435 = vrot.lane.b32.xlu0 %v2338, 32
  %v2436 = vpop.permute.xlu0 %2435
  %v2437 = vsel %vm711, %v2434, %v2436
  %v2439 = vsel %vm713, 0, %v2434
  %v2441 = vsel %vm633, %v2432, 0
  %v2443 = vsel %vm637, %v2439, 0
  %v2446 = vsel %vm637, %v2437, 0
  %2448 = vmatpush.bf16.msra.mxu0 0
  %2449 = vmatpush.bf16.msra.mxu0 0
  %2450 = vmatpush.bf16.msra.mxu0 0
  %2451 = vmatpush.bf16.msra.mxu0 0
  %2452 = vmatpush.bf16.msra.mxu0 0
  %2453 = vmatpush.bf16.msra.mxu0 0
  %2454 = vmatpush.bf16.msra.mxu0 0
  %2455 = vmatpush.bf16.msra.mxu0 %v2443
  %2456 = vmatmul.bf16.gmra.mxu0 %v2441
  %v2457 = vpop.f32.mrf.mxu0
  %v2458 = vadd.f32 0.0, %v2457
  %v2459 = vpop.f32.mrf.mxu0
  %2460 = vdwg.mxu0
  %2461 = vmatpush.bf16.msra.mxu0 0
  %2462 = vmatpush.bf16.msra.mxu0 0
  %2463 = vmatpush.bf16.msra.mxu0 0
  %2464 = vmatpush.bf16.msra.mxu0 0
  %2465 = vmatpush.bf16.msra.mxu0 0
  %2466 = vmatpush.bf16.msra.mxu0 0
  %2467 = vmatpush.bf16.msra.mxu0 0
  %2468 = vmatpush.bf16.msra.mxu0 %v2446
  %2469 = vmatmul.bf16.gmra.mxu0 %v2441
  %v2470 = vpop.f32.mrf.mxu0
  %v2471 = vadd.f32 0.0, %v2470
  %v2472 = vpop.f32.mrf.mxu0
  %2473 = vdwg.mxu0
  %v2474 = vadd.f32 %v2416, %v2458
  %v2475 = vadd.f32 %v2429, %v2471
  %v2476 = vld [vmem:[%s752] sm:$0xf]
  %2477 = vrot.lane.b32.xlu0 %v2337, 31
  %v2478 = vpop.permute.xlu0 %2477
  %2479 = vrot.lane.b32.xlu0 %v2338, 31
  %v2480 = vpop.permute.xlu0 %2479
  %v2481 = vsel %vm758, %v2478, %v2480
  %v2484 = vsel %vm761, 0, %v2478
  %v2486 = vsel %vm224, %v2484, 0
  %v2487 = vsel %vm231, %v2481, 0
  %v2489 = vsel %vm633, %v2476, 0
  %v2492 = vsel %vm637, %v2486, 0
  %v2495 = vsel %vm637, %v2487, 0
  %2497 = vmatpush.bf16.msra.mxu0 0
  %2498 = vmatpush.bf16.msra.mxu0 0
  %2499 = vmatpush.bf16.msra.mxu0 0
  %2500 = vmatpush.bf16.msra.mxu0 0
  %2501 = vmatpush.bf16.msra.mxu0 0
  %2502 = vmatpush.bf16.msra.mxu0 0
  %2503 = vmatpush.bf16.msra.mxu0 0
  %2504 = vmatpush.bf16.msra.mxu0 %v2492
  %2505 = vmatmul.bf16.gmra.mxu0 %v2489
  %v2506 = vpop.f32.mrf.mxu0
  %v2507 = vadd.f32 0.0, %v2506
  %v2508 = vpop.f32.mrf.mxu0
  %2509 = vdwg.mxu0
  %2510 = vmatpush.bf16.msra.mxu0 0
  %2511 = vmatpush.bf16.msra.mxu0 0
  %2512 = vmatpush.bf16.msra.mxu0 0
  %2513 = vmatpush.bf16.msra.mxu0 0
  %2514 = vmatpush.bf16.msra.mxu0 0
  %2515 = vmatpush.bf16.msra.mxu0 0
  %2516 = vmatpush.bf16.msra.mxu0 0
  %2517 = vmatpush.bf16.msra.mxu0 %v2495
  %2518 = vmatmul.bf16.gmra.mxu0 %v2489
  %v2519 = vpop.f32.mrf.mxu0
  %v2520 = vadd.f32 0.0, %v2519
  %v2521 = vpop.f32.mrf.mxu0
  %2522 = vdwg.mxu0
  %v2523 = vadd.f32 %v2474, %v2507
  %v2524 = vadd.f32 %v2475, %v2520
  %v2525 = vld [vmem:[%s804] sm:$0xf]
  %2526 = vrot.lane.b32.xlu0 %v2337, 30
  %v2527 = vpop.permute.xlu0 %2526
  %2528 = vrot.lane.b32.xlu0 %v2338, 30
  %v2529 = vpop.permute.xlu0 %2528
  %v2530 = vsel %vm810, %v2527, %v2529
  %v2533 = vsel %vm813, 0, %v2527
  %v2535 = vsel %vm833, %v2533, 0
  %v2536 = vsel %vm840, %v2530, 0
  %v2538 = vsel %vm633, %v2525, 0
  %v2541 = vsel %vm637, %v2535, 0
  %v2544 = vsel %vm637, %v2536, 0
  %2546 = vmatpush.bf16.msra.mxu0 0
  %2547 = vmatpush.bf16.msra.mxu0 0
  %2548 = vmatpush.bf16.msra.mxu0 0
  %2549 = vmatpush.bf16.msra.mxu0 0
  %2550 = vmatpush.bf16.msra.mxu0 0
  %2551 = vmatpush.bf16.msra.mxu0 0
  %2552 = vmatpush.bf16.msra.mxu0 0
  %2553 = vmatpush.bf16.msra.mxu0 %v2541
  %2554 = vmatmul.bf16.gmra.mxu0 %v2538
  %v2555 = vpop.f32.mrf.mxu0
  %v2556 = vadd.f32 0.0, %v2555
  %v2557 = vpop.f32.mrf.mxu0
  %2558 = vdwg.mxu0
  %2559 = vmatpush.bf16.msra.mxu0 0
  %2560 = vmatpush.bf16.msra.mxu0 0
  %2561 = vmatpush.bf16.msra.mxu0 0
  %2562 = vmatpush.bf16.msra.mxu0 0
  %2563 = vmatpush.bf16.msra.mxu0 0
  %2564 = vmatpush.bf16.msra.mxu0 0
  %2565 = vmatpush.bf16.msra.mxu0 0
  %2566 = vmatpush.bf16.msra.mxu0 %v2544
  %2567 = vmatmul.bf16.gmra.mxu0 %v2538
  %v2568 = vpop.f32.mrf.mxu0
  %v2569 = vadd.f32 0.0, %v2568
  %v2570 = vpop.f32.mrf.mxu0
  %2571 = vdwg.mxu0
  %v2572 = vadd.f32 %v2523, %v2556
  %v2573 = vadd.f32 %v2524, %v2569
  %v2574 = vld [vmem:[%s880] sm:$0xf]
  %2575 = vrot.lane.b32.xlu0 %v2337, 18
  %v2576 = vpop.permute.xlu0 %2575
  %2577 = vrot.lane.b32.xlu0 %v2338, 18
  %v2578 = vpop.permute.xlu0 %2577
  %v2579 = vsel %vm886, %v2576, %v2578
  %v2582 = vsel %vm889, 0, %v2576
  %v2584 = vsel %vm608, %v2582, 0
  %v2585 = vsel %vm615, %v2579, 0
  %v2587 = vsel %vm633, %v2574, 0
  %v2590 = vsel %vm637, %v2584, 0
  %v2593 = vsel %vm637, %v2585, 0
  %2595 = vmatpush.bf16.msra.mxu0 0
  %2596 = vmatpush.bf16.msra.mxu0 0
  %2597 = vmatpush.bf16.msra.mxu0 0
  %2598 = vmatpush.bf16.msra.mxu0 0
  %2599 = vmatpush.bf16.msra.mxu0 0
  %2600 = vmatpush.bf16.msra.mxu0 0
  %2601 = vmatpush.bf16.msra.mxu0 0
  %2602 = vmatpush.bf16.msra.mxu0 %v2590
  %2603 = vmatmul.bf16.gmra.mxu0 %v2587
  %v2604 = vpop.f32.mrf.mxu0
  %v2605 = vadd.f32 0.0, %v2604
  %v2606 = vpop.f32.mrf.mxu0
  %2607 = vdwg.mxu0
  %2608 = vmatpush.bf16.msra.mxu0 0
  %2609 = vmatpush.bf16.msra.mxu0 0
  %2610 = vmatpush.bf16.msra.mxu0 0
  %2611 = vmatpush.bf16.msra.mxu0 0
  %2612 = vmatpush.bf16.msra.mxu0 0
  %2613 = vmatpush.bf16.msra.mxu0 0
  %2614 = vmatpush.bf16.msra.mxu0 0
  %2615 = vmatpush.bf16.msra.mxu0 %v2593
  %2616 = vmatmul.bf16.gmra.mxu0 %v2587
  %v2617 = vpop.f32.mrf.mxu0
  %v2618 = vadd.f32 0.0, %v2617
  %v2619 = vpop.f32.mrf.mxu0
  %2620 = vdwg.mxu0
  %v2621 = vadd.f32 %v2572, %v2605
  %v2622 = vadd.f32 %v2573, %v2618
  %v2623 = vld [vmem:[%s932] sm:$0xf]
  %2624 = vrot.lane.b32.xlu0 %v2337, 17
  %v2625 = vpop.permute.xlu0 %2624
  %2626 = vrot.lane.b32.xlu0 %v2338, 17
  %v2627 = vpop.permute.xlu0 %2626
  %v2628 = vsel %vm79, %v2625, %v2627
  %v2631 = vsel %vm82, 0, %v2625
  %v2633 = vsel %vm103, %v2631, 0
  %v2634 = vsel %vm110, %v2628, 0
  %v2636 = vsel %vm633, %v2623, 0
  %v2639 = vsel %vm637, %v2633, 0
  %v2642 = vsel %vm637, %v2634, 0
  %2644 = vmatpush.bf16.msra.mxu0 0
  %2645 = vmatpush.bf16.msra.mxu0 0
  %2646 = vmatpush.bf16.msra.mxu0 0
  %2647 = vmatpush.bf16.msra.mxu0 0
  %2648 = vmatpush.bf16.msra.mxu0 0
  %2649 = vmatpush.bf16.msra.mxu0 0
  %2650 = vmatpush.bf16.msra.mxu0 0
  %2651 = vmatpush.bf16.msra.mxu0 %v2639
  %2652 = vmatmul.bf16.gmra.mxu0 %v2636
  %v2653 = vpop.f32.mrf.mxu0
  %v2654 = vadd.f32 0.0, %v2653
  %v2655 = vpop.f32.mrf.mxu0
  %2656 = vdwg.mxu0
  %2657 = vmatpush.bf16.msra.mxu0 0
  %2658 = vmatpush.bf16.msra.mxu0 0
  %2659 = vmatpush.bf16.msra.mxu0 0
  %2660 = vmatpush.bf16.msra.mxu0 0
  %2661 = vmatpush.bf16.msra.mxu0 0
  %2662 = vmatpush.bf16.msra.mxu0 0
  %2663 = vmatpush.bf16.msra.mxu0 0
  %2664 = vmatpush.bf16.msra.mxu0 %v2642
  %2665 = vmatmul.bf16.gmra.mxu0 %v2636
  %v2666 = vpop.f32.mrf.mxu0
  %v2667 = vadd.f32 0.0, %v2666
  %v2668 = vpop.f32.mrf.mxu0
  %2669 = vdwg.mxu0
  %v2670 = vadd.f32 %v2621, %v2654
  %v2671 = vadd.f32 %v2622, %v2667
  %v2672 = vld [vmem:[%s982] sm:$0xf]
  %2673 = vrot.lane.b32.xlu0 %v2337, 16
  %v2674 = vpop.permute.xlu0 %2673
  %2675 = vrot.lane.b32.xlu0 %v2338, 16
  %v2676 = vpop.permute.xlu0 %2675
  %v2677 = vsel %vm119, %v2674, %v2676
  %v2679 = vsel %vm121, 0, %v2674
  %v2681 = vsel %vm633, %v2672, 0
  %v2683 = vsel %vm637, %v2679, 0
  %v2686 = vsel %vm637, %v2677, 0
  %2688 = vmatpush.bf16.msra.mxu0 0
  %2689 = vmatpush.bf16.msra.mxu0 0
  %2690 = vmatpush.bf16.msra.mxu0 0
  %2691 = vmatpush.bf16.msra.mxu0 0
  %2692 = vmatpush.bf16.msra.mxu0 0
  %2693 = vmatpush.bf16.msra.mxu0 0
  %2694 = vmatpush.bf16.msra.mxu0 0
  %2695 = vmatpush.bf16.msra.mxu0 %v2683
  %2696 = vmatmul.bf16.gmra.mxu0 %v2681
  %v2697 = vpop.f32.mrf.mxu0
  %v2698 = vadd.f32 0.0, %v2697
  %v2699 = vpop.f32.mrf.mxu0
  %2700 = vdwg.mxu0
  %2701 = vmatpush.bf16.msra.mxu0 0
  %2702 = vmatpush.bf16.msra.mxu0 0
  %2703 = vmatpush.bf16.msra.mxu0 0
  %2704 = vmatpush.bf16.msra.mxu0 0
  %2705 = vmatpush.bf16.msra.mxu0 0
  %2706 = vmatpush.bf16.msra.mxu0 0
  %2707 = vmatpush.bf16.msra.mxu0 0
  %2708 = vmatpush.bf16.msra.mxu0 %v2686
  %2709 = vmatmul.bf16.gmra.mxu0 %v2681
  %v2710 = vpop.f32.mrf.mxu0
  %v2711 = vadd.f32 0.0, %v2710
  %v2712 = vpop.f32.mrf.mxu0
  %2713 = vdwg.mxu0
  %v2714 = vadd.f32 %v2670, %v2698
  %v2715 = vadd.f32 %v2671, %v2711
  %v2716 = vld [vmem:[%s1027] sm:$0xf]
  %2717 = vrot.lane.b32.xlu0 %v2337, 15
  %v2718 = vpop.permute.xlu0 %2717
  %2719 = vrot.lane.b32.xlu0 %v2338, 15
  %v2720 = vpop.permute.xlu0 %2719
  %v2721 = vsel %vm201, %v2718, %v2720
  %v2724 = vsel %vm204, 0, %v2718
  %v2726 = vsel %vm224, %v2724, 0
  %v2727 = vsel %vm231, %v2721, 0
  %v2729 = vsel %vm633, %v2716, 0
  %v2732 = vsel %vm637, %v2726, 0
  %v2735 = vsel %vm637, %v2727, 0
  %2737 = vmatpush.bf16.msra.mxu0 0
  %2738 = vmatpush.bf16.msra.mxu0 0
  %2739 = vmatpush.bf16.msra.mxu0 0
  %2740 = vmatpush.bf16.msra.mxu0 0
  %2741 = vmatpush.bf16.msra.mxu0 0
  %2742 = vmatpush.bf16.msra.mxu0 0
  %2743 = vmatpush.bf16.msra.mxu0 0
  %2744 = vmatpush.bf16.msra.mxu0 %v2732
  %2745 = vmatmul.bf16.gmra.mxu0 %v2729
  %v2746 = vpop.f32.mrf.mxu0
  %v2747 = vadd.f32 0.0, %v2746
  %v2748 = vpop.f32.mrf.mxu0
  %2749 = vdwg.mxu0
  %2750 = vmatpush.bf16.msra.mxu0 0
  %2751 = vmatpush.bf16.msra.mxu0 0
  %2752 = vmatpush.bf16.msra.mxu0 0
  %2753 = vmatpush.bf16.msra.mxu0 0
  %2754 = vmatpush.bf16.msra.mxu0 0
  %2755 = vmatpush.bf16.msra.mxu0 0
  %2756 = vmatpush.bf16.msra.mxu0 0
  %2757 = vmatpush.bf16.msra.mxu0 %v2735
  %2758 = vmatmul.bf16.gmra.mxu0 %v2729
  %v2759 = vpop.f32.mrf.mxu0
  %v2760 = vadd.f32 0.0, %v2759
  %v2761 = vpop.f32.mrf.mxu0
  %2762 = vdwg.mxu0
  %v2763 = vadd.f32 %v2714, %v2747
  %v2764 = vadd.f32 %v2715, %v2760
  %v2765 = vld [vmem:[%s1077] sm:$0xf]
  %2766 = vrot.lane.b32.xlu0 %v2337, 14
  %v2767 = vpop.permute.xlu0 %2766
  %2768 = vrot.lane.b32.xlu0 %v2338, 14
  %v2769 = vpop.permute.xlu0 %2768
  %v2770 = vsel %vm1083, %v2767, %v2769
  %v2773 = vsel %vm1086, 0, %v2767
  %v2775 = vsel %vm833, %v2773, 0
  %v2776 = vsel %vm840, %v2770, 0
  %v2778 = vsel %vm633, %v2765, 0
  %v2781 = vsel %vm637, %v2775, 0
  %v2784 = vsel %vm637, %v2776, 0
  %2786 = vmatpush.bf16.msra.mxu0 0
  %2787 = vmatpush.bf16.msra.mxu0 0
  %2788 = vmatpush.bf16.msra.mxu0 0
  %2789 = vmatpush.bf16.msra.mxu0 0
  %2790 = vmatpush.bf16.msra.mxu0 0
  %2791 = vmatpush.bf16.msra.mxu0 0
  %2792 = vmatpush.bf16.msra.mxu0 0
  %2793 = vmatpush.bf16.msra.mxu0 %v2781
  %2794 = vmatmul.bf16.gmra.mxu0 %v2778
  %v2795 = vpop.f32.mrf.mxu0
  %v2796 = vadd.f32 0.0, %v2795
  %v2797 = vpop.f32.mrf.mxu0
  %2798 = vdwg.mxu0
  %2799 = vmatpush.bf16.msra.mxu0 0
  %2800 = vmatpush.bf16.msra.mxu0 0
  %2801 = vmatpush.bf16.msra.mxu0 0
  %2802 = vmatpush.bf16.msra.mxu0 0
  %2803 = vmatpush.bf16.msra.mxu0 0
  %2804 = vmatpush.bf16.msra.mxu0 0
  %2805 = vmatpush.bf16.msra.mxu0 0
  %2806 = vmatpush.bf16.msra.mxu0 %v2784
  %2807 = vmatmul.bf16.gmra.mxu0 %v2778
  %v2808 = vpop.f32.mrf.mxu0
  %v2809 = vadd.f32 0.0, %v2808
  %v2810 = vpop.f32.mrf.mxu0
  %2811 = vdwg.mxu0
  %v2812 = vadd.f32 %v2763, %v2796
  %v2813 = vadd.f32 %v2764, %v2809
  %v2814 = vld [vmem:[%s1129] sm:$0xf]
  %2815 = vrot.lane.b32.xlu0 %v2337, 2
  %v2816 = vpop.permute.xlu0 %2815
  %2817 = vrot.lane.b32.xlu0 %v2338, 2
  %v2818 = vpop.permute.xlu0 %2817
  %v2819 = vsel %vm1135, %v2816, %v2818
  %v2822 = vsel %vm1138, 0, %v2816
  %v2824 = vsel %vm608, %v2822, 0
  %v2825 = vsel %vm615, %v2819, 0
  %v2827 = vsel %vm633, %v2814, 0
  %v2830 = vsel %vm637, %v2824, 0
  %v2833 = vsel %vm637, %v2825, 0
  %2835 = vmatpush.bf16.msra.mxu0 0
  %2836 = vmatpush.bf16.msra.mxu0 0
  %2837 = vmatpush.bf16.msra.mxu0 0
  %2838 = vmatpush.bf16.msra.mxu0 0
  %2839 = vmatpush.bf16.msra.mxu0 0
  %2840 = vmatpush.bf16.msra.mxu0 0
  %2841 = vmatpush.bf16.msra.mxu0 0
  %2842 = vmatpush.bf16.msra.mxu0 %v2830
  %2843 = vmatmul.bf16.gmra.mxu0 %v2827
  %v2844 = vpop.f32.mrf.mxu0
  %v2845 = vadd.f32 0.0, %v2844
  %v2846 = vpop.f32.mrf.mxu0
  %2847 = vdwg.mxu0
  %2848 = vmatpush.bf16.msra.mxu0 0
  %2849 = vmatpush.bf16.msra.mxu0 0
  %2850 = vmatpush.bf16.msra.mxu0 0
  %2851 = vmatpush.bf16.msra.mxu0 0
  %2852 = vmatpush.bf16.msra.mxu0 0
  %2853 = vmatpush.bf16.msra.mxu0 0
  %2854 = vmatpush.bf16.msra.mxu0 0
  %2855 = vmatpush.bf16.msra.mxu0 %v2833
  %2856 = vmatmul.bf16.gmra.mxu0 %v2827
  %v2857 = vpop.f32.mrf.mxu0
  %v2858 = vadd.f32 0.0, %v2857
  %v2859 = vpop.f32.mrf.mxu0
  %2860 = vdwg.mxu0
  %v2861 = vadd.f32 %v2812, %v2845
  %v2862 = vadd.f32 %v2813, %v2858
  %v2863 = vld [vmem:[%s1181] sm:$0xf]
  %2864 = vrot.lane.b32.xlu0 %v2337, 1
  %v2865 = vpop.permute.xlu0 %2864
  %2866 = vrot.lane.b32.xlu0 %v2338, 1
  %v2867 = vpop.permute.xlu0 %2866
  %v2868 = vsel %vm277, %v2865, %v2867
  %v2871 = vsel %vm280, 0, %v2865
  %v2873 = vsel %vm103, %v2871, 0
  %v2874 = vsel %vm110, %v2868, 0
  %v2876 = vsel %vm633, %v2863, 0
  %v2879 = vsel %vm637, %v2873, 0
  %v2882 = vsel %vm637, %v2874, 0
  %2884 = vmatpush.bf16.msra.mxu0 0
  %2885 = vmatpush.bf16.msra.mxu0 0
  %2886 = vmatpush.bf16.msra.mxu0 0
  %2887 = vmatpush.bf16.msra.mxu0 0
  %2888 = vmatpush.bf16.msra.mxu0 0
  %2889 = vmatpush.bf16.msra.mxu0 0
  %2890 = vmatpush.bf16.msra.mxu0 0
  %2891 = vmatpush.bf16.msra.mxu0 %v2879
  %2892 = vmatmul.bf16.gmra.mxu0 %v2876
  %v2893 = vpop.f32.mrf.mxu0
  %v2894 = vadd.f32 0.0, %v2893
  %v2895 = vpop.f32.mrf.mxu0
  %2896 = vdwg.mxu0
  %2897 = vmatpush.bf16.msra.mxu0 0
  %2898 = vmatpush.bf16.msra.mxu0 0
  %2899 = vmatpush.bf16.msra.mxu0 0
  %2900 = vmatpush.bf16.msra.mxu0 0
  %2901 = vmatpush.bf16.msra.mxu0 0
  %2902 = vmatpush.bf16.msra.mxu0 0
  %2903 = vmatpush.bf16.msra.mxu0 0
  %2904 = vmatpush.bf16.msra.mxu0 %v2882
  %2905 = vmatmul.bf16.gmra.mxu0 %v2876
  %v2906 = vpop.f32.mrf.mxu0
  %v2907 = vadd.f32 0.0, %v2906
  %v2908 = vpop.f32.mrf.mxu0
  %2909 = vdwg.mxu0
  %v2910 = vadd.f32 %v2861, %v2894
  %v2911 = vadd.f32 %v2862, %v2907
  %v2912 = vld [vmem:[%s1231] sm:$0xf]
  %v2914 = vsel %vm633, %v2912, 0
  %v2917 = vsel %vm637, %v2337, 0
  %v2920 = vsel %vm637, %v2338, 0
  %2922 = vmatpush.bf16.msra.mxu0 0
  %2923 = vmatpush.bf16.msra.mxu0 0
  %2924 = vmatpush.bf16.msra.mxu0 0
  %2925 = vmatpush.bf16.msra.mxu0 0
  %2926 = vmatpush.bf16.msra.mxu0 0
  %2927 = vmatpush.bf16.msra.mxu0 0
  %2928 = vmatpush.bf16.msra.mxu0 0
  %2929 = vmatpush.bf16.msra.mxu0 %v2917
  %2930 = vmatmul.bf16.gmra.mxu0 %v2914
  %v2931 = vpop.f32.mrf.mxu0
  %v2932 = vadd.f32 0.0, %v2931
  %v2933 = vpop.f32.mrf.mxu0
  %2934 = vdwg.mxu0
  %2935 = vmatpush.bf16.msra.mxu0 0
  %2936 = vmatpush.bf16.msra.mxu0 0
  %2937 = vmatpush.bf16.msra.mxu0 0
  %2938 = vmatpush.bf16.msra.mxu0 0
  %2939 = vmatpush.bf16.msra.mxu0 0
  %2940 = vmatpush.bf16.msra.mxu0 0
  %2941 = vmatpush.bf16.msra.mxu0 0
  %2942 = vmatpush.bf16.msra.mxu0 %v2920
  %2943 = vmatmul.bf16.gmra.mxu0 %v2914
  %v2944 = vpop.f32.mrf.mxu0
  %v2945 = vadd.f32 0.0, %v2944
  %v2946 = vpop.f32.mrf.mxu0
  %2947 = vdwg.mxu0
  %v2948 = vadd.f32 %v2910, %v2932
  %v2949 = vadd.f32 %v2911, %v2945
  %v2950 = vld [vmem:[%s1270] sm:$0xf]
  %2951 = vrot.lane.b32.xlu0 %v2337, 127
  %v2952 = vpop.permute.xlu0 %2951
  %2953 = vrot.lane.b32.xlu0 %v2338, 127
  %v2954 = vpop.permute.xlu0 %2953
  %v2955 = vsel %vm368, %v2952, %v2954
  %v2958 = vsel %vm371, %v2954, 0
  %v2960 = vsel %vm224, %v2955, 0
  %v2961 = vsel %vm231, %v2958, 0
  %v2963 = vsel %vm633, %v2950, 0
  %v2966 = vsel %vm637, %v2960, 0
  %v2969 = vsel %vm637, %v2961, 0
  %2971 = vmatpush.bf16.msra.mxu0 0
  %2972 = vmatpush.bf16.msra.mxu0 0
  %2973 = vmatpush.bf16.msra.mxu0 0
  %2974 = vmatpush.bf16.msra.mxu0 0
  %2975 = vmatpush.bf16.msra.mxu0 0
  %2976 = vmatpush.bf16.msra.mxu0 0
  %2977 = vmatpush.bf16.msra.mxu0 0
  %2978 = vmatpush.bf16.msra.mxu0 %v2966
  %2979 = vmatmul.bf16.gmra.mxu0 %v2963
  %v2980 = vpop.f32.mrf.mxu0
  %v2981 = vadd.f32 0.0, %v2980
  %v2982 = vpop.f32.mrf.mxu0
  %2983 = vdwg.mxu0
  %2984 = vmatpush.bf16.msra.mxu0 0
  %2985 = vmatpush.bf16.msra.mxu0 0
  %2986 = vmatpush.bf16.msra.mxu0 0
  %2987 = vmatpush.bf16.msra.mxu0 0
  %2988 = vmatpush.bf16.msra.mxu0 0
  %2989 = vmatpush.bf16.msra.mxu0 0
  %2990 = vmatpush.bf16.msra.mxu0 0
  %2991 = vmatpush.bf16.msra.mxu0 %v2969
  %2992 = vmatmul.bf16.gmra.mxu0 %v2963
  %v2993 = vpop.f32.mrf.mxu0
  %v2994 = vadd.f32 0.0, %v2993
  %v2995 = vpop.f32.mrf.mxu0
  %2996 = vdwg.mxu0
  %v2997 = vadd.f32 %v2948, %v2981
  %v2998 = vadd.f32 %v2949, %v2994
  %v2999 = vld [vmem:[%s1320] sm:$0xf]
  %3000 = vrot.lane.b32.xlu0 %v2337, 126
  %v3001 = vpop.permute.xlu0 %3000
  %3002 = vrot.lane.b32.xlu0 %v2338, 126
  %v3003 = vpop.permute.xlu0 %3002
  %v3004 = vsel %vm1326, %v3001, %v3003
  %v3007 = vsel %vm1329, %v3003, 0
  %v3009 = vsel %vm833, %v3004, 0
  %v3010 = vsel %vm840, %v3007, 0
  %v3012 = vsel %vm633, %v2999, 0
  %v3015 = vsel %vm637, %v3009, 0
  %v3018 = vsel %vm637, %v3010, 0
  %3020 = vmatpush.bf16.msra.mxu0 0
  %3021 = vmatpush.bf16.msra.mxu0 0
  %3022 = vmatpush.bf16.msra.mxu0 0
  %3023 = vmatpush.bf16.msra.mxu0 0
  %3024 = vmatpush.bf16.msra.mxu0 0
  %3025 = vmatpush.bf16.msra.mxu0 0
  %3026 = vmatpush.bf16.msra.mxu0 0
  %3027 = vmatpush.bf16.msra.mxu0 %v3015
  %3028 = vmatmul.bf16.gmra.mxu0 %v3012
  %v3029 = vpop.f32.mrf.mxu0
  %v3030 = vadd.f32 0.0, %v3029
  %v3031 = vpop.f32.mrf.mxu0
  %3032 = vdwg.mxu0
  %3033 = vmatpush.bf16.msra.mxu0 0
  %3034 = vmatpush.bf16.msra.mxu0 0
  %3035 = vmatpush.bf16.msra.mxu0 0
  %3036 = vmatpush.bf16.msra.mxu0 0
  %3037 = vmatpush.bf16.msra.mxu0 0
  %3038 = vmatpush.bf16.msra.mxu0 0
  %3039 = vmatpush.bf16.msra.mxu0 0
  %3040 = vmatpush.bf16.msra.mxu0 %v3018
  %3041 = vmatmul.bf16.gmra.mxu0 %v3012
  %v3042 = vpop.f32.mrf.mxu0
  %v3043 = vadd.f32 0.0, %v3042
  %v3044 = vpop.f32.mrf.mxu0
  %3045 = vdwg.mxu0
  %v3046 = vadd.f32 %v2997, %v3030
  %v3047 = vadd.f32 %v2998, %v3043
  %v3048 = vld [vmem:[%s1372] sm:$0xf]
  %3049 = vrot.lane.b32.xlu0 %v2337, 114
  %v3050 = vpop.permute.xlu0 %3049
  %3051 = vrot.lane.b32.xlu0 %v2338, 114
  %v3052 = vpop.permute.xlu0 %3051
  %v3053 = vsel %vm1378, %v3050, %v3052
  %v3056 = vsel %vm1381, %v3052, 0
  %v3058 = vsel %vm608, %v3053, 0
  %v3059 = vsel %vm615, %v3056, 0
  %v3061 = vsel %vm633, %v3048, 0
  %v3064 = vsel %vm637, %v3058, 0
  %v3067 = vsel %vm637, %v3059, 0
  %3069 = vmatpush.bf16.msra.mxu0 0
  %3070 = vmatpush.bf16.msra.mxu0 0
  %3071 = vmatpush.bf16.msra.mxu0 0
  %3072 = vmatpush.bf16.msra.mxu0 0
  %3073 = vmatpush.bf16.msra.mxu0 0
  %3074 = vmatpush.bf16.msra.mxu0 0
  %3075 = vmatpush.bf16.msra.mxu0 0
  %3076 = vmatpush.bf16.msra.mxu0 %v3064
  %3077 = vmatmul.bf16.gmra.mxu0 %v3061
  %v3078 = vpop.f32.mrf.mxu0
  %v3079 = vadd.f32 0.0, %v3078
  %v3080 = vpop.f32.mrf.mxu0
  %3081 = vdwg.mxu0
  %3082 = vmatpush.bf16.msra.mxu0 0
  %3083 = vmatpush.bf16.msra.mxu0 0
  %3084 = vmatpush.bf16.msra.mxu0 0
  %3085 = vmatpush.bf16.msra.mxu0 0
  %3086 = vmatpush.bf16.msra.mxu0 0
  %3087 = vmatpush.bf16.msra.mxu0 0
  %3088 = vmatpush.bf16.msra.mxu0 0
  %3089 = vmatpush.bf16.msra.mxu0 %v3067
  %3090 = vmatmul.bf16.gmra.mxu0 %v3061
  %v3091 = vpop.f32.mrf.mxu0
  %v3092 = vadd.f32 0.0, %v3091
  %v3093 = vpop.f32.mrf.mxu0
  %3094 = vdwg.mxu0
  %v3095 = vadd.f32 %v3046, %v3079
  %v3096 = vadd.f32 %v3047, %v3092
  %v3097 = vld [vmem:[%s1424] sm:$0xf]
  %3098 = vrot.lane.b32.xlu0 %v2337, 113
  %v3099 = vpop.permute.xlu0 %3098
  %3100 = vrot.lane.b32.xlu0 %v2338, 113
  %v3101 = vpop.permute.xlu0 %3100
  %v3102 = vsel %vm420, %v3099, %v3101
  %v3105 = vsel %vm423, %v3101, 0
  %v3107 = vsel %vm103, %v3102, 0
  %v3108 = vsel %vm110, %v3105, 0
  %v3110 = vsel %vm633, %v3097, 0
  %v3113 = vsel %vm637, %v3107, 0
  %v3116 = vsel %vm637, %v3108, 0
  %3118 = vmatpush.bf16.msra.mxu0 0
  %3119 = vmatpush.bf16.msra.mxu0 0
  %3120 = vmatpush.bf16.msra.mxu0 0
  %3121 = vmatpush.bf16.msra.mxu0 0
  %3122 = vmatpush.bf16.msra.mxu0 0
  %3123 = vmatpush.bf16.msra.mxu0 0
  %3124 = vmatpush.bf16.msra.mxu0 0
  %3125 = vmatpush.bf16.msra.mxu0 %v3113
  %3126 = vmatmul.bf16.gmra.mxu0 %v3110
  %v3127 = vpop.f32.mrf.mxu0
  %v3128 = vadd.f32 0.0, %v3127
  %v3129 = vpop.f32.mrf.mxu0
  %3130 = vdwg.mxu0
  %3131 = vmatpush.bf16.msra.mxu0 0
  %3132 = vmatpush.bf16.msra.mxu0 0
  %3133 = vmatpush.bf16.msra.mxu0 0
  %3134 = vmatpush.bf16.msra.mxu0 0
  %3135 = vmatpush.bf16.msra.mxu0 0
  %3136 = vmatpush.bf16.msra.mxu0 0
  %3137 = vmatpush.bf16.msra.mxu0 0
  %3138 = vmatpush.bf16.msra.mxu0 %v3116
  %3139 = vmatmul.bf16.gmra.mxu0 %v3110
  %v3140 = vpop.f32.mrf.mxu0
  %v3141 = vadd.f32 0.0, %v3140
  %v3142 = vpop.f32.mrf.mxu0
  %3143 = vdwg.mxu0
  %v3144 = vadd.f32 %v3095, %v3128
  %v3145 = vadd.f32 %v3096, %v3141
  %v3146 = vld [vmem:[%s1474] sm:$0xf]
  %3147 = vrot.lane.b32.xlu0 %v2337, 112
  %v3148 = vpop.permute.xlu0 %3147
  %3149 = vrot.lane.b32.xlu0 %v2338, 112
  %v3150 = vpop.permute.xlu0 %3149
  %v3151 = vsel %vm472, %v3148, %v3150
  %v3153 = vsel %vm474, %v3150, 0
  %v3155 = vsel %vm633, %v3146, 0
  %v3158 = vsel %vm637, %v3151, 0
  %v3160 = vsel %vm637, %v3153, 0
  %3162 = vmatpush.bf16.msra.mxu0 0
  %3163 = vmatpush.bf16.msra.mxu0 0
  %3164 = vmatpush.bf16.msra.mxu0 0
  %3165 = vmatpush.bf16.msra.mxu0 0
  %3166 = vmatpush.bf16.msra.mxu0 0
  %3167 = vmatpush.bf16.msra.mxu0 0
  %3168 = vmatpush.bf16.msra.mxu0 0
  %3169 = vmatpush.bf16.msra.mxu0 %v3158
  %3170 = vmatmul.bf16.gmra.mxu0 %v3155
  %v3171 = vpop.f32.mrf.mxu0
  %v3172 = vadd.f32 0.0, %v3171
  %v3173 = vpop.f32.mrf.mxu0
  %3174 = vdwg.mxu0
  %3175 = vmatpush.bf16.msra.mxu0 0
  %3176 = vmatpush.bf16.msra.mxu0 0
  %3177 = vmatpush.bf16.msra.mxu0 0
  %3178 = vmatpush.bf16.msra.mxu0 0
  %3179 = vmatpush.bf16.msra.mxu0 0
  %3180 = vmatpush.bf16.msra.mxu0 0
  %3181 = vmatpush.bf16.msra.mxu0 0
  %3182 = vmatpush.bf16.msra.mxu0 %v3160
  %3183 = vmatmul.bf16.gmra.mxu0 %v3155
  %v3184 = vpop.f32.mrf.mxu0
  %v3185 = vadd.f32 0.0, %v3184
  %v3186 = vpop.f32.mrf.mxu0
  %3187 = vdwg.mxu0
  %v3188 = vadd.f32 %v3144, %v3172
  %v3189 = vadd.f32 %v3145, %v3185
  %v3190 = vld [vmem:[%s1519] sm:$0xf]
  %3191 = vrot.lane.b32.xlu0 %v2337, 111
  %v3192 = vpop.permute.xlu0 %3191
  %3193 = vrot.lane.b32.xlu0 %v2338, 111
  %v3194 = vpop.permute.xlu0 %3193
  %v3195 = vsel %vm519, %v3192, %v3194
  %v3198 = vsel %vm522, %v3194, 0
  %v3200 = vsel %vm224, %v3195, 0
  %v3201 = vsel %vm231, %v3198, 0
  %v3203 = vsel %vm633, %v3190, 0
  %v3206 = vsel %vm637, %v3200, 0
  %v3209 = vsel %vm637, %v3201, 0
  %3211 = vmatpush.bf16.msra.mxu0 0
  %3212 = vmatpush.bf16.msra.mxu0 0
  %3213 = vmatpush.bf16.msra.mxu0 0
  %3214 = vmatpush.bf16.msra.mxu0 0
  %3215 = vmatpush.bf16.msra.mxu0 0
  %3216 = vmatpush.bf16.msra.mxu0 0
  %3217 = vmatpush.bf16.msra.mxu0 0
  %3218 = vmatpush.bf16.msra.mxu0 %v3206
  %3219 = vmatmul.bf16.gmra.mxu0 %v3203
  %v3220 = vpop.f32.mrf.mxu0
  %v3221 = vadd.f32 0.0, %v3220
  %v3222 = vpop.f32.mrf.mxu0
  %3223 = vdwg.mxu0
  %3224 = vmatpush.bf16.msra.mxu0 0
  %3225 = vmatpush.bf16.msra.mxu0 0
  %3226 = vmatpush.bf16.msra.mxu0 0
  %3227 = vmatpush.bf16.msra.mxu0 0
  %3228 = vmatpush.bf16.msra.mxu0 0
  %3229 = vmatpush.bf16.msra.mxu0 0
  %3230 = vmatpush.bf16.msra.mxu0 0
  %3231 = vmatpush.bf16.msra.mxu0 %v3209
  %3232 = vmatmul.bf16.gmra.mxu0 %v3203
  %v3233 = vpop.f32.mrf.mxu0
  %v3234 = vadd.f32 0.0, %v3233
  %v3235 = vpop.f32.mrf.mxu0
  %3236 = vdwg.mxu0
  %v3237 = vadd.f32 %v3188, %v3221
  %v3238 = vadd.f32 %v3189, %v3234
  %v3239 = vld [vmem:[%s1569] sm:$0xf]
  %3240 = vrot.lane.b32.xlu0 %v2337, 110
  %v3241 = vpop.permute.xlu0 %3240
  %3242 = vrot.lane.b32.xlu0 %v2338, 110
  %v3243 = vpop.permute.xlu0 %3242
  %v3244 = vsel %vm1575, %v3241, %v3243
  %v3247 = vsel %vm1578, %v3243, 0
  %v3249 = vsel %vm833, %v3244, 0
  %v3250 = vsel %vm840, %v3247, 0
  %v3252 = vsel %vm633, %v3239, 0
  %v3255 = vsel %vm637, %v3249, 0
  %v3258 = vsel %vm637, %v3250, 0
  %3260 = vmatpush.bf16.msra.mxu0 0
  %3261 = vmatpush.bf16.msra.mxu0 0
  %3262 = vmatpush.bf16.msra.mxu0 0
  %3263 = vmatpush.bf16.msra.mxu0 0
  %3264 = vmatpush.bf16.msra.mxu0 0
  %3265 = vmatpush.bf16.msra.mxu0 0
  %3266 = vmatpush.bf16.msra.mxu0 0
  %3267 = vmatpush.bf16.msra.mxu0 %v3255
  %3268 = vmatmul.bf16.gmra.mxu0 %v3252
  %v3269 = vpop.f32.mrf.mxu0
  %v3270 = vadd.f32 0.0, %v3269
  %v3271 = vpop.f32.mrf.mxu0
  %3272 = vdwg.mxu0
  %3273 = vmatpush.bf16.msra.mxu0 0
  %3274 = vmatpush.bf16.msra.mxu0 0
  %3275 = vmatpush.bf16.msra.mxu0 0
  %3276 = vmatpush.bf16.msra.mxu0 0
  %3277 = vmatpush.bf16.msra.mxu0 0
  %3278 = vmatpush.bf16.msra.mxu0 0
  %3279 = vmatpush.bf16.msra.mxu0 0
  %3280 = vmatpush.bf16.msra.mxu0 %v3258
  %3281 = vmatmul.bf16.gmra.mxu0 %v3252
  %v3282 = vpop.f32.mrf.mxu0
  %v3283 = vadd.f32 0.0, %v3282
  %v3284 = vpop.f32.mrf.mxu0
  %3285 = vdwg.mxu0
  %v3286 = vadd.f32 %v3237, %v3270
  %v3287 = vadd.f32 %v3238, %v3283
  %v3288 = vld [vmem:[%s1621] sm:$0xf]
  %3289 = vrot.lane.b32.xlu0 %v2337, 98
  %v3290 = vpop.permute.xlu0 %3289
  %3291 = vrot.lane.b32.xlu0 %v2338, 98
  %v3292 = vpop.permute.xlu0 %3291
  %v3293 = vsel %vm1627, %v3290, %v3292
  %v3296 = vsel %vm1630, %v3292, 0
  %v3298 = vsel %vm608, %v3293, 0
  %v3299 = vsel %vm615, %v3296, 0
  %v3301 = vsel %vm633, %v3288, 0
  %v3304 = vsel %vm637, %v3298, 0
  %v3307 = vsel %vm637, %v3299, 0
  %3309 = vmatpush.bf16.msra.mxu0 0
  %3310 = vmatpush.bf16.msra.mxu0 0
  %3311 = vmatpush.bf16.msra.mxu0 0
  %3312 = vmatpush.bf16.msra.mxu0 0
  %3313 = vmatpush.bf16.msra.mxu0 0
  %3314 = vmatpush.bf16.msra.mxu0 0
  %3315 = vmatpush.bf16.msra.mxu0 0
  %3316 = vmatpush.bf16.msra.mxu0 %v3304
  %3317 = vmatmul.bf16.gmra.mxu0 %v3301
  %v3318 = vpop.f32.mrf.mxu0
  %v3319 = vadd.f32 0.0, %v3318
  %v3320 = vpop.f32.mrf.mxu0
  %3321 = vdwg.mxu0
  %3322 = vmatpush.bf16.msra.mxu0 0
  %3323 = vmatpush.bf16.msra.mxu0 0
  %3324 = vmatpush.bf16.msra.mxu0 0
  %3325 = vmatpush.bf16.msra.mxu0 0
  %3326 = vmatpush.bf16.msra.mxu0 0
  %3327 = vmatpush.bf16.msra.mxu0 0
  %3328 = vmatpush.bf16.msra.mxu0 0
  %3329 = vmatpush.bf16.msra.mxu0 %v3307
  %3330 = vmatmul.bf16.gmra.mxu0 %v3301
  %v3331 = vpop.f32.mrf.mxu0
  %v3332 = vadd.f32 0.0, %v3331
  %v3333 = vpop.f32.mrf.mxu0
  %3334 = vdwg.mxu0
  %v3335 = vadd.f32 %v3286, %v3319
  %v3336 = vadd.f32 %v3287, %v3332
  %v3337 = vld [vmem:[%s1673] sm:$0xf]
  %3338 = vrot.lane.b32.xlu0 %v2337, 97
  %v3339 = vpop.permute.xlu0 %3338
  %3340 = vrot.lane.b32.xlu0 %v2338, 97
  %v3341 = vpop.permute.xlu0 %3340
  %v3342 = vsel %vm1679, %v3339, %v3341
  %v3345 = vsel %vm1682, %v3341, 0
  %v3347 = vsel %vm103, %v3342, 0
  %v3348 = vsel %vm110, %v3345, 0
  %v3350 = vsel %vm633, %v3337, 0
  %v3353 = vsel %vm637, %v3347, 0
  %v3356 = vsel %vm637, %v3348, 0
  %3358 = vmatpush.bf16.msra.mxu0 0
  %3359 = vmatpush.bf16.msra.mxu0 0
  %3360 = vmatpush.bf16.msra.mxu0 0
  %3361 = vmatpush.bf16.msra.mxu0 0
  %3362 = vmatpush.bf16.msra.mxu0 0
  %3363 = vmatpush.bf16.msra.mxu0 0
  %3364 = vmatpush.bf16.msra.mxu0 0
  %3365 = vmatpush.bf16.msra.mxu0 %v3353
  %3366 = vmatmul.bf16.gmra.mxu0 %v3350
  %v3367 = vpop.f32.mrf.mxu0
  %v3368 = vadd.f32 0.0, %v3367
  %v3369 = vpop.f32.mrf.mxu0
  %3370 = vdwg.mxu0
  %3371 = vmatpush.bf16.msra.mxu0 0
  %3372 = vmatpush.bf16.msra.mxu0 0
  %3373 = vmatpush.bf16.msra.mxu0 0
  %3374 = vmatpush.bf16.msra.mxu0 0
  %3375 = vmatpush.bf16.msra.mxu0 0
  %3376 = vmatpush.bf16.msra.mxu0 0
  %3377 = vmatpush.bf16.msra.mxu0 0
  %3378 = vmatpush.bf16.msra.mxu0 %v3356
  %3379 = vmatmul.bf16.gmra.mxu0 %v3350
  %v3380 = vpop.f32.mrf.mxu0
  %v3381 = vadd.f32 0.0, %v3380
  %v3382 = vpop.f32.mrf.mxu0
  %3383 = vdwg.mxu0
  %v3384 = vadd.f32 %v3335, %v3368
  %v3385 = vadd.f32 %v3336, %v3381
  %v3386 = vld [vmem:[%s1725] sm:$0xf]
  %3387 = vrot.lane.b32.xlu0 %v2337, 96
  %v3388 = vpop.permute.xlu0 %3387
  %3389 = vrot.lane.b32.xlu0 %v2338, 96
  %v3390 = vpop.permute.xlu0 %3389
  %v3391 = vsel %vm1731, %v3388, %v3390
  %v3393 = vsel %vm1733, %v3390, 0
  %v3395 = vsel %vm633, %v3386, 0
  %v3398 = vsel %vm637, %v3391, 0
  %v3400 = vsel %vm637, %v3393, 0
  %3402 = vmatpush.bf16.msra.mxu0 0
  %3403 = vmatpush.bf16.msra.mxu0 0
  %3404 = vmatpush.bf16.msra.mxu0 0
  %3405 = vmatpush.bf16.msra.mxu0 0
  %3406 = vmatpush.bf16.msra.mxu0 0
  %3407 = vmatpush.bf16.msra.mxu0 0
  %3408 = vmatpush.bf16.msra.mxu0 0
  %3409 = vmatpush.bf16.msra.mxu0 %v3398
  %3410 = vmatmul.bf16.gmra.mxu0 %v3395
  %v3411 = vpop.f32.mrf.mxu0
  %v3412 = vadd.f32 0.0, %v3411
  %v3413 = vpop.f32.mrf.mxu0
  %3414 = vdwg.mxu0
  %3415 = vmatpush.bf16.msra.mxu0 0
  %3416 = vmatpush.bf16.msra.mxu0 0
  %3417 = vmatpush.bf16.msra.mxu0 0
  %3418 = vmatpush.bf16.msra.mxu0 0
  %3419 = vmatpush.bf16.msra.mxu0 0
  %3420 = vmatpush.bf16.msra.mxu0 0
  %3421 = vmatpush.bf16.msra.mxu0 0
  %3422 = vmatpush.bf16.msra.mxu0 %v3400
  %3423 = vmatmul.bf16.gmra.mxu0 %v3395
  %v3424 = vpop.f32.mrf.mxu0
  %v3425 = vadd.f32 0.0, %v3424
  %v3426 = vpop.f32.mrf.mxu0
  %3427 = vdwg.mxu0
  %v3428 = vadd.f32 %v3384, %v3412
  %v3429 = vadd.f32 %v3385, %v3425
  %v3430 = vld [vmem:[%s1772] sm:$0xf]
  %3431 = vrot.lane.b32.xlu0 %v2337, 95
  %v3432 = vpop.permute.xlu0 %3431
  %3433 = vrot.lane.b32.xlu0 %v2338, 95
  %v3434 = vpop.permute.xlu0 %3433
  %v3435 = vsel %vm1778, %v3432, %v3434
  %v3438 = vsel %vm1781, %v3434, 0
  %v3440 = vsel %vm224, %v3435, 0
  %v3441 = vsel %vm231, %v3438, 0
  %v3443 = vsel %vm633, %v3430, 0
  %v3446 = vsel %vm637, %v3440, 0
  %v3449 = vsel %vm637, %v3441, 0
  %3451 = vmatpush.bf16.msra.mxu0 0
  %3452 = vmatpush.bf16.msra.mxu0 0
  %3453 = vmatpush.bf16.msra.mxu0 0
  %3454 = vmatpush.bf16.msra.mxu0 0
  %3455 = vmatpush.bf16.msra.mxu0 0
  %3456 = vmatpush.bf16.msra.mxu0 0
  %3457 = vmatpush.bf16.msra.mxu0 0
  %3458 = vmatpush.bf16.msra.mxu0 %v3446
  %3459 = vmatmul.bf16.gmra.mxu0 %v3443
  %v3460 = vpop.f32.mrf.mxu0
  %v3461 = vadd.f32 0.0, %v3460
  %v3462 = vpop.f32.mrf.mxu0
  %3463 = vdwg.mxu0
  %3464 = vmatpush.bf16.msra.mxu0 0
  %3465 = vmatpush.bf16.msra.mxu0 0
  %3466 = vmatpush.bf16.msra.mxu0 0
  %3467 = vmatpush.bf16.msra.mxu0 0
  %3468 = vmatpush.bf16.msra.mxu0 0
  %3469 = vmatpush.bf16.msra.mxu0 0
  %3470 = vmatpush.bf16.msra.mxu0 0
  %3471 = vmatpush.bf16.msra.mxu0 %v3449
  %3472 = vmatmul.bf16.gmra.mxu0 %v3443
  %v3473 = vpop.f32.mrf.mxu0
  %v3474 = vadd.f32 0.0, %v3473
  %v3475 = vpop.f32.mrf.mxu0
  %3476 = vdwg.mxu0
  %v3477 = vadd.f32 %v3428, %v3461
  %v3478 = vadd.f32 %v3429, %v3474
  %v3479 = vld [vmem:[%s1824] sm:$0xf]
  %3480 = vrot.lane.b32.xlu0 %v2337, 94
  %v3481 = vpop.permute.xlu0 %3480
  %3482 = vrot.lane.b32.xlu0 %v2338, 94
  %v3483 = vpop.permute.xlu0 %3482
  %v3484 = vsel %vm1830, %v3481, %v3483
  %v3487 = vsel %vm1833, %v3483, 0
  %v3489 = vsel %vm833, %v3484, 0
  %v3490 = vsel %vm840, %v3487, 0
  %v3492 = vsel %vm633, %v3479, 0
  %v3495 = vsel %vm637, %v3489, 0
  %v3498 = vsel %vm637, %v3490, 0
  %3500 = vmatpush.bf16.msra.mxu0 0
  %3501 = vmatpush.bf16.msra.mxu0 0
  %3502 = vmatpush.bf16.msra.mxu0 0
  %3503 = vmatpush.bf16.msra.mxu0 0
  %3504 = vmatpush.bf16.msra.mxu0 0
  %3505 = vmatpush.bf16.msra.mxu0 0
  %3506 = vmatpush.bf16.msra.mxu0 0
  %3507 = vmatpush.bf16.msra.mxu0 %v3495
  %3508 = vmatmul.bf16.gmra.mxu0 %v3492
  %v3509 = vpop.f32.mrf.mxu0
  %v3510 = vadd.f32 0.0, %v3509
  %v3511 = vpop.f32.mrf.mxu0
  %3512 = vdwg.mxu0
  %3513 = vmatpush.bf16.msra.mxu0 0
  %3514 = vmatpush.bf16.msra.mxu0 0
  %3515 = vmatpush.bf16.msra.mxu0 0
  %3516 = vmatpush.bf16.msra.mxu0 0
  %3517 = vmatpush.bf16.msra.mxu0 0
  %3518 = vmatpush.bf16.msra.mxu0 0
  %3519 = vmatpush.bf16.msra.mxu0 0
  %3520 = vmatpush.bf16.msra.mxu0 %v3498
  %3521 = vmatmul.bf16.gmra.mxu0 %v3492
  %v3522 = vpop.f32.mrf.mxu0
  %v3523 = vadd.f32 0.0, %v3522
  %v3524 = vpop.f32.mrf.mxu0
  %3525 = vdwg.mxu0
  %v3526 = vadd.f32 %v3477, %v3510
  %v3527 = vadd.f32 %v3478, %v3523
  %v3528 = vadd.f32 %v3526, %v57
  %v3529 = vadd.f32 %v3527, %v58
  %v3530 = vmax.f32 %v3528, 0.0
  %v3531 = vmax.f32 %v3529, 0.0
  %v3532 = vmul.f32 %v3530, %v1883
  %v3533 = vmul.f32 %v3531, %v1883
  %v3534 = vadd.f32 %v3532, %v1890
  %v3535 = vadd.f32 %v3533, %v1890
  %v3536 = vmax.f32 %v3534, 0.0
  %v3537 = vmax.f32 %v3535, 0.0
  %s3538 = scalar_lea.vmem %s7, 16
  %3539 = vst [vmem:[%s3538] sm:$0xff] %v3536
  %3540 = vst [vmem:[%s3538 + $0x8] sm:$0xff] %v3537
  // Predicated region
  $region30: #{double_conv_inception_pallas.1} parent=0 // pred_check
    _
  $region31: #{double_conv_inception_pallas.1} parent=0 // pred_check_branch
    %3542 = sbr.rel (0) target = $region33
  $region32: #{double_conv_inception_pallas.1} parent=0 // pred_region
    _
  $region33: #{double_conv_inception_pallas.1} parent=0 // pred_fallthru
    _
  // Predicated region
  $region34: #{double_conv_inception_pallas.1} parent=0 // pred_check
    _
  $region35: #{double_conv_inception_pallas.1} parent=0 // pred_check_branch
    %3544 = sbr.rel (0) target = $region37
  $region36: #{double_conv_inception_pallas.1} parent=0 // pred_region
    _
  $region37: #{double_conv_inception_pallas.1} parent=0 // pred_fallthru
    _

</llo_original>
